<compile_context>
chip_gen: v7x
topology: tpu7x:2x2x1
jax: 0.10.0
libtpu: 0.0.40
codegen_flags: <defaults>
</compile_context>

<pallas_src>
import functools

import jax
import jax.numpy as jnp
from jax import lax
from jax.experimental import pallas as pl
from jax.experimental.pallas import tpu as pltpu

NEG_INF = -1e30
_VMEM_LIMIT = 32 * 1024 * 1024      # <= scoped default on v6e/v7x, safe on v5e


# ---------------------------------------------------------------------------
# static helpers
# ---------------------------------------------------------------------------
def _round_up(n, m):
    return ((n + m - 1) // m) * m


def _pick_tile(n, cap, aligns):
    """Largest divisor of n that is <= cap and a multiple of one of `aligns`
    (earlier entries preferred); falls back to the full dimension."""
    cap = min(cap, n)
    if cap == n:
        return n
    for align in aligns:
        for c in range(cap, 0, -1):
            if n % c == 0 and c % align == 0:
                return c
    return n


# NATTEN 1D boundary bookkeeping.  Works on traced int32 arrays both inside a
# Pallas kernel and in plain JAX (used by the reference too), matching
# natten1dqkrpb's clamping.
def _window_start(i, L, K, d):
    nh = K // 2
    if d <= 1:
        return jnp.maximum(i - nh, 0) + jnp.where(i + nh >= L, L - i - nh - 1, 0)
    ni = i - nh * d
    imodd = i % d
    a = (L // d) * d
    b = L - a
    high = jnp.where(imodd < b, L - b + imodd - 2 * nh * d, a + imodd - K * d)
    return jnp.where(ni < 0, imodd, jnp.where(i + nh * d >= L, high, ni))


def _pb_start(i, L, K, d):
    nh = K // 2
    if d <= 1:
        return (nh + jnp.where(i < nh, nh - i, 0)
                + jnp.where(i + nh >= L, L - i - 1 - nh, 0))
    return jnp.where(i - nh * d < 0, K - 1 - i // d,
                     jnp.where(i + nh * d >= L, (L - i - 1) // d, nh))


# ---------------------------------------------------------------------------
# fused qkv projection kernel (one long-N MXU pass per row tile)
# ---------------------------------------------------------------------------
def _qkv_proj_kernel(x_ref, w_ref, b_ref, q_ref, k_ref, v_ref, *, dim):
    res = (jnp.dot(x_ref[...], w_ref[...], preferred_element_type=jnp.float32)
           + b_ref[...])
    q_ref[...] = res[:, 0 * dim:1 * dim].astype(q_ref.dtype)
    k_ref[...] = res[:, 1 * dim:2 * dim].astype(k_ref.dtype)
    v_ref[...] = res[:, 2 * dim:3 * dim].astype(v_ref.dtype)


def qkv_projection(x2d, w, b, out_dtype):
    # TODO(synk): for very large `dim` add N/K tiling (as in pallas_linear);
    # here the (C, 3C) weight stays resident in VMEM across the row tiles.
    M, C = x2d.shape
    C3 = w.shape[1]
    tm = _pick_tile(M, 256, (128, 8))
    row = pl.BlockSpec((tm, C), lambda m: (m, 0))
    return pl.pallas_call(
        functools.partial(_qkv_proj_kernel, dim=C),
        grid=(M // tm,),
        in_specs=[row,
                  pl.BlockSpec((C, C3), lambda m: (0, 0)),
                  pl.BlockSpec((1, C3), lambda m: (0, 0))],
        out_specs=[row, row, row],
        out_shape=[jax.ShapeDtypeStruct((M, C), out_dtype)] * 3,
        compiler_params=pltpu.CompilerParams(
            dimension_semantics=("parallel",),
            vmem_limit_bytes=_VMEM_LIMIT),
    )(x2d, w, b.reshape(1, C3))


# ---------------------------------------------------------------------------
# generic tiled linear (matmul + bias) with f32 VMEM accumulator
# ---------------------------------------------------------------------------
def _linear_kernel(x_ref, w_ref, b_ref, o_ref, acc_ref):
    @pl.when(pl.program_id(2) == 0)
    def _():
        acc_ref[...] = jnp.zeros_like(acc_ref)

    acc_ref[...] += jnp.dot(x_ref[...], w_ref[...],
                            preferred_element_type=jnp.float32)

    @pl.when(pl.program_id(2) == pl.num_programs(2) - 1)
    def _():
        o_ref[...] = (acc_ref[...] + b_ref[...]).astype(o_ref.dtype)


def pallas_linear(x, w, b):
    M, K = x.shape
    N = w.shape[1]
    tm = _pick_tile(M, 256, (128, 8))
    tn = _pick_tile(N, 256, (128,))
    tk = _pick_tile(K, 256, (128,))
    return pl.pallas_call(
        _linear_kernel,
        grid=(M // tm, N // tn, K // tk),
        in_specs=[pl.BlockSpec((tm, tk), lambda i, j, k: (i, k)),
                  pl.BlockSpec((tk, tn), lambda i, j, k: (k, j)),
                  pl.BlockSpec((1, tn), lambda i, j, k: (0, j))],
        out_specs=pl.BlockSpec((tm, tn), lambda i, j, k: (i, j)),
        out_shape=jax.ShapeDtypeStruct((M, N), x.dtype),
        scratch_shapes=[pltpu.VMEM((tm, tn), jnp.float32)],
        compiler_params=pltpu.CompilerParams(
            dimension_semantics=("parallel", "parallel", "arbitrary"),
            vmem_limit_bytes=_VMEM_LIMIT),
    )(x, w, b.reshape(1, N))


# ---------------------------------------------------------------------------
# banded neighborhood-attention kernel (flash-style over the kv band)
# ---------------------------------------------------------------------------
def _na1d_attn_kernel(q_ref, k_ref, v_ref, rpb_ref, o_ref,
                      m_scr, l_scr, acc_scr,
                      *, num_heads, head_dim, kernel_size, dilation, l_win,
                      halo):
    qt = pl.program_id(1)          # query tile index
    j = pl.program_id(2)           # offset into the kv band
    n_tiles = pl.num_programs(1)
    nkv = pl.num_programs(2)
    TQ = q_ref.shape[0]
    TK = k_ref.shape[0]
    K = kernel_size
    d = dilation
    R = 2 * K - 1
    H = num_heads
    D = head_dim

    @pl.when(j == 0)
    def _init():
        m_scr[...] = jnp.full_like(m_scr, NEG_INF)
        l_scr[...] = jnp.zeros_like(l_scr)
        acc_scr[...] = jnp.zeros_like(acc_scr)

    kv_idx = qt - halo + j                      # intended kv tile (may be OOB)
    valid = jnp.logical_and(kv_idx >= 0, kv_idx < n_tiles)

    @pl.when(valid)
    def _accumulate():
        # absolute query / key positions for this (q-tile, kv-tile) pair
        q_pos = qt * TQ + lax.broadcasted_iota(jnp.int32, (TQ, 1), 0)
        k_pos = kv_idx * TK + lax.broadcasted_iota(jnp.int32, (1, TK), 1)

        ni = _window_start(q_pos, l_win, K, d)  # (TQ, 1) window start
        pi = _pb_start(q_pos, l_win, K, d)      # (TQ, 1) rpb start
        rel = k_pos - ni                        # (TQ, TK)
        in_win = jnp.logical_and(rel >= 0, rel <= (K - 1) * d)
        if d > 1:
            in_win = jnp.logical_and(in_win, rel % d == 0)
            slot = rel // d
        else:
            slot = rel
        # rpb entry per (query, key); -1 sentinel outside the window so the
        # select chain below leaves NEG_INF there (mask + bias in one pass).
        ridx = jnp.where(in_win, pi + slot, -1)
        neg_tile = jnp.full((TQ, TK), NEG_INF, dtype=jnp.float32)  # hoisted

        # one batched read of the running state per kv step
        m_prev_all = m_scr[...]                 # (TQ, H)
        l_prev_all = l_scr[...]                 # (TQ, H)
        acc_prev_all = acc_scr[...]             # (TQ, C)

        m_cols, l_cols, acc_cols = [], [], []
        for h in range(H):
            cs = slice(h * D, (h + 1) * D)
            # per-head loads straight from the refs (bounds live ranges)
            q_h = q_ref[:, cs]                  # (TQ, D), scale pre-folded
            k_h = k_ref[:, cs]                  # (TK, D)
            v_h = v_ref[:, cs]                  # (TK, D)

            # q @ k^T without forming an explicit transpose of k
            s = lax.dot_general(q_h, k_h, (((1,), (1,)), ((), ())),
                                preferred_element_type=jnp.float32)

            # neighborhood mask + relative positional bias: select chain over
            # the R scalar rpb entries (SMEM scalar reads ride the scalar unit)
            bias = neg_tile
            for r in range(R):
                bias = jnp.where(ridx == r, rpb_ref[h, r], bias)
            s = s + bias

            # online softmax.  If a row has no in-window key in this tile all
            # its scores are ~NEG_INF; the garbage contribution is annulled by
            # alpha -> 0 once a tile with a finite score is processed (every
            # query, including padded tail rows, sees >= 1 finite score).
            m_prev = m_prev_all[:, h:h + 1]
            l_prev = l_prev_all[:, h:h + 1]
            a_prev = acc_prev_all[:, cs]

            m_new = jnp.maximum(m_prev, jnp.max(s, axis=-1, keepdims=True))
            alpha = jnp.exp(m_prev - m_new)
            p = jnp.exp(s - m_new)
            m_cols.append(m_new)
            l_cols.append(alpha * l_prev + jnp.sum(p, axis=-1, keepdims=True))
            acc_cols.append(alpha * a_prev
                            + jnp.dot(p.astype(v_h.dtype), v_h,
                                      preferred_element_type=jnp.float32))

        # one batched (lane-dense) write of the running state per kv step
        m_scr[...] = jnp.concatenate(m_cols, axis=1)
        l_scr[...] = jnp.concatenate(l_cols, axis=1)
        acc_scr[...] = jnp.concatenate(acc_cols, axis=1)

    @pl.when(j == nkv - 1)
    def _finalize():
        # deferred normalization; approx reciprocal runs on the EUP.
        # TODO(synk): switch approx=False for training / tighter accuracy.
        inv = pl.reciprocal(l_scr[...], approx=True)            # (TQ, H)
        inv_full = jnp.concatenate(
            [jnp.broadcast_to(inv[:, h:h + 1], (TQ, D)) for h in range(H)],
            axis=1)                                             # (TQ, C)
        o_ref[...] = (acc_scr[...] * inv_full).astype(o_ref.dtype)


def na1d_attention(q, k, v, rpb, *, num_heads, kernel_size, dilation, l_win, tq):
    """q,k,v: (B, L, C) with heads packed along C; rpb: (H, 2K-1) -> (B, L, C)."""
    B, L, C = q.shape
    head_dim = C // num_heads
    n_tiles = L // tq
    band = (kernel_size - 1) * dilation         # max |key - query| in a window
    halo = min(-(-band // tq), n_tiles - 1)     # ceil(band/tq), usually 1
    nkv = 2 * halo + 1

    def q_map(b, t, j):
        return (b, t, 0)

    def kv_map(b, t, j):
        # clamp only for the DMA; out-of-range tiles are skipped in-kernel.
        return (b, jnp.clip(t - halo + j, 0, n_tiles - 1), 0)

    kernel = functools.partial(
        _na1d_attn_kernel, num_heads=num_heads, head_dim=head_dim,
        kernel_size=kernel_size, dilation=dilation, l_win=l_win, halo=halo)

    return pl.pallas_call(
        kernel,
        grid=(B, n_tiles, nkv),
        in_specs=[pl.BlockSpec((None, tq, C), q_map),
                  pl.BlockSpec((None, tq, C), kv_map),
                  pl.BlockSpec((None, tq, C), kv_map),
                  pl.BlockSpec(memory_space=pltpu.MemorySpace.SMEM)],
        out_specs=pl.BlockSpec((None, tq, C), q_map),
        out_shape=jax.ShapeDtypeStruct((B, L, C), q.dtype),
        scratch_shapes=[pltpu.VMEM((tq, num_heads), jnp.float32),   # running max
                        pltpu.VMEM((tq, num_heads), jnp.float32),   # running sum
                        pltpu.VMEM((tq, C), jnp.float32)],          # output acc
        compiler_params=pltpu.CompilerParams(
            dimension_semantics=("parallel", "parallel", "arbitrary"),
            vmem_limit_bytes=_VMEM_LIMIT),
    )(q, k, v, rpb)


# ---------------------------------------------------------------------------
# forward pass (mirrors NeighborhoodAttention1D.forward)
# ---------------------------------------------------------------------------
def neighborhood_attention_1d(x, params, *, num_heads, kernel_size, dilation=1,
                              max_q_tile=256, qkv_dtype=None):
    B, Lp, C = x.shape
    head_dim = C // num_heads
    scale = head_dim ** (-0.5)
    window_size = kernel_size * dilation
    band = (kernel_size - 1) * dilation
    max_q_tile = _round_up(max(max_q_tile, 8), 8)

    # Module semantics: pad the sequence to window_size (padded keys attend /
    # are attended; padded queries are cropped afterwards).
    l_win = max(Lp, window_size)
    l_cap = _round_up(l_win, 8)
    # q tile: large enough that the neighborhood band spans at most +/- 1 tile
    # (halo == 1, nkv == 3) so there are almost no dead kv-band grid steps.
    tq = max(min(max_q_tile, l_cap), min(_round_up(band, 8), l_cap))
    # Extra right padding purely for tiling; these keys are never inside any
    # neighborhood because the window formulas use l_win.
    l_tile = _round_up(l_win, tq)
    if l_tile != Lp:
        x = jnp.pad(x, ((0, 0), (0, l_tile - Lp), (0, 0)))

    # Fold the softmax scale into the q columns of the fused qkv weights.
    col_scale = jnp.concatenate(
        [jnp.full((C,), scale, params['w_qkv'].dtype),
         jnp.ones((2 * C,), params['w_qkv'].dtype)])
    w_qkv = params['w_qkv'] * col_scale[None, :]
    b_qkv = params['b_qkv'] * col_scale

    out_dtype = x.dtype if qkv_dtype is None else qkv_dtype
    M = B * l_tile
    q2, k2, v2 = qkv_projection(x.reshape(M, C), w_qkv, b_qkv, out_dtype)
    q = q2.reshape(B, l_tile, C)
    k = k2.reshape(B, l_tile, C)
    v = v2.reshape(B, l_tile, C)

    out = na1d_attention(q, k, v, params['rpb'], num_heads=num_heads,
                         kernel_size=kernel_size, dilation=dilation,
                         l_win=l_win, tq=tq)                    # (B, l_tile, C)

    # attn_drop / proj_drop are identity at p=0.0 (inference).
    out = pallas_linear(out.reshape(M, C), params['w_proj'], params['b_proj'])
    return out.reshape(B, l_tile, C)[:, :Lp, :]


# ---------------------------------------------------------------------------
# pure-JAX reference (direct K-wide gather; mirrors the PyTorch module)
# ---------------------------------------------------------------------------
def _reference(x, params, *, num_heads, kernel_size, dilation):
    B, Lp, C = x.shape
    D = C // num_heads
    scale = D ** (-0.5)
    K = kernel_size
    d = dilation
    L = max(Lp, K * d)
    if L != Lp:
        x = jnp.pad(x, ((0, 0), (0, L - Lp), (0, 0)))
    qkv = x.reshape(B * L, C) @ params['w_qkv'] + params['b_qkv']
    qkv = qkv.reshape(B, L, 3, num_heads, D).transpose(2, 0, 3, 1, 4)
    q, k, v = qkv[0] * scale, qkv[1], qkv[2]                    # (B, H, L, D)

    i = jnp.arange(L, dtype=jnp.int32)
    t = jnp.arange(K, dtype=jnp.int32)
    ni = _window_start(i, L, K, d)
    pi = _pb_start(i, L, K, d)
    key_idx = ni[:, None] + t[None, :] * d                      # (L, K)
    rpb_idx = pi[:, None] + t[None, :]                          # (L, K)

    k_g = k[:, :, key_idx, :]                                   # (B, H, L, K, D)
    v_g = v[:, :, key_idx, :]
    attn = jnp.einsum('bhld,bhlkd->bhlk', q, k_g) + params['rpb'][:, rpb_idx][None]
    attn = jax.nn.softmax(attn, axis=-1)
    out = jnp.einsum('bhlk,bhlkd->bhld', attn, v_g)
    out = out.transpose(0, 2, 1, 3).reshape(B, L, C)[:, :Lp]
    return out @ params['w_proj'] + params['b_proj']


# ---------------------------------------------------------------------------
if __name__ == "__main__":
    def trunc_normal(key_, shape, std):
        # TODO(synk): trunc_normal_(std, a=-2, b=2) approximated with clipping.
        return jnp.clip(jax.random.normal(key_, shape, jnp.float32) * std,
                        -2.0, 2.0)

    dim, heads, K = 32, 4, 5
    B = 2
    k1, k2, k3, k4, k5, k6 = jax.random.split(jax.random.PRNGKey(0), 6)
    params = {
        'w_qkv': jax.random.normal(k1, (dim, 3 * dim), jnp.float32) * 0.1,
        'b_qkv': jax.random.normal(k2, (3 * dim,), jnp.float32) * 0.02,
        'rpb': trunc_normal(k3, (heads, 2 * K - 1), 0.02),
        'w_proj': jax.random.normal(k4, (dim, dim), jnp.float32) * 0.1,
        'b_proj': jax.random.normal(k5, (dim,), jnp.float32) * 0.02,
    }

    fwd = jax.jit(neighborhood_attention_1d,
                  static_argnames=('num_heads', 'kernel_size', 'dilation',
                                   'max_q_tile', 'qkv_dtype'))

    # config 1: B=2, L=16, dim=32, heads=4, kernel=5, dilation=1 (single tile)
    x1 = jax.random.normal(k6, (B, 16, dim), jnp.float32)
    y1 = jax.block_until_ready(
        fwd(x1, params, num_heads=heads, kernel_size=K, dilation=1))
    assert y1.shape == (B, 16, dim), y1.shape
    r1 = _reference(x1, params, num_heads=heads, kernel_size=K, dilation=1)
    assert bool(jnp.allclose(y1, r1, atol=2e-3, rtol=2e-2)), \
        float(jnp.max(jnp.abs(y1 - r1)))

    # config 2: longer sequence + dilation=2 with a tiny q-tile so the
    # multi-tile banded path (halo skip + clamped kv index map) is exercised.
    x2 = jax.random.normal(jax.random.PRNGKey(1), (B, 40, dim), jnp.float32)
    y2 = jax.block_until_ready(
        fwd(x2, params, num_heads=heads, kernel_size=K, dilation=2,
            max_q_tile=8))
    assert y2.shape == (B, 40, dim), y2.shape
    r2 = _reference(x2, params, num_heads=heads, kernel_size=K, dilation=2)
    assert bool(jnp.allclose(y2, r2, atol=2e-3, rtol=2e-2)), \
        float(jnp.max(jnp.abs(y2 - r2)))

    print("KERNEL_OK")
</pallas_src>

<mosaic_0001>
module attributes {stable_mosaic.version = 11 : i64} {
  func.func @_qkv_proj_kernel(%arg0: i32, %arg1: memref<32x32xf32, #tpu.memory_space<vmem>>, %arg2: memref<32x96xf32, #tpu.memory_space<vmem>>, %arg3: memref<1x96xf32, #tpu.memory_space<vmem>>, %arg4: memref<32x32xf32, #tpu.memory_space<vmem>>, %arg5: memref<32x32xf32, #tpu.memory_space<vmem>>, %arg6: memref<32x32xf32, #tpu.memory_space<vmem>>) attributes {dimension_semantics = [#tpu.dimension_semantics<parallel>], iteration_bounds = array<i64: 1>, scalar_prefetch = 0 : i64, scratch_operands = 0 : i64, tpu.core_type = #tpu.core_type<tc>, window_params = [{transform_indices = @transform_0, window_bounds = array<i64: 32, 32>}, {pipeline_mode = #tpu.pipeline_mode<synchronous>, transform_indices = @transform_1, window_bounds = array<i64: 32, 96>}, {pipeline_mode = #tpu.pipeline_mode<synchronous>, transform_indices = @transform_2, window_bounds = array<i64: 1, 96>}, {transform_indices = @transform_3, window_bounds = array<i64: 32, 32>}, {transform_indices = @transform_4, window_bounds = array<i64: 32, 32>}, {transform_indices = @transform_5, window_bounds = array<i64: 32, 32>}]} {
    %c0 = arith.constant 0 : index
    %c0_0 = arith.constant 0 : index
    %0 = vector.load %arg1[%c0, %c0_0] : memref<32x32xf32, #tpu.memory_space<vmem>>, vector<32x32xf32>
    %c0_1 = arith.constant 0 : index
    %c0_2 = arith.constant 0 : index
    %1 = vector.load %arg2[%c0_1, %c0_2] : memref<32x96xf32, #tpu.memory_space<vmem>>, vector<32x96xf32>
    %cst = arith.constant dense<0.000000e+00> : vector<32x96xf32>
    %2 = tpu.matmul %0, %1, %cst {dimension_numbers = #tpu.dot_dimension_numbers<[1], [0], [0], [1], [0, 0, 1, 1], [], []>} : vector<32x32xf32>, vector<32x96xf32>, vector<32x96xf32> -> vector<32x96xf32>
    %c0_3 = arith.constant 0 : index
    %c0_4 = arith.constant 0 : index
    %3 = vector.load %arg3[%c0_3, %c0_4] : memref<1x96xf32, #tpu.memory_space<vmem>>, vector<1x96xf32>
    %4 = vector.broadcast %3 : vector<1x96xf32> to vector<32x96xf32>
    %5 = arith.addf %2, %4 : vector<32x96xf32>
    %6 = vector.extract_strided_slice %5 {offsets = [0, 0], sizes = [32, 32], strides = [1, 1]} : vector<32x96xf32> to vector<32x32xf32>
    %c0_5 = arith.constant 0 : index
    %c0_6 = arith.constant 0 : index
    %7 = vector.load %arg4[%c0_5, %c0_6] : memref<32x32xf32, #tpu.memory_space<vmem>>, vector<32x32xf32>
    tpu.vector_store %arg4[%c0_5, %c0_6], %6 {strides = array<i32>} : memref<32x32xf32, #tpu.memory_space<vmem>>, vector<32x32xf32>,
    %8 = vector.extract_strided_slice %5 {offsets = [0, 32], sizes = [32, 32], strides = [1, 1]} : vector<32x96xf32> to vector<32x32xf32>
    %c0_7 = arith.constant 0 : index
    %c0_8 = arith.constant 0 : index
    %9 = vector.load %arg5[%c0_7, %c0_8] : memref<32x32xf32, #tpu.memory_space<vmem>>, vector<32x32xf32>
    tpu.vector_store %arg5[%c0_7, %c0_8], %8 {strides = array<i32>} : memref<32x32xf32, #tpu.memory_space<vmem>>, vector<32x32xf32>,
    %10 = vector.extract_strided_slice %5 {offsets = [0, 64], sizes = [32, 32], strides = [1, 1]} : vector<32x96xf32> to vector<32x32xf32>
    %c0_9 = arith.constant 0 : index
    %c0_10 = arith.constant 0 : index
    %11 = vector.load %arg6[%c0_9, %c0_10] : memref<32x32xf32, #tpu.memory_space<vmem>>, vector<32x32xf32>
    tpu.vector_store %arg6[%c0_9, %c0_10], %10 {strides = array<i32>} : memref<32x32xf32, #tpu.memory_space<vmem>>, vector<32x32xf32>,
    return
  }
  func.func @transform_0(%arg0: i32) -> (i32, i32) {
    %c0_i32 = arith.constant 0 : i32
    %c0_i32_0 = arith.constant 0 : i32
    return %arg0, %c0_i32 : i32, i32
  }
  func.func @transform_1(%arg0: i32) -> (i32, i32) {
    %c0_i32 = arith.constant 0 : i32
    %c0_i32_0 = arith.constant 0 : i32
    %c0_i32_1 = arith.constant 0 : i32
    return %c0_i32, %c0_i32_0 : i32, i32
  }
  func.func @transform_2(%arg0: i32) -> (i32, i32) {
    %c0_i32 = arith.constant 0 : i32
    %c0_i32_0 = arith.constant 0 : i32
    %c0_i32_1 = arith.constant 0 : i32
    return %c0_i32, %c0_i32_0 : i32, i32
  }
  func.func @transform_3(%arg0: i32) -> (i32, i32) {
    %c0_i32 = arith.constant 0 : i32
    %c0_i32_0 = arith.constant 0 : i32
    return %arg0, %c0_i32 : i32, i32
  }
  func.func @transform_4(%arg0: i32) -> (i32, i32) {
    %c0_i32 = arith.constant 0 : i32
    %c0_i32_0 = arith.constant 0 : i32
    return %arg0, %c0_i32 : i32, i32
  }
  func.func @transform_5(%arg0: i32) -> (i32, i32) {
    %c0_i32 = arith.constant 0 : i32
    %c0_i32_0 = arith.constant 0 : i32
    return %arg0, %c0_i32 : i32, i32
  }
}

module attributes {stable_mosaic.version = 11 : i64} {
  func.func @_linear_kernel(%arg0: i32, %arg1: i32, %arg2: i32, %arg3: memref<32x32xf32, #tpu.memory_space<vmem>>, %arg4: memref<32x32xf32, #tpu.memory_space<vmem>>, %arg5: memref<1x32xf32, #tpu.memory_space<vmem>>, %arg6: memref<32x32xf32, #tpu.memory_space<vmem>>, %arg7: memref<32x32xf32, #tpu.memory_space<vmem>>) attributes {dimension_semantics = [#tpu.dimension_semantics<parallel>, #tpu.dimension_semantics<parallel>, #tpu.dimension_semantics<arbitrary>], iteration_bounds = array<i64: 1, 1, 1>, scalar_prefetch = 0 : i64, scratch_operands = 1 : i64, tpu.core_type = #tpu.core_type<tc>, window_params = [{transform_indices = @transform_0, window_bounds = array<i64: 32, 32>}, {transform_indices = @transform_1, window_bounds = array<i64: 32, 32>}, {transform_indices = @transform_2, window_bounds = array<i64: 1, 32>}, {transform_indices = @transform_3, window_bounds = array<i64: 32, 32>}]} {
    %c0_i32 = arith.constant 0 : i32
    %0 = arith.cmpi eq, %arg2, %c0_i32 : i32
    %1 = arith.extui %0 : i1 to i32
    %c0_i32_0 = arith.constant 0 : i32
    %2 = arith.cmpi ne, %1, %c0_i32_0 : i32
    scf.if %2 {
      %cst_10 = arith.constant 0.000000e+00 : f32
      %12 = vector.broadcast %cst_10 : f32 to vector<32x32xf32>
      %c0_11 = arith.constant 0 : index
      %c0_12 = arith.constant 0 : index
      %13 = vector.load %arg7[%c0_11, %c0_12] : memref<32x32xf32, #tpu.memory_space<vmem>>, vector<32x32xf32>
      tpu.vector_store %arg7[%c0_11, %c0_12], %12 {strides = array<i32>} : memref<32x32xf32, #tpu.memory_space<vmem>>, vector<32x32xf32>,
    } else {
    }
    %c0 = arith.constant 0 : index
    %c0_1 = arith.constant 0 : index
    %3 = vector.load %arg7[%c0, %c0_1] : memref<32x32xf32, #tpu.memory_space<vmem>>, vector<32x32xf32>
    %c0_2 = arith.constant 0 : index
    %c0_3 = arith.constant 0 : index
    %4 = vector.load %arg3[%c0_2, %c0_3] : memref<32x32xf32, #tpu.memory_space<vmem>>, vector<32x32xf32>
    %c0_4 = arith.constant 0 : index
    %c0_5 = arith.constant 0 : index
    %5 = vector.load %arg4[%c0_4, %c0_5] : memref<32x32xf32, #tpu.memory_space<vmem>>, vector<32x32xf32>
    %cst = arith.constant dense<0.000000e+00> : vector<32x32xf32>
    %6 = tpu.matmul %4, %5, %cst {dimension_numbers = #tpu.dot_dimension_numbers<[1], [0], [0], [1], [0, 0, 1, 1], [], []>} : vector<32x32xf32>, vector<32x32xf32>, vector<32x32xf32> -> vector<32x32xf32>
    %7 = arith.addf %3, %6 : vector<32x32xf32>
    %c0_6 = arith.constant 0 : index
    %c0_7 = arith.constant 0 : index
    %8 = vector.load %arg7[%c0_6, %c0_7] : memref<32x32xf32, #tpu.memory_space<vmem>>, vector<32x32xf32>
    tpu.vector_store %arg7[%c0_6, %c0_7], %7 {strides = array<i32>} : memref<32x32xf32, #tpu.memory_space<vmem>>, vector<32x32xf32>,
    %c0_i32_8 = arith.constant 0 : i32
    %9 = arith.cmpi eq, %arg2, %c0_i32_8 : i32
    %10 = arith.extui %9 : i1 to i32
    %c0_i32_9 = arith.constant 0 : i32
    %11 = arith.cmpi ne, %10, %c0_i32_9 : i32
    scf.if %11 {
      %c0_10 = arith.constant 0 : index
      %c0_11 = arith.constant 0 : index
      %12 = vector.load %arg7[%c0_10, %c0_11] : memref<32x32xf32, #tpu.memory_space<vmem>>, vector<32x32xf32>
      %c0_12 = arith.constant 0 : index
      %c0_13 = arith.constant 0 : index
      %13 = vector.load %arg5[%c0_12, %c0_13] : memref<1x32xf32, #tpu.memory_space<vmem>>, vector<1x32xf32>
      %14 = vector.broadcast %13 : vector<1x32xf32> to vector<32x32xf32>
      %15 = arith.addf %12, %14 : vector<32x32xf32>
      %c0_14 = arith.constant 0 : index
      %c0_15 = arith.constant 0 : index
      %16 = vector.load %arg6[%c0_14, %c0_15] : memref<32x32xf32, #tpu.memory_space<vmem>>, vector<32x32xf32>
      tpu.vector_store %arg6[%c0_14, %c0_15], %15 {strides = array<i32>} : memref<32x32xf32, #tpu.memory_space<vmem>>, vector<32x32xf32>,
    } else {
    }
    return
  }
  func.func @transform_0(%arg0: i32, %arg1: i32, %arg2: i32) -> (i32, i32) {
    %c0_i32 = arith.constant 0 : i32
    return %arg0, %arg2 : i32, i32
  }
  func.func @transform_1(%arg0: i32, %arg1: i32, %arg2: i32) -> (i32, i32) {
    %c0_i32 = arith.constant 0 : i32
    return %arg2, %arg1 : i32, i32
  }
  func.func @transform_2(%arg0: i32, %arg1: i32, %arg2: i32) -> (i32, i32) {
    %c0_i32 = arith.constant 0 : i32
    %c0_i32_0 = arith.constant 0 : i32
    return %c0_i32, %arg1 : i32, i32
  }
  func.func @transform_3(%arg0: i32, %arg1: i32, %arg2: i32) -> (i32, i32) {
    %c0_i32 = arith.constant 0 : i32
    return %arg0, %arg1 : i32, i32
  }
}

module attributes {stable_mosaic.version = 11 : i64} {
  func.func @_na1d_attn_kernel(%arg0: i32, %arg1: i32, %arg2: i32, %arg3: memref<1x16x32xf32, #tpu.memory_space<vmem>>, %arg4: memref<1x16x32xf32, #tpu.memory_space<vmem>>, %arg5: memref<1x16x32xf32, #tpu.memory_space<vmem>>, %arg6: memref<4x9xf32, #tpu.memory_space<smem>>, %arg7: memref<1x16x32xf32, #tpu.memory_space<vmem>>, %arg8: memref<16x4xf32, #tpu.memory_space<vmem>>, %arg9: memref<16x4xf32, #tpu.memory_space<vmem>>, %arg10: memref<16x32xf32, #tpu.memory_space<vmem>>) attributes {dimension_semantics = [#tpu.dimension_semantics<parallel>, #tpu.dimension_semantics<parallel>, #tpu.dimension_semantics<arbitrary>], iteration_bounds = array<i64: 2, 1, 1>, scalar_prefetch = 0 : i64, scratch_operands = 3 : i64, tpu.core_type = #tpu.core_type<tc>, window_params = [{transform_indices = @transform_0, window_bounds = array<i64: 1, 16, 32>}, {transform_indices = @transform_1, window_bounds = array<i64: 1, 16, 32>}, {transform_indices = @transform_2, window_bounds = array<i64: 1, 16, 32>}, {transform_indices = @transform_3, window_bounds = array<i64: 4, 9>}, {transform_indices = @transform_4, window_bounds = array<i64: 1, 16, 32>}]} {
    %c0_i32 = arith.constant 0 : i32
    %0 = arith.cmpi eq, %arg2, %c0_i32 : i32
    %1 = arith.extui %0 : i1 to i32
    %c0_i32_0 = arith.constant 0 : i32
    %2 = arith.cmpi ne, %1, %c0_i32_0 : i32
    scf.if %2 {
      %cst = arith.constant -1.000000e+30 : f32
      %13 = vector.broadcast %cst : f32 to vector<16x4xf32>
      %c0 = arith.constant 0 : index
      %c0_6 = arith.constant 0 : index
      %14 = vector.load %arg8[%c0, %c0_6] : memref<16x4xf32, #tpu.memory_space<vmem>>, vector<16x4xf32>
      tpu.vector_store %arg8[%c0, %c0_6], %13 {strides = array<i32>} : memref<16x4xf32, #tpu.memory_space<vmem>>, vector<16x4xf32>,
      %cst_7 = arith.constant 0.000000e+00 : f32
      %15 = vector.broadcast %cst_7 : f32 to vector<16x4xf32>
      %c0_8 = arith.constant 0 : index
      %c0_9 = arith.constant 0 : index
      %16 = vector.load %arg9[%c0_8, %c0_9] : memref<16x4xf32, #tpu.memory_space<vmem>>, vector<16x4xf32>
      tpu.vector_store %arg9[%c0_8, %c0_9], %15 {strides = array<i32>} : memref<16x4xf32, #tpu.memory_space<vmem>>, vector<16x4xf32>,
      %cst_10 = arith.constant 0.000000e+00 : f32
      %17 = vector.broadcast %cst_10 : f32 to vector<16x32xf32>
      %c0_11 = arith.constant 0 : index
      %c0_12 = arith.constant 0 : index
      %18 = vector.load %arg10[%c0_11, %c0_12] : memref<16x32xf32, #tpu.memory_space<vmem>>, vector<16x32xf32>
      tpu.vector_store %arg10[%c0_11, %c0_12], %17 {strides = array<i32>} : memref<16x32xf32, #tpu.memory_space<vmem>>, vector<16x32xf32>,
    } else {
    }
    %c0_i32_1 = arith.constant 0 : i32
    %3 = arith.subi %arg1, %c0_i32_1 : i32
    %4 = arith.addi %3, %arg2 : i32
    %c0_i32_2 = arith.constant 0 : i32
    %5 = arith.cmpi sge, %4, %c0_i32_2 : i32
    %c1_i32 = arith.constant 1 : i32
    %6 = arith.cmpi slt, %4, %c1_i32 : i32
    %7 = arith.andi %5, %6 : i1
    %8 = arith.extui %7 : i1 to i32
    %c0_i32_3 = arith.constant 0 : i32
    %9 = arith.cmpi ne, %8, %c0_i32_3 : i32
    scf.if %9 {
      %c16_i32 = arith.constant 16 : i32
      %13 = arith.muli %arg1, %c16_i32 : i32
      %14 = tpu.iota {dimensions = array<i32: 0>} : vector<16x1xi32>
      %15 = vector.broadcast %13 : i32 to vector<16x1xi32>
      %16 = arith.addi %15, %14 : vector<16x1xi32>
      %c16_i32_6 = arith.constant 16 : i32
      %17 = arith.muli %4, %c16_i32_6 : i32
      %18 = tpu.iota {dimensions = array<i32: 1>} : vector<1x16xi32>
      %19 = vector.broadcast %17 : i32 to vector<1x16xi32>
      %20 = arith.addi %19, %18 : vector<1x16xi32>
      %c2_i32 = arith.constant 2 : i32
      %21 = vector.broadcast %c2_i32 : i32 to vector<16x1xi32>
      %22 = arith.subi %16, %21 : vector<16x1xi32>
      %c0_i32_7 = arith.constant 0 : i32
      %23 = vector.broadcast %c0_i32_7 : i32 to vector<16x1xi32>
      %24 = arith.maxsi %22, %23 : vector<16x1xi32>
      %c2_i32_8 = arith.constant 2 : i32
      %25 = vector.broadcast %c2_i32_8 : i32 to vector<16x1xi32>
      %26 = arith.addi %16, %25 : vector<16x1xi32>
      %c16_i32_9 = arith.constant 16 : i32
      %27 = vector.broadcast %c16_i32_9 : i32 to vector<16x1xi32>
      %28 = arith.cmpi sge, %26, %27 : vector<16x1xi32>
      %c16_i32_10 = arith.constant 16 : i32
      %29 = vector.broadcast %c16_i32_10 : i32 to vector<16x1xi32>
      %30 = arith.subi %29, %16 : vector<16x1xi32>
      %c2_i32_11 = arith.constant 2 : i32
      %31 = vector.broadcast %c2_i32_11 : i32 to vector<16x1xi32>
      %32 = arith.subi %30, %31 : vector<16x1xi32>
      %c1_i32_12 = arith.constant 1 : i32
      %33 = vector.broadcast %c1_i32_12 : i32 to vector<16x1xi32>
      %34 = arith.subi %32, %33 : vector<16x1xi32>
      %c0_i32_13 = arith.constant 0 : i32
      %35 = vector.broadcast %c0_i32_13 : i32 to vector<16x1xi32>
      %36 = arith.select %28, %34, %35 : vector<16x1xi1>, vector<16x1xi32>
      %37 = arith.addi %24, %36 : vector<16x1xi32>
      %c2_i32_14 = arith.constant 2 : i32
      %38 = vector.broadcast %c2_i32_14 : i32 to vector<16x1xi32>
      %39 = arith.cmpi slt, %16, %38 : vector<16x1xi32>
      %c2_i32_15 = arith.constant 2 : i32
      %40 = vector.broadcast %c2_i32_15 : i32 to vector<16x1xi32>
      %41 = arith.subi %40, %16 : vector<16x1xi32>
      %c0_i32_16 = arith.constant 0 : i32
      %42 = vector.broadcast %c0_i32_16 : i32 to vector<16x1xi32>
      %43 = arith.select %39, %41, %42 : vector<16x1xi1>, vector<16x1xi32>
      %c2_i32_17 = arith.constant 2 : i32
      %44 = vector.broadcast %c2_i32_17 : i32 to vector<16x1xi32>
      %45 = arith.addi %44, %43 : vector<16x1xi32>
      %c2_i32_18 = arith.constant 2 : i32
      %46 = vector.broadcast %c2_i32_18 : i32 to vector<16x1xi32>
      %47 = arith.addi %16, %46 : vector<16x1xi32>
      %c16_i32_19 = arith.constant 16 : i32
      %48 = vector.broadcast %c16_i32_19 : i32 to vector<16x1xi32>
      %49 = arith.cmpi sge, %47, %48 : vector<16x1xi32>
      %c16_i32_20 = arith.constant 16 : i32
      %50 = vector.broadcast %c16_i32_20 : i32 to vector<16x1xi32>
      %51 = arith.subi %50, %16 : vector<16x1xi32>
      %c1_i32_21 = arith.constant 1 : i32
      %52 = vector.broadcast %c1_i32_21 : i32 to vector<16x1xi32>
      %53 = arith.subi %51, %52 : vector<16x1xi32>
      %c2_i32_22 = arith.constant 2 : i32
      %54 = vector.broadcast %c2_i32_22 : i32 to vector<16x1xi32>
      %55 = arith.subi %53, %54 : vector<16x1xi32>
      %c0_i32_23 = arith.constant 0 : i32
      %56 = vector.broadcast %c0_i32_23 : i32 to vector<16x1xi32>
      %57 = arith.select %49, %55, %56 : vector<16x1xi1>, vector<16x1xi32>
      %58 = arith.addi %45, %57 : vector<16x1xi32>
      %59 = vector.broadcast %20 : vector<1x16xi32> to vector<16x16xi32>
      %60 = vector.broadcast %37 : vector<16x1xi32> to vector<16x16xi32>
      %61 = arith.subi %59, %60 : vector<16x16xi32>
      %c0_i32_24 = arith.constant 0 : i32
      %62 = vector.broadcast %c0_i32_24 : i32 to vector<16x16xi32>
      %63 = arith.cmpi sge, %61, %62 : vector<16x16xi32>
      %c4_i32 = arith.constant 4 : i32
      %64 = vector.broadcast %c4_i32 : i32 to vector<16x16xi32>
      %65 = arith.cmpi sle, %61, %64 : vector<16x16xi32>
      %66 = arith.andi %63, %65 : vector<16x16xi1>
      %67 = vector.broadcast %58 : vector<16x1xi32> to vector<16x16xi32>
      %68 = arith.addi %67, %61 : vector<16x16xi32>
      %c-1_i32 = arith.constant -1 : i32
      %69 = vector.broadcast %c-1_i32 : i32 to vector<16x16xi32>
      %70 = arith.select %66, %68, %69 : vector<16x16xi1>, vector<16x16xi32>
      %cst = arith.constant -1.000000e+30 : f32
      %71 = vector.broadcast %cst : f32 to vector<16x16xf32>
      %c0 = arith.constant 0 : index
      %c0_25 = arith.constant 0 : index
      %72 = vector.load %arg8[%c0, %c0_25] : memref<16x4xf32, #tpu.memory_space<vmem>>, vector<16x4xf32>
      %c0_26 = arith.constant 0 : index
      %c0_27 = arith.constant 0 : index
      %73 = vector.load %arg9[%c0_26, %c0_27] : memref<16x4xf32, #tpu.memory_space<vmem>>, vector<16x4xf32>
      %c0_28 = arith.constant 0 : index
      %c0_29 = arith.constant 0 : index
      %74 = vector.load %arg10[%c0_28, %c0_29] : memref<16x32xf32, #tpu.memory_space<vmem>>, vector<16x32xf32>
      %c0_30 = arith.constant 0 : index
      %c0_31 = arith.constant 0 : index
      %c0_32 = arith.constant 0 : index
      %75 = vector.load %arg3[%c0_30, %c0_31, %c0_32] : memref<1x16x32xf32, #tpu.memory_space<vmem>>, vector<1x16x8xf32>
      %76 = vector.shape_cast %75 : vector<1x16x8xf32> to vector<16x8xf32>
      %c0_33 = arith.constant 0 : index
      %c0_34 = arith.constant 0 : index
      %c0_35 = arith.constant 0 : index
      %77 = vector.load %arg4[%c0_33, %c0_34, %c0_35] : memref<1x16x32xf32, #tpu.memory_space<vmem>>, vector<1x16x8xf32>
      %78 = vector.shape_cast %77 : vector<1x16x8xf32> to vector<16x8xf32>
      %c0_36 = arith.constant 0 : index
      %c0_37 = arith.constant 0 : index
      %c0_38 = arith.constant 0 : index
      %79 = vector.load %arg5[%c0_36, %c0_37, %c0_38] : memref<1x16x32xf32, #tpu.memory_space<vmem>>, vector<1x16x8xf32>
      %80 = vector.shape_cast %79 : vector<1x16x8xf32> to vector<16x8xf32>
      %cst_39 = arith.constant dense<0.000000e+00> : vector<16x16xf32>
      %81 = tpu.matmul %76, %78, %cst_39 {dimension_numbers = #tpu.dot_dimension_numbers<[1], [1], [0], [0], [0, 0, 1, 0], [], []>} : vector<16x8xf32>, vector<16x8xf32>, vector<16x16xf32> -> vector<16x16xf32>
      %c0_i32_40 = arith.constant 0 : i32
      %82 = vector.broadcast %c0_i32_40 : i32 to vector<16x16xi32>
      %83 = arith.cmpi eq, %70, %82 : vector<16x16xi32>
      %c0_41 = arith.constant 0 : index
      %c0_42 = arith.constant 0 : index
      %84 = memref.load %arg6[%c0_41, %c0_42] : memref<4x9xf32, #tpu.memory_space<smem>>
      %85 = vector.broadcast %84 : f32 to vector<16x16xf32>
      %86 = arith.select %83, %85, %71 : vector<16x16xi1>, vector<16x16xf32>
      %c1_i32_43 = arith.constant 1 : i32
      %87 = vector.broadcast %c1_i32_43 : i32 to vector<16x16xi32>
      %88 = arith.cmpi eq, %70, %87 : vector<16x16xi32>
      %c0_44 = arith.constant 0 : index
      %c1 = arith.constant 1 : index
      %89 = memref.load %arg6[%c0_44, %c1] : memref<4x9xf32, #tpu.memory_space<smem>>
      %90 = vector.broadcast %89 : f32 to vector<16x16xf32>
      %91 = arith.select %88, %90, %86 : vector<16x16xi1>, vector<16x16xf32>
      %c2_i32_45 = arith.constant 2 : i32
      %92 = vector.broadcast %c2_i32_45 : i32 to vector<16x16xi32>
      %93 = arith.cmpi eq, %70, %92 : vector<16x16xi32>
      %c0_46 = arith.constant 0 : index
      %c2 = arith.constant 2 : index
      %94 = memref.load %arg6[%c0_46, %c2] : memref<4x9xf32, #tpu.memory_space<smem>>
      %95 = vector.broadcast %94 : f32 to vector<16x16xf32>
      %96 = arith.select %93, %95, %91 : vector<16x16xi1>, vector<16x16xf32>
      %c3_i32 = arith.constant 3 : i32
      %97 = vector.broadcast %c3_i32 : i32 to vector<16x16xi32>
      %98 = arith.cmpi eq, %70, %97 : vector<16x16xi32>
      %c0_47 = arith.constant 0 : index
      %c3 = arith.constant 3 : index
      %99 = memref.load %arg6[%c0_47, %c3] : memref<4x9xf32, #tpu.memory_space<smem>>
      %100 = vector.broadcast %99 : f32 to vector<16x16xf32>
      %101 = arith.select %98, %100, %96 : vector<16x16xi1>, vector<16x16xf32>
      %c4_i32_48 = arith.constant 4 : i32
      %102 = vector.broadcast %c4_i32_48 : i32 to vector<16x16xi32>
      %103 = arith.cmpi eq, %70, %102 : vector<16x16xi32>
      %c0_49 = arith.constant 0 : index
      %c4 = arith.constant 4 : index
      %104 = memref.load %arg6[%c0_49, %c4] : memref<4x9xf32, #tpu.memory_space<smem>>
      %105 = vector.broadcast %104 : f32 to vector<16x16xf32>
      %106 = arith.select %103, %105, %101 : vector<16x16xi1>, vector<16x16xf32>
      %c5_i32 = arith.constant 5 : i32
      %107 = vector.broadcast %c5_i32 : i32 to vector<16x16xi32>
      %108 = arith.cmpi eq, %70, %107 : vector<16x16xi32>
      %c0_50 = arith.constant 0 : index
      %c5 = arith.constant 5 : index
      %109 = memref.load %arg6[%c0_50, %c5] : memref<4x9xf32, #tpu.memory_space<smem>>
      %110 = vector.broadcast %109 : f32 to vector<16x16xf32>
      %111 = arith.select %108, %110, %106 : vector<16x16xi1>, vector<16x16xf32>
      %c6_i32 = arith.constant 6 : i32
      %112 = vector.broadcast %c6_i32 : i32 to vector<16x16xi32>
      %113 = arith.cmpi eq, %70, %112 : vector<16x16xi32>
      %c0_51 = arith.constant 0 : index
      %c6 = arith.constant 6 : index
      %114 = memref.load %arg6[%c0_51, %c6] : memref<4x9xf32, #tpu.memory_space<smem>>
      %115 = vector.broadcast %114 : f32 to vector<16x16xf32>
      %116 = arith.select %113, %115, %111 : vector<16x16xi1>, vector<16x16xf32>
      %c7_i32 = arith.constant 7 : i32
      %117 = vector.broadcast %c7_i32 : i32 to vector<16x16xi32>
      %118 = arith.cmpi eq, %70, %117 : vector<16x16xi32>
      %c0_52 = arith.constant 0 : index
      %c7 = arith.constant 7 : index
      %119 = memref.load %arg6[%c0_52, %c7] : memref<4x9xf32, #tpu.memory_space<smem>>
      %120 = vector.broadcast %119 : f32 to vector<16x16xf32>
      %121 = arith.select %118, %120, %116 : vector<16x16xi1>, vector<16x16xf32>
      %c8_i32 = arith.constant 8 : i32
      %122 = vector.broadcast %c8_i32 : i32 to vector<16x16xi32>
      %123 = arith.cmpi eq, %70, %122 : vector<16x16xi32>
      %c0_53 = arith.constant 0 : index
      %c8 = arith.constant 8 : index
      %124 = memref.load %arg6[%c0_53, %c8] : memref<4x9xf32, #tpu.memory_space<smem>>
      %125 = vector.broadcast %124 : f32 to vector<16x16xf32>
      %126 = arith.select %123, %125, %121 : vector<16x16xi1>, vector<16x16xf32>
      %127 = arith.addf %81, %126 : vector<16x16xf32>
      %128 = vector.extract_strided_slice %72 {offsets = [0, 0], sizes = [16, 1], strides = [1, 1]} : vector<16x4xf32> to vector<16x1xf32>
      %129 = vector.extract_strided_slice %73 {offsets = [0, 0], sizes = [16, 1], strides = [1, 1]} : vector<16x4xf32> to vector<16x1xf32>
      %130 = vector.extract_strided_slice %74 {offsets = [0, 0], sizes = [16, 8], strides = [1, 1]} : vector<16x32xf32> to vector<16x8xf32>
      %cst_54 = arith.constant dense<0xFF800000> : vector<16xf32>
      %131 = vector.multi_reduction <maximumf>, %127, %cst_54 [1] : vector<16x16xf32> to vector<16xf32>
      %132 = vector.shape_cast %131 : vector<16xf32> to vector<16x1xf32>
      %133 = arith.maximumf %128, %132 : vector<16x1xf32>
      %134 = arith.subf %128, %133 : vector<16x1xf32>
      %135 = math.exp %134 : vector<16x1xf32>
      %136 = vector.broadcast %133 : vector<16x1xf32> to vector<16x16xf32>
      %137 = arith.subf %127, %136 : vector<16x16xf32>
      %138 = math.exp %137 : vector<16x16xf32>
      %139 = arith.mulf %135, %129 : vector<16x1xf32>
      %cst_55 = arith.constant dense<0.000000e+00> : vector<16xf32>
      %140 = vector.multi_reduction <add>, %138, %cst_55 [1] : vector<16x16xf32> to vector<16xf32>
      %141 = vector.shape_cast %140 : vector<16xf32> to vector<16x1xf32>
      %142 = arith.addf %139, %141 : vector<16x1xf32>
      %143 = vector.broadcast %135 : vector<16x1xf32> to vector<16x8xf32>
      %144 = arith.mulf %143, %130 : vector<16x8xf32>
      %cst_56 = arith.constant dense<0.000000e+00> : vector<16x8xf32>
      %145 = tpu.matmul %138, %80, %cst_56 {dimension_numbers = #tpu.dot_dimension_numbers<[1], [0], [0], [1], [0, 0, 1, 1], [], []>} : vector<16x16xf32>, vector<16x8xf32>, vector<16x8xf32> -> vector<16x8xf32>
      %146 = arith.addf %144, %145 : vector<16x8xf32>
      %c0_57 = arith.constant 0 : index
      %c0_58 = arith.constant 0 : index
      %c8_59 = arith.constant 8 : index
      %147 = vector.load %arg3[%c0_57, %c0_58, %c8_59] : memref<1x16x32xf32, #tpu.memory_space<vmem>>, vector<1x16x8xf32>
      %148 = vector.shape_cast %147 : vector<1x16x8xf32> to vector<16x8xf32>
      %c0_60 = arith.constant 0 : index
      %c0_61 = arith.constant 0 : index
      %c8_62 = arith.constant 8 : index
      %149 = vector.load %arg4[%c0_60, %c0_61, %c8_62] : memref<1x16x32xf32, #tpu.memory_space<vmem>>, vector<1x16x8xf32>
      %150 = vector.shape_cast %149 : vector<1x16x8xf32> to vector<16x8xf32>
      %c0_63 = arith.constant 0 : index
      %c0_64 = arith.constant 0 : index
      %c8_65 = arith.constant 8 : index
      %151 = vector.load %arg5[%c0_63, %c0_64, %c8_65] : memref<1x16x32xf32, #tpu.memory_space<vmem>>, vector<1x16x8xf32>
      %152 = vector.shape_cast %151 : vector<1x16x8xf32> to vector<16x8xf32>
      %cst_66 = arith.constant dense<0.000000e+00> : vector<16x16xf32>
      %153 = tpu.matmul %148, %150, %cst_66 {dimension_numbers = #tpu.dot_dimension_numbers<[1], [1], [0], [0], [0, 0, 1, 0], [], []>} : vector<16x8xf32>, vector<16x8xf32>, vector<16x16xf32> -> vector<16x16xf32>
      %c0_i32_67 = arith.constant 0 : i32
      %154 = vector.broadcast %c0_i32_67 : i32 to vector<16x16xi32>
      %155 = arith.cmpi eq, %70, %154 : vector<16x16xi32>
      %c1_68 = arith.constant 1 : index
      %c0_69 = arith.constant 0 : index
      %156 = memref.load %arg6[%c1_68, %c0_69] : memref<4x9xf32, #tpu.memory_space<smem>>
      %157 = vector.broadcast %156 : f32 to vector<16x16xf32>
      %158 = arith.select %155, %157, %71 : vector<16x16xi1>, vector<16x16xf32>
      %c1_i32_70 = arith.constant 1 : i32
      %159 = vector.broadcast %c1_i32_70 : i32 to vector<16x16xi32>
      %160 = arith.cmpi eq, %70, %159 : vector<16x16xi32>
      %c1_71 = arith.constant 1 : index
      %c1_72 = arith.constant 1 : index
      %161 = memref.load %arg6[%c1_71, %c1_72] : memref<4x9xf32, #tpu.memory_space<smem>>
      %162 = vector.broadcast %161 : f32 to vector<16x16xf32>
      %163 = arith.select %160, %162, %158 : vector<16x16xi1>, vector<16x16xf32>
      %c2_i32_73 = arith.constant 2 : i32
      %164 = vector.broadcast %c2_i32_73 : i32 to vector<16x16xi32>
      %165 = arith.cmpi eq, %70, %164 : vector<16x16xi32>
      %c1_74 = arith.constant 1 : index
      %c2_75 = arith.constant 2 : index
      %166 = memref.load %arg6[%c1_74, %c2_75] : memref<4x9xf32, #tpu.memory_space<smem>>
      %167 = vector.broadcast %166 : f32 to vector<16x16xf32>
      %168 = arith.select %165, %167, %163 : vector<16x16xi1>, vector<16x16xf32>
      %c3_i32_76 = arith.constant 3 : i32
      %169 = vector.broadcast %c3_i32_76 : i32 to vector<16x16xi32>
      %170 = arith.cmpi eq, %70, %169 : vector<16x16xi32>
      %c1_77 = arith.constant 1 : index
      %c3_78 = arith.constant 3 : index
      %171 = memref.load %arg6[%c1_77, %c3_78] : memref<4x9xf32, #tpu.memory_space<smem>>
      %172 = vector.broadcast %171 : f32 to vector<16x16xf32>
      %173 = arith.select %170, %172, %168 : vector<16x16xi1>, vector<16x16xf32>
      %c4_i32_79 = arith.constant 4 : i32
      %174 = vector.broadcast %c4_i32_79 : i32 to vector<16x16xi32>
      %175 = arith.cmpi eq, %70, %174 : vector<16x16xi32>
      %c1_80 = arith.constant 1 : index
      %c4_81 = arith.constant 4 : index
      %176 = memref.load %arg6[%c1_80, %c4_81] : memref<4x9xf32, #tpu.memory_space<smem>>
      %177 = vector.broadcast %176 : f32 to vector<16x16xf32>
      %178 = arith.select %175, %177, %173 : vector<16x16xi1>, vector<16x16xf32>
      %c5_i32_82 = arith.constant 5 : i32
      %179 = vector.broadcast %c5_i32_82 : i32 to vector<16x16xi32>
      %180 = arith.cmpi eq, %70, %179 : vector<16x16xi32>
      %c1_83 = arith.constant 1 : index
      %c5_84 = arith.constant 5 : index
      %181 = memref.load %arg6[%c1_83, %c5_84] : memref<4x9xf32, #tpu.memory_space<smem>>
      %182 = vector.broadcast %181 : f32 to vector<16x16xf32>
      %183 = arith.select %180, %182, %178 : vector<16x16xi1>, vector<16x16xf32>
      %c6_i32_85 = arith.constant 6 : i32
      %184 = vector.broadcast %c6_i32_85 : i32 to vector<16x16xi32>
      %185 = arith.cmpi eq, %70, %184 : vector<16x16xi32>
      %c1_86 = arith.constant 1 : index
      %c6_87 = arith.constant 6 : index
      %186 = memref.load %arg6[%c1_86, %c6_87] : memref<4x9xf32, #tpu.memory_space<smem>>
      %187 = vector.broadcast %186 : f32 to vector<16x16xf32>
      %188 = arith.select %185, %187, %183 : vector<16x16xi1>, vector<16x16xf32>
      %c7_i32_88 = arith.constant 7 : i32
      %189 = vector.broadcast %c7_i32_88 : i32 to vector<16x16xi32>
      %190 = arith.cmpi eq, %70, %189 : vector<16x16xi32>
      %c1_89 = arith.constant 1 : index
      %c7_90 = arith.constant 7 : index
      %191 = memref.load %arg6[%c1_89, %c7_90] : memref<4x9xf32, #tpu.memory_space<smem>>
      %192 = vector.broadcast %191 : f32 to vector<16x16xf32>
      %193 = arith.select %190, %192, %188 : vector<16x16xi1>, vector<16x16xf32>
      %c8_i32_91 = arith.constant 8 : i32
      %194 = vector.broadcast %c8_i32_91 : i32 to vector<16x16xi32>
      %195 = arith.cmpi eq, %70, %194 : vector<16x16xi32>
      %c1_92 = arith.constant 1 : index
      %c8_93 = arith.constant 8 : index
      %196 = memref.load %arg6[%c1_92, %c8_93] : memref<4x9xf32, #tpu.memory_space<smem>>
      %197 = vector.broadcast %196 : f32 to vector<16x16xf32>
      %198 = arith.select %195, %197, %193 : vector<16x16xi1>, vector<16x16xf32>
      %199 = arith.addf %153, %198 : vector<16x16xf32>
      %200 = vector.extract_strided_slice %72 {offsets = [0, 1], sizes = [16, 1], strides = [1, 1]} : vector<16x4xf32> to vector<16x1xf32>
      %201 = vector.extract_strided_slice %73 {offsets = [0, 1], sizes = [16, 1], strides = [1, 1]} : vector<16x4xf32> to vector<16x1xf32>
      %202 = vector.extract_strided_slice %74 {offsets = [0, 8], sizes = [16, 8], strides = [1, 1]} : vector<16x32xf32> to vector<16x8xf32>
      %cst_94 = arith.constant dense<0xFF800000> : vector<16xf32>
      %203 = vector.multi_reduction <maximumf>, %199, %cst_94 [1] : vector<16x16xf32> to vector<16xf32>
      %204 = vector.shape_cast %203 : vector<16xf32> to vector<16x1xf32>
      %205 = arith.maximumf %200, %204 : vector<16x1xf32>
      %206 = arith.subf %200, %205 : vector<16x1xf32>
      %207 = math.exp %206 : vector<16x1xf32>
      %208 = vector.broadcast %205 : vector<16x1xf32> to vector<16x16xf32>
      %209 = arith.subf %199, %208 : vector<16x16xf32>
      %210 = math.exp %209 : vector<16x16xf32>
      %211 = arith.mulf %207, %201 : vector<16x1xf32>
      %cst_95 = arith.constant dense<0.000000e+00> : vector<16xf32>
      %212 = vector.multi_reduction <add>, %210, %cst_95 [1] : vector<16x16xf32> to vector<16xf32>
      %213 = vector.shape_cast %212 : vector<16xf32> to vector<16x1xf32>
      %214 = arith.addf %211, %213 : vector<16x1xf32>
      %215 = vector.broadcast %207 : vector<16x1xf32> to vector<16x8xf32>
      %216 = arith.mulf %215, %202 : vector<16x8xf32>
      %cst_96 = arith.constant dense<0.000000e+00> : vector<16x8xf32>
      %217 = tpu.matmul %210, %152, %cst_96 {dimension_numbers = #tpu.dot_dimension_numbers<[1], [0], [0], [1], [0, 0, 1, 1], [], []>} : vector<16x16xf32>, vector<16x8xf32>, vector<16x8xf32> -> vector<16x8xf32>
      %218 = arith.addf %216, %217 : vector<16x8xf32>
      %c0_97 = arith.constant 0 : index
      %c0_98 = arith.constant 0 : index
      %c16 = arith.constant 16 : index
      %219 = vector.load %arg3[%c0_97, %c0_98, %c16] : memref<1x16x32xf32, #tpu.memory_space<vmem>>, vector<1x16x8xf32>
      %220 = vector.shape_cast %219 : vector<1x16x8xf32> to vector<16x8xf32>
      %c0_99 = arith.constant 0 : index
      %c0_100 = arith.constant 0 : index
      %c16_101 = arith.constant 16 : index
      %221 = vector.load %arg4[%c0_99, %c0_100, %c16_101] : memref<1x16x32xf32, #tpu.memory_space<vmem>>, vector<1x16x8xf32>
      %222 = vector.shape_cast %221 : vector<1x16x8xf32> to vector<16x8xf32>
      %c0_102 = arith.constant 0 : index
      %c0_103 = arith.constant 0 : index
      %c16_104 = arith.constant 16 : index
      %223 = vector.load %arg5[%c0_102, %c0_103, %c16_104] : memref<1x16x32xf32, #tpu.memory_space<vmem>>, vector<1x16x8xf32>
      %224 = vector.shape_cast %223 : vector<1x16x8xf32> to vector<16x8xf32>
      %cst_105 = arith.constant dense<0.000000e+00> : vector<16x16xf32>
      %225 = tpu.matmul %220, %222, %cst_105 {dimension_numbers = #tpu.dot_dimension_numbers<[1], [1], [0], [0], [0, 0, 1, 0], [], []>} : vector<16x8xf32>, vector<16x8xf32>, vector<16x16xf32> -> vector<16x16xf32>
      %c0_i32_106 = arith.constant 0 : i32
      %226 = vector.broadcast %c0_i32_106 : i32 to vector<16x16xi32>
      %227 = arith.cmpi eq, %70, %226 : vector<16x16xi32>
      %c2_107 = arith.constant 2 : index
      %c0_108 = arith.constant 0 : index
      %228 = memref.load %arg6[%c2_107, %c0_108] : memref<4x9xf32, #tpu.memory_space<smem>>
      %229 = vector.broadcast %228 : f32 to vector<16x16xf32>
      %230 = arith.select %227, %229, %71 : vector<16x16xi1>, vector<16x16xf32>
      %c1_i32_109 = arith.constant 1 : i32
      %231 = vector.broadcast %c1_i32_109 : i32 to vector<16x16xi32>
      %232 = arith.cmpi eq, %70, %231 : vector<16x16xi32>
      %c2_110 = arith.constant 2 : index
      %c1_111 = arith.constant 1 : index
      %233 = memref.load %arg6[%c2_110, %c1_111] : memref<4x9xf32, #tpu.memory_space<smem>>
      %234 = vector.broadcast %233 : f32 to vector<16x16xf32>
      %235 = arith.select %232, %234, %230 : vector<16x16xi1>, vector<16x16xf32>
      %c2_i32_112 = arith.constant 2 : i32
      %236 = vector.broadcast %c2_i32_112 : i32 to vector<16x16xi32>
      %237 = arith.cmpi eq, %70, %236 : vector<16x16xi32>
      %c2_113 = arith.constant 2 : index
      %c2_114 = arith.constant 2 : index
      %238 = memref.load %arg6[%c2_113, %c2_114] : memref<4x9xf32, #tpu.memory_space<smem>>
      %239 = vector.broadcast %238 : f32 to vector<16x16xf32>
      %240 = arith.select %237, %239, %235 : vector<16x16xi1>, vector<16x16xf32>
      %c3_i32_115 = arith.constant 3 : i32
      %241 = vector.broadcast %c3_i32_115 : i32 to vector<16x16xi32>
      %242 = arith.cmpi eq, %70, %241 : vector<16x16xi32>
      %c2_116 = arith.constant 2 : index
      %c3_117 = arith.constant 3 : index
      %243 = memref.load %arg6[%c2_116, %c3_117] : memref<4x9xf32, #tpu.memory_space<smem>>
      %244 = vector.broadcast %243 : f32 to vector<16x16xf32>
      %245 = arith.select %242, %244, %240 : vector<16x16xi1>, vector<16x16xf32>
      %c4_i32_118 = arith.constant 4 : i32
      %246 = vector.broadcast %c4_i32_118 : i32 to vector<16x16xi32>
      %247 = arith.cmpi eq, %70, %246 : vector<16x16xi32>
      %c2_119 = arith.constant 2 : index
      %c4_120 = arith.constant 4 : index
      %248 = memref.load %arg6[%c2_119, %c4_120] : memref<4x9xf32, #tpu.memory_space<smem>>
      %249 = vector.broadcast %248 : f32 to vector<16x16xf32>
      %250 = arith.select %247, %249, %245 : vector<16x16xi1>, vector<16x16xf32>
      %c5_i32_121 = arith.constant 5 : i32
      %251 = vector.broadcast %c5_i32_121 : i32 to vector<16x16xi32>
      %252 = arith.cmpi eq, %70, %251 : vector<16x16xi32>
      %c2_122 = arith.constant 2 : index
      %c5_123 = arith.constant 5 : index
      %253 = memref.load %arg6[%c2_122, %c5_123] : memref<4x9xf32, #tpu.memory_space<smem>>
      %254 = vector.broadcast %253 : f32 to vector<16x16xf32>
      %255 = arith.select %252, %254, %250 : vector<16x16xi1>, vector<16x16xf32>
      %c6_i32_124 = arith.constant 6 : i32
      %256 = vector.broadcast %c6_i32_124 : i32 to vector<16x16xi32>
      %257 = arith.cmpi eq, %70, %256 : vector<16x16xi32>
      %c2_125 = arith.constant 2 : index
      %c6_126 = arith.constant 6 : index
      %258 = memref.load %arg6[%c2_125, %c6_126] : memref<4x9xf32, #tpu.memory_space<smem>>
      %259 = vector.broadcast %258 : f32 to vector<16x16xf32>
      %260 = arith.select %257, %259, %255 : vector<16x16xi1>, vector<16x16xf32>
      %c7_i32_127 = arith.constant 7 : i32
      %261 = vector.broadcast %c7_i32_127 : i32 to vector<16x16xi32>
      %262 = arith.cmpi eq, %70, %261 : vector<16x16xi32>
      %c2_128 = arith.constant 2 : index
      %c7_129 = arith.constant 7 : index
      %263 = memref.load %arg6[%c2_128, %c7_129] : memref<4x9xf32, #tpu.memory_space<smem>>
      %264 = vector.broadcast %263 : f32 to vector<16x16xf32>
      %265 = arith.select %262, %264, %260 : vector<16x16xi1>, vector<16x16xf32>
      %c8_i32_130 = arith.constant 8 : i32
      %266 = vector.broadcast %c8_i32_130 : i32 to vector<16x16xi32>
      %267 = arith.cmpi eq, %70, %266 : vector<16x16xi32>
      %c2_131 = arith.constant 2 : index
      %c8_132 = arith.constant 8 : index
      %268 = memref.load %arg6[%c2_131, %c8_132] : memref<4x9xf32, #tpu.memory_space<smem>>
      %269 = vector.broadcast %268 : f32 to vector<16x16xf32>
      %270 = arith.select %267, %269, %265 : vector<16x16xi1>, vector<16x16xf32>
      %271 = arith.addf %225, %270 : vector<16x16xf32>
      %272 = vector.extract_strided_slice %72 {offsets = [0, 2], sizes = [16, 1], strides = [1, 1]} : vector<16x4xf32> to vector<16x1xf32>
      %273 = vector.extract_strided_slice %73 {offsets = [0, 2], sizes = [16, 1], strides = [1, 1]} : vector<16x4xf32> to vector<16x1xf32>
      %274 = vector.extract_strided_slice %74 {offsets = [0, 16], sizes = [16, 8], strides = [1, 1]} : vector<16x32xf32> to vector<16x8xf32>
      %cst_133 = arith.constant dense<0xFF800000> : vector<16xf32>
      %275 = vector.multi_reduction <maximumf>, %271, %cst_133 [1] : vector<16x16xf32> to vector<16xf32>
      %276 = vector.shape_cast %275 : vector<16xf32> to vector<16x1xf32>
      %277 = arith.maximumf %272, %276 : vector<16x1xf32>
      %278 = arith.subf %272, %277 : vector<16x1xf32>
      %279 = math.exp %278 : vector<16x1xf32>
      %280 = vector.broadcast %277 : vector<16x1xf32> to vector<16x16xf32>
      %281 = arith.subf %271, %280 : vector<16x16xf32>
      %282 = math.exp %281 : vector<16x16xf32>
      %283 = arith.mulf %279, %273 : vector<16x1xf32>
      %cst_134 = arith.constant dense<0.000000e+00> : vector<16xf32>
      %284 = vector.multi_reduction <add>, %282, %cst_134 [1] : vector<16x16xf32> to vector<16xf32>
      %285 = vector.shape_cast %284 : vector<16xf32> to vector<16x1xf32>
      %286 = arith.addf %283, %285 : vector<16x1xf32>
      %287 = vector.broadcast %279 : vector<16x1xf32> to vector<16x8xf32>
      %288 = arith.mulf %287, %274 : vector<16x8xf32>
      %cst_135 = arith.constant dense<0.000000e+00> : vector<16x8xf32>
      %289 = tpu.matmul %282, %224, %cst_135 {dimension_numbers = #tpu.dot_dimension_numbers<[1], [0], [0], [1], [0, 0, 1, 1], [], []>} : vector<16x16xf32>, vector<16x8xf32>, vector<16x8xf32> -> vector<16x8xf32>
      %290 = arith.addf %288, %289 : vector<16x8xf32>
      %c0_136 = arith.constant 0 : index
      %c0_137 = arith.constant 0 : index
      %c24 = arith.constant 24 : index
      %291 = vector.load %arg3[%c0_136, %c0_137, %c24] : memref<1x16x32xf32, #tpu.memory_space<vmem>>, vector<1x16x8xf32>
      %292 = vector.shape_cast %291 : vector<1x16x8xf32> to vector<16x8xf32>
      %c0_138 = arith.constant 0 : index
      %c0_139 = arith.constant 0 : index
      %c24_140 = arith.constant 24 : index
      %293 = vector.load %arg4[%c0_138, %c0_139, %c24_140] : memref<1x16x32xf32, #tpu.memory_space<vmem>>, vector<1x16x8xf32>
      %294 = vector.shape_cast %293 : vector<1x16x8xf32> to vector<16x8xf32>
      %c0_141 = arith.constant 0 : index
      %c0_142 = arith.constant 0 : index
      %c24_143 = arith.constant 24 : index
      %295 = vector.load %arg5[%c0_141, %c0_142, %c24_143] : memref<1x16x32xf32, #tpu.memory_space<vmem>>, vector<1x16x8xf32>
      %296 = vector.shape_cast %295 : vector<1x16x8xf32> to vector<16x8xf32>
      %cst_144 = arith.constant dense<0.000000e+00> : vector<16x16xf32>
      %297 = tpu.matmul %292, %294, %cst_144 {dimension_numbers = #tpu.dot_dimension_numbers<[1], [1], [0], [0], [0, 0, 1, 0], [], []>} : vector<16x8xf32>, vector<16x8xf32>, vector<16x16xf32> -> vector<16x16xf32>
      %c0_i32_145 = arith.constant 0 : i32
      %298 = vector.broadcast %c0_i32_145 : i32 to vector<16x16xi32>
      %299 = arith.cmpi eq, %70, %298 : vector<16x16xi32>
      %c3_146 = arith.constant 3 : index
      %c0_147 = arith.constant 0 : index
      %300 = memref.load %arg6[%c3_146, %c0_147] : memref<4x9xf32, #tpu.memory_space<smem>>
      %301 = vector.broadcast %300 : f32 to vector<16x16xf32>
      %302 = arith.select %299, %301, %71 : vector<16x16xi1>, vector<16x16xf32>
      %c1_i32_148 = arith.constant 1 : i32
      %303 = vector.broadcast %c1_i32_148 : i32 to vector<16x16xi32>
      %304 = arith.cmpi eq, %70, %303 : vector<16x16xi32>
      %c3_149 = arith.constant 3 : index
      %c1_150 = arith.constant 1 : index
      %305 = memref.load %arg6[%c3_149, %c1_150] : memref<4x9xf32, #tpu.memory_space<smem>>
      %306 = vector.broadcast %305 : f32 to vector<16x16xf32>
      %307 = arith.select %304, %306, %302 : vector<16x16xi1>, vector<16x16xf32>
      %c2_i32_151 = arith.constant 2 : i32
      %308 = vector.broadcast %c2_i32_151 : i32 to vector<16x16xi32>
      %309 = arith.cmpi eq, %70, %308 : vector<16x16xi32>
      %c3_152 = arith.constant 3 : index
      %c2_153 = arith.constant 2 : index
      %310 = memref.load %arg6[%c3_152, %c2_153] : memref<4x9xf32, #tpu.memory_space<smem>>
      %311 = vector.broadcast %310 : f32 to vector<16x16xf32>
      %312 = arith.select %309, %311, %307 : vector<16x16xi1>, vector<16x16xf32>
      %c3_i32_154 = arith.constant 3 : i32
      %313 = vector.broadcast %c3_i32_154 : i32 to vector<16x16xi32>
      %314 = arith.cmpi eq, %70, %313 : vector<16x16xi32>
      %c3_155 = arith.constant 3 : index
      %c3_156 = arith.constant 3 : index
      %315 = memref.load %arg6[%c3_155, %c3_156] : memref<4x9xf32, #tpu.memory_space<smem>>
      %316 = vector.broadcast %315 : f32 to vector<16x16xf32>
      %317 = arith.select %314, %316, %312 : vector<16x16xi1>, vector<16x16xf32>
      %c4_i32_157 = arith.constant 4 : i32
      %318 = vector.broadcast %c4_i32_157 : i32 to vector<16x16xi32>
      %319 = arith.cmpi eq, %70, %318 : vector<16x16xi32>
      %c3_158 = arith.constant 3 : index
      %c4_159 = arith.constant 4 : index
      %320 = memref.load %arg6[%c3_158, %c4_159] : memref<4x9xf32, #tpu.memory_space<smem>>
      %321 = vector.broadcast %320 : f32 to vector<16x16xf32>
      %322 = arith.select %319, %321, %317 : vector<16x16xi1>, vector<16x16xf32>
      %c5_i32_160 = arith.constant 5 : i32
      %323 = vector.broadcast %c5_i32_160 : i32 to vector<16x16xi32>
      %324 = arith.cmpi eq, %70, %323 : vector<16x16xi32>
      %c3_161 = arith.constant 3 : index
      %c5_162 = arith.constant 5 : index
      %325 = memref.load %arg6[%c3_161, %c5_162] : memref<4x9xf32, #tpu.memory_space<smem>>
      %326 = vector.broadcast %325 : f32 to vector<16x16xf32>
      %327 = arith.select %324, %326, %322 : vector<16x16xi1>, vector<16x16xf32>
      %c6_i32_163 = arith.constant 6 : i32
      %328 = vector.broadcast %c6_i32_163 : i32 to vector<16x16xi32>
      %329 = arith.cmpi eq, %70, %328 : vector<16x16xi32>
      %c3_164 = arith.constant 3 : index
      %c6_165 = arith.constant 6 : index
      %330 = memref.load %arg6[%c3_164, %c6_165] : memref<4x9xf32, #tpu.memory_space<smem>>
      %331 = vector.broadcast %330 : f32 to vector<16x16xf32>
      %332 = arith.select %329, %331, %327 : vector<16x16xi1>, vector<16x16xf32>
      %c7_i32_166 = arith.constant 7 : i32
      %333 = vector.broadcast %c7_i32_166 : i32 to vector<16x16xi32>
      %334 = arith.cmpi eq, %70, %333 : vector<16x16xi32>
      %c3_167 = arith.constant 3 : index
      %c7_168 = arith.constant 7 : index
      %335 = memref.load %arg6[%c3_167, %c7_168] : memref<4x9xf32, #tpu.memory_space<smem>>
      %336 = vector.broadcast %335 : f32 to vector<16x16xf32>
      %337 = arith.select %334, %336, %332 : vector<16x16xi1>, vector<16x16xf32>
      %c8_i32_169 = arith.constant 8 : i32
      %338 = vector.broadcast %c8_i32_169 : i32 to vector<16x16xi32>
      %339 = arith.cmpi eq, %70, %338 : vector<16x16xi32>
      %c3_170 = arith.constant 3 : index
      %c8_171 = arith.constant 8 : index
      %340 = memref.load %arg6[%c3_170, %c8_171] : memref<4x9xf32, #tpu.memory_space<smem>>
      %341 = vector.broadcast %340 : f32 to vector<16x16xf32>
      %342 = arith.select %339, %341, %337 : vector<16x16xi1>, vector<16x16xf32>
      %343 = arith.addf %297, %342 : vector<16x16xf32>
      %344 = vector.extract_strided_slice %72 {offsets = [0, 3], sizes = [16, 1], strides = [1, 1]} : vector<16x4xf32> to vector<16x1xf32>
      %345 = vector.extract_strided_slice %73 {offsets = [0, 3], sizes = [16, 1], strides = [1, 1]} : vector<16x4xf32> to vector<16x1xf32>
      %346 = vector.extract_strided_slice %74 {offsets = [0, 24], sizes = [16, 8], strides = [1, 1]} : vector<16x32xf32> to vector<16x8xf32>
      %cst_172 = arith.constant dense<0xFF800000> : vector<16xf32>
      %347 = vector.multi_reduction <maximumf>, %343, %cst_172 [1] : vector<16x16xf32> to vector<16xf32>
      %348 = vector.shape_cast %347 : vector<16xf32> to vector<16x1xf32>
      %349 = arith.maximumf %344, %348 : vector<16x1xf32>
      %350 = arith.subf %344, %349 : vector<16x1xf32>
      %351 = math.exp %350 : vector<16x1xf32>
      %352 = vector.broadcast %349 : vector<16x1xf32> to vector<16x16xf32>
      %353 = arith.subf %343, %352 : vector<16x16xf32>
      %354 = math.exp %353 : vector<16x16xf32>
      %355 = arith.mulf %351, %345 : vector<16x1xf32>
      %cst_173 = arith.constant dense<0.000000e+00> : vector<16xf32>
      %356 = vector.multi_reduction <add>, %354, %cst_173 [1] : vector<16x16xf32> to vector<16xf32>
      %357 = vector.shape_cast %356 : vector<16xf32> to vector<16x1xf32>
      %358 = arith.addf %355, %357 : vector<16x1xf32>
      %359 = vector.broadcast %351 : vector<16x1xf32> to vector<16x8xf32>
      %360 = arith.mulf %359, %346 : vector<16x8xf32>
      %cst_174 = arith.constant dense<0.000000e+00> : vector<16x8xf32>
      %361 = tpu.matmul %354, %296, %cst_174 {dimension_numbers = #tpu.dot_dimension_numbers<[1], [0], [0], [1], [0, 0, 1, 1], [], []>} : vector<16x16xf32>, vector<16x8xf32>, vector<16x8xf32> -> vector<16x8xf32>
      %362 = arith.addf %360, %361 : vector<16x8xf32>
      %363 = tpu.concatenate %133, %205, %277, %349 in 1 : vector<16x1xf32>, vector<16x1xf32>, vector<16x1xf32>, vector<16x1xf32> -> vector<16x4xf32>
      %c0_175 = arith.constant 0 : index
      %c0_176 = arith.constant 0 : index
      %364 = vector.load %arg8[%c0_175, %c0_176] : memref<16x4xf32, #tpu.memory_space<vmem>>, vector<16x4xf32>
      tpu.vector_store %arg8[%c0_175, %c0_176], %363 {strides = array<i32>} : memref<16x4xf32, #tpu.memory_space<vmem>>, vector<16x4xf32>,
      %365 = tpu.concatenate %142, %214, %286, %358 in 1 : vector<16x1xf32>, vector<16x1xf32>, vector<16x1xf32>, vector<16x1xf32> -> vector<16x4xf32>
      %c0_177 = arith.constant 0 : index
      %c0_178 = arith.constant 0 : index
      %366 = vector.load %arg9[%c0_177, %c0_178] : memref<16x4xf32, #tpu.memory_space<vmem>>, vector<16x4xf32>
      tpu.vector_store %arg9[%c0_177, %c0_178], %365 {strides = array<i32>} : memref<16x4xf32, #tpu.memory_space<vmem>>, vector<16x4xf32>,
      %367 = tpu.concatenate %146, %218, %290, %362 in 1 : vector<16x8xf32>, vector<16x8xf32>, vector<16x8xf32>, vector<16x8xf32> -> vector<16x32xf32>
      %c0_179 = arith.constant 0 : index
      %c0_180 = arith.constant 0 : index
      %368 = vector.load %arg10[%c0_179, %c0_180] : memref<16x32xf32, #tpu.memory_space<vmem>>, vector<16x32xf32>
      tpu.vector_store %arg10[%c0_179, %c0_180], %367 {strides = array<i32>} : memref<16x32xf32, #tpu.memory_space<vmem>>, vector<16x32xf32>,
    } else {
    }
    %c0_i32_4 = arith.constant 0 : i32
    %10 = arith.cmpi eq, %arg2, %c0_i32_4 : i32
    %11 = arith.extui %10 : i1 to i32
    %c0_i32_5 = arith.constant 0 : i32
    %12 = arith.cmpi ne, %11, %c0_i32_5 : i32
    scf.if %12 {
      %c0 = arith.constant 0 : index
      %c0_6 = arith.constant 0 : index
      %13 = vector.load %arg9[%c0, %c0_6] : memref<16x4xf32, #tpu.memory_space<vmem>>, vector<16x4xf32>
      %14 = tpu.reciprocal %13 {approx = true} : vector<16x4xf32> -> vector<16x4xf32>
      %15 = vector.extract_strided_slice %14 {offsets = [0, 0], sizes = [16, 1], strides = [1, 1]} : vector<16x4xf32> to vector<16x1xf32>
      %16 = vector.shape_cast %15 : vector<16x1xf32> to vector<16x1xf32>
      %17 = vector.broadcast %16 : vector<16x1xf32> to vector<16x8xf32>
      %18 = vector.extract_strided_slice %14 {offsets = [0, 1], sizes = [16, 1], strides = [1, 1]} : vector<16x4xf32> to vector<16x1xf32>
      %19 = vector.shape_cast %18 : vector<16x1xf32> to vector<16x1xf32>
      %20 = vector.broadcast %19 : vector<16x1xf32> to vector<16x8xf32>
      %21 = vector.extract_strided_slice %14 {offsets = [0, 2], sizes = [16, 1], strides = [1, 1]} : vector<16x4xf32> to vector<16x1xf32>
      %22 = vector.shape_cast %21 : vector<16x1xf32> to vector<16x1xf32>
      %23 = vector.broadcast %22 : vector<16x1xf32> to vector<16x8xf32>
      %24 = vector.extract_strided_slice %14 {offsets = [0, 3], sizes = [16, 1], strides = [1, 1]} : vector<16x4xf32> to vector<16x1xf32>
      %25 = vector.shape_cast %24 : vector<16x1xf32> to vector<16x1xf32>
      %26 = vector.broadcast %25 : vector<16x1xf32> to vector<16x8xf32>
      %27 = tpu.concatenate %17, %20, %23, %26 in 1 : vector<16x8xf32>, vector<16x8xf32>, vector<16x8xf32>, vector<16x8xf32> -> vector<16x32xf32>
      %c0_7 = arith.constant 0 : index
      %c0_8 = arith.constant 0 : index
      %28 = vector.load %arg10[%c0_7, %c0_8] : memref<16x32xf32, #tpu.memory_space<vmem>>, vector<16x32xf32>
      %29 = arith.mulf %28, %27 : vector<16x32xf32>
      %c0_9 = arith.constant 0 : index
      %c0_10 = arith.constant 0 : index
      %c0_11 = arith.constant 0 : index
      %30 = vector.load %arg7[%c0_9, %c0_10, %c0_11] : memref<1x16x32xf32, #tpu.memory_space<vmem>>, vector<1x16x32xf32>
      %31 = vector.shape_cast %30 : vector<1x16x32xf32> to vector<16x32xf32>
      %32 = vector.shape_cast %29 : vector<16x32xf32> to vector<1x16x32xf32>
      tpu.vector_store %arg7[%c0_9, %c0_10, %c0_11], %32 {strides = array<i32>} : memref<1x16x32xf32, #tpu.memory_space<vmem>>, vector<1x16x32xf32>,
    } else {
    }
    return
  }
  func.func @transform_0(%arg0: i32, %arg1: i32, %arg2: i32) -> (i32, i32, i32) {
    %c0_i32 = arith.constant 0 : i32
    %c0_i32_0 = arith.constant 0 : i32
    return %arg0, %arg1, %c0_i32 : i32, i32, i32
  }
  func.func @transform_1(%arg0: i32, %arg1: i32, %arg2: i32) -> (i32, i32, i32) {
    %c0_i32 = arith.constant 0 : i32
    %0 = arith.subi %arg1, %c0_i32 : i32
    %1 = arith.addi %0, %arg2 : i32
    %c0_i32_0 = arith.constant 0 : i32
    %c0_i32_1 = arith.constant 0 : i32
    %2 = arith.maxsi %c0_i32_0, %1 : i32
    %3 = arith.minsi %c0_i32_1, %2 : i32
    %c0_i32_2 = arith.constant 0 : i32
    %c0_i32_3 = arith.constant 0 : i32
    return %arg0, %3, %c0_i32_2 : i32, i32, i32
  }
  func.func @transform_2(%arg0: i32, %arg1: i32, %arg2: i32) -> (i32, i32, i32) {
    %c0_i32 = arith.constant 0 : i32
    %0 = arith.subi %arg1, %c0_i32 : i32
    %1 = arith.addi %0, %arg2 : i32
    %c0_i32_0 = arith.constant 0 : i32
    %c0_i32_1 = arith.constant 0 : i32
    %2 = arith.maxsi %c0_i32_0, %1 : i32
    %3 = arith.minsi %c0_i32_1, %2 : i32
    %c0_i32_2 = arith.constant 0 : i32
    %c0_i32_3 = arith.constant 0 : i32
    return %arg0, %3, %c0_i32_2 : i32, i32, i32
  }
  func.func @transform_3(%arg0: i32, %arg1: i32, %arg2: i32) -> (i32, i32) {
    %c0_i32 = arith.constant 0 : i32
    %c0_i32_0 = arith.constant 0 : i32
    %c0_i32_1 = arith.constant 0 : i32
    return %c0_i32, %c0_i32_0 : i32, i32
  }
  func.func @transform_4(%arg0: i32, %arg1: i32, %arg2: i32) -> (i32, i32, i32) {
    %c0_i32 = arith.constant 0 : i32
    %c0_i32_0 = arith.constant 0 : i32
    return %arg0, %arg1, %c0_i32 : i32, i32, i32
  }
}

</mosaic_0001>

<llo_original>
// kernel: neighborhood_attention_1d.3
$region0: #{neighborhood_attention_1d.3}
  #allocation0 [shape = 'u32[]', space=smem, size = 0x4, offset = 0x4, fixed_abs, tag = 'smem constant byte address 0x4 - core index']
  #allocation1 [shape = 'u32[144,128]{1,0:T(1,128)}', space=vmem, size = 0x12000, scoped, tag = 'internal scratch']
  %s0 = inlined_call_operand.vmem [shape: f32[32,32], index: 0, kind: input, shape index: {}]
  %s1 = inlined_call_operand.vmem [shape: f32[32,96], index: 1, kind: input, shape index: {}]
  %s2 = inlined_call_operand.vmem [shape: f32[1,96], index: 2, kind: input, shape index: {}]
  %s3 = inlined_call_operand.vmem [shape: f32[32,32], index: 3, kind: output, shape index: {0}]
  %s4 = inlined_call_operand.vmem [shape: f32[32,32], index: 4, kind: output, shape index: {1}]
  %s5 = inlined_call_operand.vmem [shape: f32[32,32], index: 5, kind: output, shape index: {2}]
  %6 = xla_tuple %s3, %s4, %s5
  %s7 = sld [smem:[#allocation0]]
  $region38: #{neighborhood_attention_1d.3} parent=0
    _
  %s9 = ssub.s32 1, %s7
  %s10 = scalar_select 0, %s9, %s7
  // Predicated region
  $region2: #{neighborhood_attention_1d.3} parent=0 // pred_check
    _
  $region3: #{neighborhood_attention_1d.3} parent=0 // pred_check_branch
    %12 = sbr.rel (0) target = $region5
  $region4: #{neighborhood_attention_1d.3} parent=0 // pred_region
    _
  $region5: #{neighborhood_attention_1d.3} parent=0 // pred_fallthru
    _
  // Predicated region
  $region6: #{neighborhood_attention_1d.3} parent=0 // pred_check
    _
  $region7: #{neighborhood_attention_1d.3} parent=0 // pred_check_branch
    %14 = sbr.rel (0) target = $region9
  $region8: #{neighborhood_attention_1d.3} parent=0 // pred_region
    _
  $region9: #{neighborhood_attention_1d.3} parent=0 // pred_fallthru
    _
  // Predicated region
  $region10: #{neighborhood_attention_1d.3} parent=0 // pred_check
    _
  $region11: #{neighborhood_attention_1d.3} parent=0 // pred_check_branch
    %16 = sbr.rel (0) target = $region13
  $region12: #{neighborhood_attention_1d.3} parent=0 // pred_region
    _
  $region13: #{neighborhood_attention_1d.3} parent=0 // pred_fallthru
    _
  %v17 = vld [vmem:[%s0] sm:$0xff]
  %v18 = vld [vmem:[%s0 + $0x8] sm:$0xff]
  %v19 = vld [vmem:[%s0 + $0x10] sm:$0xff]
  %v20 = vld [vmem:[%s0 + $0x18] sm:$0xff]
  %v21 = vld [vmem:[%s1] sm:$0xff]
  %v22 = vld [vmem:[%s1 + $0x8] sm:$0xff]
  %v23 = vld [vmem:[%s1 + $0x10] sm:$0xff]
  %v24 = vld [vmem:[%s1 + $0x18] sm:$0xff]
  %v25 = vld [vmem:[%s2] sm:$0x1]
  %v27 = vlaneseq
  %v28 = vshrl.u32 %v27, 7
  %v29 = vsub.s32 0, %v28
  %v30 = vrot.slane %v25, %v29
  %vm32 = vcmask 261120
  %v34 = vsel %vm32, %v17, 0
  %v37 = vsel %vm32, %v18, 0
  %v40 = vsel %vm32, %v19, 0
  %v43 = vsel %vm32, %v20, 0
  %45 = vmatprep.subr.mxu0 0.0
  %46 = vmatpush1.msra.mxu0 %v21
  %47 = vmatprep.subr.mxu0 0.0
  %48 = vmatpush1.msra.mxu0 %v22
  %49 = vmatprep.subr.mxu0 0.0
  %50 = vmatpush1.msra.mxu0 %v23
  %51 = vmatprep.subr.mxu0 0.0
  %52 = vmatpush1.msra.mxu0 %v24
  %53 = vmatprep.subr.mxu0 0.0
  %54 = vmatpush1.msra.mxu0 0.0
  %55 = vmatprep.subr.mxu0 0.0
  %56 = vmatpush1.msra.mxu0 0.0
  %57 = vmatprep.subr.mxu0 0.0
  %58 = vmatpush1.msra.mxu0 0.0
  %59 = vmatprep.subr.mxu0 0.0
  %60 = vmatpush1.msra.mxu0 0.0
  %61 = vmatprep.subr.mxu0 0.0
  %62 = vmatpush1.msra.mxu0 0.0
  %63 = vmatprep.subr.mxu0 0.0
  %64 = vmatpush1.msra.mxu0 0.0
  %65 = vmatprep.subr.mxu0 0.0
  %66 = vmatpush1.msra.mxu0 0.0
  %67 = vmatprep.subr.mxu0 0.0
  %68 = vmatpush1.msra.mxu0 0.0
  %69 = vmatprep.subr.mxu0 0.0
  %70 = vmatpush1.msra.mxu0 0.0
  %71 = vmatprep.subr.mxu0 0.0
  %72 = vmatpush1.msra.mxu0 0.0
  %73 = vmatprep.subr.mxu0 0.0
  %74 = vmatpush1.msra.mxu0 0.0
  %75 = vmatprep.subr.mxu0 0.0
  %76 = vmatpush1.msra.mxu0 0.0
  %77 = vmatprep.subr.mxu0 0.0
  %78 = vmatpush1.msra.mxu0 0.0
  %79 = vmatprep.subr.mxu0 0.0
  %80 = vmatpush1.msra.mxu0 0.0
  %81 = vmatprep.subr.mxu0 0.0
  %82 = vmatpush1.msra.mxu0 0.0
  %83 = vmatprep.subr.mxu0 0.0
  %84 = vmatpush1.msra.mxu0 0.0
  %85 = vmatprep.subr.mxu0 0.0
  %86 = vmatpush1.msra.mxu0 0.0
  %87 = vmatprep.subr.mxu0 0.0
  %88 = vmatpush1.msra.mxu0 0.0
  %89 = vmatprep.subr.mxu0 0.0
  %90 = vmatpush1.msra.mxu0 0.0
  %91 = vmatprep.subr.mxu0 0.0
  %92 = vmatpush1.msra.mxu0 0.0
  %93 = vmatprep.subr.mxu0 0.0
  %94 = vmatpush1.msra.mxu0 0.0
  %95 = vmatprep.subr.mxu0 0.0
  %96 = vmatpush1.msra.mxu0 0.0
  %97 = vmatprep.subr.mxu0 0.0
  %98 = vmatpush1.msra.mxu0 0.0
  %99 = vmatprep.subr.mxu0 0.0
  %100 = vmatpush1.msra.mxu0 0.0
  %101 = vmatprep.subr.mxu0 0.0
  %102 = vmatpush1.msra.mxu0 0.0
  %103 = vmatprep.subr.mxu0 0.0
  %104 = vmatpush1.msra.mxu0 0.0
  %105 = vmatprep.subr.mxu0 0.0
  %106 = vmatpush1.msra.mxu0 0.0
  %107 = vmatprep.subr.mxu0 0.0
  %108 = vmatpush1.msra.mxu0 0.0
  %109 = vmatprep.mubr.f32.mxu0 0.0
  %110 = vmatmul.mubr.f32.gmra.mrb[0].mxu0 %v34
  %v111 = vpop.f32.mrb[0].mxu0
  %v112 = vadd.f32 %v30, %v111
  %v113 = vpop.f32.mrb[0].mxu0
  %114 = vmatprep.mubr.f32.mxu0 0.0
  %115 = vmatmul.mubr.f32.gmra.mrb[0].mxu0 %v37
  %v116 = vpop.f32.mrb[0].mxu0
  %v117 = vadd.f32 %v30, %v116
  %v118 = vpop.f32.mrb[0].mxu0
  %119 = vmatprep.mubr.f32.mxu0 0.0
  %120 = vmatmul.mubr.f32.gmra.mrb[0].mxu0 %v40
  %v121 = vpop.f32.mrb[0].mxu0
  %v122 = vadd.f32 %v30, %v121
  %v123 = vpop.f32.mrb[0].mxu0
  %124 = vmatprep.mubr.f32.mxu0 0.0
  %125 = vmatmul.mubr.f32.gmra.mrb[0].mxu0 %v43
  %v126 = vpop.f32.mrb[0].mxu0
  %v127 = vadd.f32 %v30, %v126
  %v128 = vpop.f32.mrb[0].mxu0
  %129 = vdwg.mxu0
  %130 = vst.msk [vmem:[%s3] sm:$0xff] %vm32, %v112
  %131 = vst.msk [vmem:[%s3 + $0x8] sm:$0xff] %vm32, %v117
  %132 = vst.msk [vmem:[%s3 + $0x10] sm:$0xff] %vm32, %v122
  %133 = vst.msk [vmem:[%s3 + $0x18] sm:$0xff] %vm32, %v127
  %138 = vrot.lane.b32.xlu0 %v112, 96
  %v139 = vpop.permute.xlu0 %138
  %140 = vrot.lane.b32.xlu0 %v117, 96
  %v141 = vpop.permute.xlu0 %140
  %142 = vrot.lane.b32.xlu0 %v122, 96
  %v143 = vpop.permute.xlu0 %142
  %144 = vrot.lane.b32.xlu0 %v127, 96
  %v145 = vpop.permute.xlu0 %144
  %150 = vst.msk [vmem:[%s4] sm:$0xff] %vm32, %v139
  %151 = vst.msk [vmem:[%s4 + $0x8] sm:$0xff] %vm32, %v141
  %152 = vst.msk [vmem:[%s4 + $0x10] sm:$0xff] %vm32, %v143
  %153 = vst.msk [vmem:[%s4 + $0x18] sm:$0xff] %vm32, %v145
  %154 = vrot.lane.b32.xlu0 %v112, 64
  %v155 = vpop.permute.xlu0 %154
  %156 = vrot.lane.b32.xlu0 %v117, 64
  %v157 = vpop.permute.xlu0 %156
  %158 = vrot.lane.b32.xlu0 %v122, 64
  %v159 = vpop.permute.xlu0 %158
  %160 = vrot.lane.b32.xlu0 %v127, 64
  %v161 = vpop.permute.xlu0 %160
  %166 = vst.msk [vmem:[%s5] sm:$0xff] %vm32, %v155
  %167 = vst.msk [vmem:[%s5 + $0x8] sm:$0xff] %vm32, %v157
  %168 = vst.msk [vmem:[%s5 + $0x10] sm:$0xff] %vm32, %v159
  %169 = vst.msk [vmem:[%s5 + $0x18] sm:$0xff] %vm32, %v161
  // Predicated region
  $region14: #{neighborhood_attention_1d.3} parent=0 // pred_check
    _
  $region15: #{neighborhood_attention_1d.3} parent=0 // pred_check_branch
    %171 = sbr.rel (0) target = $region17
  $region16: #{neighborhood_attention_1d.3} parent=0 // pred_region
    _
  $region17: #{neighborhood_attention_1d.3} parent=0 // pred_fallthru
    _
  // Predicated region
  $region18: #{neighborhood_attention_1d.3} parent=0 // pred_check
    _
  $region19: #{neighborhood_attention_1d.3} parent=0 // pred_check_branch
    %173 = sbr.rel (0) target = $region21
  $region20: #{neighborhood_attention_1d.3} parent=0 // pred_region
    _
  $region21: #{neighborhood_attention_1d.3} parent=0 // pred_fallthru
    _
  // Predicated region
  $region22: #{neighborhood_attention_1d.3} parent=0 // pred_check
    _
  $region23: #{neighborhood_attention_1d.3} parent=0 // pred_check_branch
    %175 = sbr.rel (0) target = $region25
  $region24: #{neighborhood_attention_1d.3} parent=0 // pred_region
    _
  $region25: #{neighborhood_attention_1d.3} parent=0 // pred_fallthru
    _
  // Predicated region
  $region26: #{neighborhood_attention_1d.3} parent=0 // pred_check
    _
  $region27: #{neighborhood_attention_1d.3} parent=0 // pred_check_branch
    %177 = sbr.rel (0) target = $region29
  $region28: #{neighborhood_attention_1d.3} parent=0 // pred_region
    _
  $region29: #{neighborhood_attention_1d.3} parent=0 // pred_fallthru
    _
  // Predicated region
  $region30: #{neighborhood_attention_1d.3} parent=0 // pred_check
    _
  $region31: #{neighborhood_attention_1d.3} parent=0 // pred_check_branch
    %179 = sbr.rel (0) target = $region33
  $region32: #{neighborhood_attention_1d.3} parent=0 // pred_region
    _
  $region33: #{neighborhood_attention_1d.3} parent=0 // pred_fallthru
    _
  // Predicated region
  $region34: #{neighborhood_attention_1d.3} parent=0 // pred_check
    _
  $region35: #{neighborhood_attention_1d.3} parent=0 // pred_check_branch
    %181 = sbr.rel (0) target = $region37
  $region36: #{neighborhood_attention_1d.3} parent=0 // pred_region
    _
  $region37: #{neighborhood_attention_1d.3} parent=0 // pred_fallthru
    _

// kernel: neighborhood_attention_1d.5
$region0: #{neighborhood_attention_1d.5}
  #allocation0 [shape = 'u32[]', space=smem, size = 0x4, offset = 0x4, fixed_abs, tag = 'smem constant byte address 0x4 - core index']
  #allocation1 [shape = 'u32[144,128]{1,0:T(1,128)}', space=vmem, size = 0x12000, scoped, tag = 'internal scratch']
  #allocation2 [shape = 'f32[32,32]{1,0:T(8,128)}', space=vmem, size = 0x4000, scoped, tag = 'scratch operand']
  %s0 = inlined_call_operand.vmem [shape: f32[32,32], index: 0, kind: input, shape index: {}]
  %s1 = inlined_call_operand.vmem [shape: f32[32,32], index: 1, kind: input, shape index: {}]
  %s2 = inlined_call_operand.vmem [shape: f32[1,32], index: 2, kind: input, shape index: {}]
  %s3 = inlined_call_operand.hbm [shape: f32[32,32], index: 3, kind: output, shape index: {}]
  %s4 = sld [smem:[#allocation0]]
  $region30: #{neighborhood_attention_1d.5} parent=0
    _
  %s6 = ssub.s32 1, %s4
  %s7 = scalar_select 0, %s6, %s4
  $region1: #{neighborhood_attention_1d.5} parent=0
    #allocation3 [shape = 'u8[16384]{0}', space=vmem, size = 0x4000, scoped, tag = 'output window, operand 0, single buffered']
    #allocation4 [shape = 's32[1]{0}', space=sflag, size = 0x4, scoped, tag = 'scoped memory for neighborhood_attention_1d.5']
    %8 = vsyncpa [#allocation4], 0
    // Predicated region
    $region2: #{neighborhood_attention_1d.5} parent=1 // pred_check
      _
    $region3: #{neighborhood_attention_1d.5} parent=1 // pred_check_branch
      %10 = sbr.rel (0) target = $region5
    $region4: #{neighborhood_attention_1d.5} parent=1 // pred_region
      _
    $region5: #{neighborhood_attention_1d.5} parent=1 // pred_fallthru
      _
    // Predicated region
    $region6: #{neighborhood_attention_1d.5} parent=1 // pred_check
      _
    $region7: #{neighborhood_attention_1d.5} parent=1 // pred_check_branch
      %12 = sbr.rel (0) target = $region9
    $region8: #{neighborhood_attention_1d.5} parent=1 // pred_region
      _
    $region9: #{neighborhood_attention_1d.5} parent=1 // pred_fallthru
      _
    // Predicated region
    $region10: #{neighborhood_attention_1d.5} parent=1 // pred_check
      _
    $region11: #{neighborhood_attention_1d.5} parent=1 // pred_check_branch
      %14 = sbr.rel (0) target = $region13
    $region12: #{neighborhood_attention_1d.5} parent=1 // pred_region
      _
    $region13: #{neighborhood_attention_1d.5} parent=1 // pred_fallthru
      _
    %p15 = scmp.eq.s32.totalorder 0, 0
    // Predicated region
    $region14: #{neighborhood_attention_1d.5} parent=1 // pred_check
      %p16 = pneg %p15
    $region15: #{neighborhood_attention_1d.5} parent=1 // pred_check_branch
      %18 = sbr.rel (%p16) target = $region17
    $region16: #{neighborhood_attention_1d.5} parent=1 // pred_region
      %vm19 = vcmask 261120
      %20 = vst.msk [vmem:[#allocation2] sm:$0xff] %vm19, 0.0
      %21 = vst.msk [vmem:[#allocation2 + $0x8] sm:$0xff] %vm19, 0.0
      %22 = vst.msk [vmem:[#allocation2 + $0x10] sm:$0xff] %vm19, 0.0
      %23 = vst.msk [vmem:[#allocation2 + $0x18] sm:$0xff] %vm19, 0.0
    $region17: #{neighborhood_attention_1d.5} parent=1 // pred_fallthru
      _
    %v24 = vld [vmem:[#allocation2] sm:$0xff]
    %v25 = vld [vmem:[#allocation2 + $0x8] sm:$0xff]
    %v26 = vld [vmem:[#allocation2 + $0x10] sm:$0xff]
    %v27 = vld [vmem:[#allocation2 + $0x18] sm:$0xff]
    %v28 = vld [vmem:[%s0] sm:$0xff]
    %v29 = vld [vmem:[%s0 + $0x8] sm:$0xff]
    %v30 = vld [vmem:[%s0 + $0x10] sm:$0xff]
    %v31 = vld [vmem:[%s0 + $0x18] sm:$0xff]
    %v32 = vld [vmem:[%s1] sm:$0xff]
    %v33 = vld [vmem:[%s1 + $0x8] sm:$0xff]
    %v34 = vld [vmem:[%s1 + $0x10] sm:$0xff]
    %v35 = vld [vmem:[%s1 + $0x18] sm:$0xff]
    %vm36 = vcmask 261120
    %v38 = vsel %vm36, %v28, 0
    %v41 = vsel %vm36, %v29, 0
    %v44 = vsel %vm36, %v30, 0
    %v47 = vsel %vm36, %v31, 0
    %49 = vmatprep.subr.mxu0 0.0
    %50 = vmatpush1.msra.mxu0 %v32
    %51 = vmatprep.subr.mxu0 0.0
    %52 = vmatpush1.msra.mxu0 %v33
    %53 = vmatprep.subr.mxu0 0.0
    %54 = vmatpush1.msra.mxu0 %v34
    %55 = vmatprep.subr.mxu0 0.0
    %56 = vmatpush1.msra.mxu0 %v35
    %57 = vmatprep.subr.mxu0 0.0
    %58 = vmatpush1.msra.mxu0 0.0
    %59 = vmatprep.subr.mxu0 0.0
    %60 = vmatpush1.msra.mxu0 0.0
    %61 = vmatprep.subr.mxu0 0.0
    %62 = vmatpush1.msra.mxu0 0.0
    %63 = vmatprep.subr.mxu0 0.0
    %64 = vmatpush1.msra.mxu0 0.0
    %65 = vmatprep.subr.mxu0 0.0
    %66 = vmatpush1.msra.mxu0 0.0
    %67 = vmatprep.subr.mxu0 0.0
    %68 = vmatpush1.msra.mxu0 0.0
    %69 = vmatprep.subr.mxu0 0.0
    %70 = vmatpush1.msra.mxu0 0.0
    %71 = vmatprep.subr.mxu0 0.0
    %72 = vmatpush1.msra.mxu0 0.0
    %73 = vmatprep.subr.mxu0 0.0
    %74 = vmatpush1.msra.mxu0 0.0
    %75 = vmatprep.subr.mxu0 0.0
    %76 = vmatpush1.msra.mxu0 0.0
    %77 = vmatprep.subr.mxu0 0.0
    %78 = vmatpush1.msra.mxu0 0.0
    %79 = vmatprep.subr.mxu0 0.0
    %80 = vmatpush1.msra.mxu0 0.0
    %81 = vmatprep.subr.mxu0 0.0
    %82 = vmatpush1.msra.mxu0 0.0
    %83 = vmatprep.subr.mxu0 0.0
    %84 = vmatpush1.msra.mxu0 0.0
    %85 = vmatprep.subr.mxu0 0.0
    %86 = vmatpush1.msra.mxu0 0.0
    %87 = vmatprep.subr.mxu0 0.0
    %88 = vmatpush1.msra.mxu0 0.0
    %89 = vmatprep.subr.mxu0 0.0
    %90 = vmatpush1.msra.mxu0 0.0
    %91 = vmatprep.subr.mxu0 0.0
    %92 = vmatpush1.msra.mxu0 0.0
    %93 = vmatprep.subr.mxu0 0.0
    %94 = vmatpush1.msra.mxu0 0.0
    %95 = vmatprep.subr.mxu0 0.0
    %96 = vmatpush1.msra.mxu0 0.0
    %97 = vmatprep.subr.mxu0 0.0
    %98 = vmatpush1.msra.mxu0 0.0
    %99 = vmatprep.subr.mxu0 0.0
    %100 = vmatpush1.msra.mxu0 0.0
    %101 = vmatprep.subr.mxu0 0.0
    %102 = vmatpush1.msra.mxu0 0.0
    %103 = vmatprep.subr.mxu0 0.0
    %104 = vmatpush1.msra.mxu0 0.0
    %105 = vmatprep.subr.mxu0 0.0
    %106 = vmatpush1.msra.mxu0 0.0
    %107 = vmatprep.subr.mxu0 0.0
    %108 = vmatpush1.msra.mxu0 0.0
    %109 = vmatprep.subr.mxu0 0.0
    %110 = vmatpush1.msra.mxu0 0.0
    %111 = vmatprep.subr.mxu0 0.0
    %112 = vmatpush1.msra.mxu0 0.0
    %113 = vmatprep.mubr.f32.mxu0 0.0
    %114 = vmatmul.mubr.f32.gmra.mrb[0].mxu0 %v38
    %v115 = vpop.f32.mrb[0].mxu0
    %v116 = vadd.f32 0.0, %v115
    %v117 = vpop.f32.mrb[0].mxu0
    %118 = vmatprep.mubr.f32.mxu0 0.0
    %119 = vmatmul.mubr.f32.gmra.mrb[0].mxu0 %v41
    %v120 = vpop.f32.mrb[0].mxu0
    %v121 = vadd.f32 0.0, %v120
    %v122 = vpop.f32.mrb[0].mxu0
    %123 = vmatprep.mubr.f32.mxu0 0.0
    %124 = vmatmul.mubr.f32.gmra.mrb[0].mxu0 %v44
    %v125 = vpop.f32.mrb[0].mxu0
    %v126 = vadd.f32 0.0, %v125
    %v127 = vpop.f32.mrb[0].mxu0
    %128 = vmatprep.mubr.f32.mxu0 0.0
    %129 = vmatmul.mubr.f32.gmra.mrb[0].mxu0 %v47
    %v130 = vpop.f32.mrb[0].mxu0
    %v131 = vadd.f32 0.0, %v130
    %v132 = vpop.f32.mrb[0].mxu0
    %133 = vdwg.mxu0
    %v134 = vadd.f32 %v24, %v116
    %v135 = vadd.f32 %v25, %v121
    %v136 = vadd.f32 %v26, %v126
    %v137 = vadd.f32 %v27, %v131
    %138 = vst.msk [vmem:[#allocation2] sm:$0xff] %vm36, %v134
    %139 = vst.msk [vmem:[#allocation2 + $0x8] sm:$0xff] %vm36, %v135
    %140 = vst.msk [vmem:[#allocation2 + $0x10] sm:$0xff] %vm36, %v136
    %141 = vst.msk [vmem:[#allocation2 + $0x18] sm:$0xff] %vm36, %v137
    // Predicated region
    $region18: #{neighborhood_attention_1d.5} parent=1 // pred_check
      %p142 = pneg %p15
    $region19: #{neighborhood_attention_1d.5} parent=1 // pred_check_branch
      %144 = sbr.rel (%p142) target = $region21
    $region20: #{neighborhood_attention_1d.5} parent=1 // pred_region
      %v145 = vld [vmem:[#allocation2] sm:$0xff]
      %v146 = vld [vmem:[#allocation2 + $0x8] sm:$0xff]
      %v147 = vld [vmem:[#allocation2 + $0x10] sm:$0xff]
      %v148 = vld [vmem:[#allocation2 + $0x18] sm:$0xff]
      %v149 = vld [vmem:[%s2] sm:$0x1]
      %v151 = vlaneseq
      %v152 = vshrl.u32 %v151, 7
      %v153 = vsub.s32 0, %v152
      %v154 = vrot.slane %v149, %v153
      %v156 = vadd.f32 %v145, %v154
      %v157 = vadd.f32 %v146, %v154
      %v158 = vadd.f32 %v147, %v154
      %v159 = vadd.f32 %v148, %v154
      %160 = vst.msk [vmem:[#allocation3] sm:$0xff] %vm36, %v156
      %161 = vst.msk [vmem:[#allocation3 + $0x8] sm:$0xff] %vm36, %v157
      %162 = vst.msk [vmem:[#allocation3 + $0x10] sm:$0xff] %vm36, %v158
      %163 = vst.msk [vmem:[#allocation3 + $0x18] sm:$0xff] %vm36, %v159
    $region21: #{neighborhood_attention_1d.5} parent=1 // pred_fallthru
      _
    // Predicated region
    $region22: #{neighborhood_attention_1d.5} parent=1 // pred_check
      _
    $region23: #{neighborhood_attention_1d.5} parent=1 // pred_check_branch
      %165 = sbr.rel (0) target = $region25
    $region24: #{neighborhood_attention_1d.5} parent=1 // pred_region
      %s167 = ssub.s32 512, 512
      %168 = vsyncadd [#allocation4], %s167
      %s169 = sshll.u32 [#allocation3], 4
      %s170 = int_to_ptr.vmem [resolvable:$true] %s169
      %175 = dma.vmem_to_hbm [thread:$0]  %s170, 512, %s3, [#allocation4], 128, 128, 8
    $region25: #{neighborhood_attention_1d.5} parent=1 // pred_fallthru
      _
    // Predicated region
    $region26: #{neighborhood_attention_1d.5} parent=1 // pred_check
      _
    $region27: #{neighborhood_attention_1d.5} parent=1 // pred_check_branch
      %177 = sbr.rel (0) target = $region29
    $region28: #{neighborhood_attention_1d.5} parent=1 // pred_region
      %178 = dma.done [#allocation4], 512
    $region29: #{neighborhood_attention_1d.5} parent=1 // pred_fallthru
      _
    %179 = vsyncpa [#allocation4], 1

// kernel: neighborhood_attention_1d.4
$region0: #{neighborhood_attention_1d.4}
  #allocation0 [shape = 'u32[]', space=smem, size = 0x4, offset = 0x4, fixed_abs, tag = 'smem constant byte address 0x4 - core index']
  #allocation1 [shape = 'u32[144,128]{1,0:T(1,128)}', space=vmem, size = 0x12000, scoped, tag = 'internal scratch']
  #allocation2 [shape = 'f32[16,4]{1,0:T(8,128)}', space=vmem, size = 0x2000, scoped, tag = 'scratch operand']
  #allocation3 [shape = 'f32[16,4]{1,0:T(8,128)}', space=vmem, size = 0x2000, scoped, tag = 'scratch operand']
  #allocation4 [shape = 'f32[16,32]{1,0:T(8,128)}', space=vmem, size = 0x2000, scoped, tag = 'scratch operand']
  %s0 = inlined_call_operand.vmem [shape: f32[2,16,32], index: 0, kind: input, shape index: {}]
  %s1 = inlined_call_operand.vmem [shape: f32[2,16,32], index: 1, kind: input, shape index: {}]
  %s2 = inlined_call_operand.vmem [shape: f32[2,16,32], index: 2, kind: input, shape index: {}]
  %s3 = inlined_call_operand.vmem [shape: f32[4,9], index: 3, kind: input, shape index: {}]
  %s4 = inlined_call_operand.vmem [shape: f32[2,16,32], index: 4, kind: output, shape index: {}]
  %s5 = sld [smem:[#allocation0]]
  $region65: #{neighborhood_attention_1d.4} parent=0
    _
  %s7 = ssub.s32 1, %s5
  %s8 = scalar_select 0, %s7, %s5
  $region1: #{neighborhood_attention_1d.4} parent=0
    #allocation5 [shape = 'u8[2048]{0}', space=smem, size = 0x800, scoped, tag = 'input window, operand 3, single buffered']
    #allocation6 [shape = 's32[2]{0}', space=sflag, size = 0x8, scoped, tag = 'scoped memory for neighborhood_attention_1d.4']
    %9 = vsyncpa [#allocation6], 0
    loop: start=0, step=1, limit=4
    $region2: #{neighborhood_attention_1d.4} parent=1 // loop_pre_header
      _
    $region3: #{neighborhood_attention_1d.4} parent=1 // loop_header
      %s11 = sphi 0, %s15
      %p12 = scmp.ge.s32.totalorder %s11, 4
      %s18 = sphi 0, %s37
      %s19 = sphi 0, %s33
      %s20 = sphi 0, %s29
      %s21 = sphi 0, %s18
      %s22 = sphi 0, %s19
      %s23 = sphi 0, %s20
      %s24 = sphi 0, %s21
      %s25 = sphi 0, %s22
      %s26 = sphi 0, %s23
      %s42 = sphi 0, %s44
      %s45 = sphi 0, %s42
      %s46 = sphi 0, %s45
      %s62 = sphi 0, %s46
      %s80 = sphi 0, %s82
      %s83 = sphi 0, %s80
      %s84 = sphi 0, %s83
      %s100 = sphi 0, %s84
      %s118 = sphi 0, %s120
      %s121 = sphi 0, %s118
      %s122 = sphi 0, %s121
      %s138 = sphi 0, %s122
      %s142 = sphi 0, %s142
      %s144 = sphi 0, %s142
      %s145 = sphi 0, %s144
      %s159 = sphi 0, %s145
      %s167 = sphi 0, %s169
      %s170 = sphi 0, %s167
      %s171 = sphi 0, %s170
      %s187 = sphi 0, %s171
    $region4: #{neighborhood_attention_1d.4} parent=1 // loop_header_branch
      %14 = sbr.rel (%p12) target = $region8
    $region5: #{neighborhood_attention_1d.4} parent=1 // loop_body
      %s16 = ssub.s32 %s11, 1
      %s17 = ssub.s32 %s11, 2
      %s27 = sadd.s32 1, %s20
      %p28 = scmp.ge.s32.totalorder %s27, 1
      %s29 = scalar_select %p28, 0, %s27
      %s30 = sadd.s32 1, %s19
      %s31 = scalar_select %p28, %s30, %s19
      %p32 = scmp.ge.s32.totalorder %s31, 1
      %s33 = scalar_select %p32, 0, %s31
      %s34 = sadd.s32 1, %s18
      %s35 = scalar_select %p32, %s34, %s18
      %p36 = scmp.ge.s32.totalorder %s35, 2
      %s37 = scalar_select %p36, 0, %s35
      %s38 = ssub.s32 %s18, %s37
      %s39 = ssub.s32 %s19, %s33
      %s40 = sor.u32 %s38, %s39
      %p41 = scmp.eq.s32.totalorder %s40, 0
      %s43 = sadd.s32 %s42, 1
      %s44 = scalar_select %p41, %s42, %s43
      %p47 = pneg %p41
      %p48 = scmp.eq.s32.totalorder %s11, 1
      %p49 = por %p47, %p48
      %p50 = scmp.ne.s32.totalorder %s42, %s45
      %p51 = scmp.eq.s32.totalorder %s11, 0
      %p52 = por %p50, %p51
      %p53 = scmp.ne.s32.totalorder %s42, %s45
      %p54 = scmp.eq.s32.totalorder %s16, 1
      %p55 = por %p53, %p54
      %p56 = scmp.ne.s32.totalorder %s45, %s46
      %p57 = scmp.eq.s32.totalorder %s16, 0
      %p58 = por %p56, %p57
      %p59 = scmp.ne.s32.totalorder %s45, %s46
      %p60 = scmp.eq.s32.totalorder %s17, 1
      %p61 = por %p59, %p60
      %p63 = scmp.ne.s32.totalorder %s46, %s62
      %p64 = scmp.eq.s32.totalorder %s17, 0
      %p65 = por %p63, %p64
      %s66 = sadd.s32 %s19, %s20
      %p67 = scmp.gt.s32.totalorder %s66, 0
      %s68 = scalar_select %p67, %s66, 0
      %p69 = scmp.lt.s32.totalorder %s68, 0
      %s70 = scalar_select %p69, %s68, 0
      %s71 = sadd.s32 %s33, %s29
      %p72 = scmp.gt.s32.totalorder %s71, 0
      %s73 = scalar_select %p72, %s71, 0
      %p74 = scmp.lt.s32.totalorder %s73, 0
      %s75 = scalar_select %p74, %s73, 0
      %s76 = ssub.s32 %s18, %s37
      %s77 = ssub.s32 %s70, %s75
      %s78 = sor.u32 %s76, %s77
      %p79 = scmp.eq.s32.totalorder %s78, 0
      %s81 = sadd.s32 %s80, 1
      %s82 = scalar_select %p79, %s80, %s81
      %p85 = pneg %p79
      %p86 = scmp.eq.s32.totalorder %s11, 1
      %p87 = por %p85, %p86
      %p88 = scmp.ne.s32.totalorder %s80, %s83
      %p89 = scmp.eq.s32.totalorder %s11, 0
      %p90 = por %p88, %p89
      %p91 = scmp.ne.s32.totalorder %s80, %s83
      %p92 = scmp.eq.s32.totalorder %s16, 1
      %p93 = por %p91, %p92
      %p94 = scmp.ne.s32.totalorder %s83, %s84
      %p95 = scmp.eq.s32.totalorder %s16, 0
      %p96 = por %p94, %p95
      %p97 = scmp.ne.s32.totalorder %s83, %s84
      %p98 = scmp.eq.s32.totalorder %s17, 1
      %p99 = por %p97, %p98
      %p101 = scmp.ne.s32.totalorder %s84, %s100
      %p102 = scmp.eq.s32.totalorder %s17, 0
      %p103 = por %p101, %p102
      %s104 = sadd.s32 %s19, %s20
      %p105 = scmp.gt.s32.totalorder %s104, 0
      %s106 = scalar_select %p105, %s104, 0
      %p107 = scmp.lt.s32.totalorder %s106, 0
      %s108 = scalar_select %p107, %s106, 0
      %s109 = sadd.s32 %s33, %s29
      %p110 = scmp.gt.s32.totalorder %s109, 0
      %s111 = scalar_select %p110, %s109, 0
      %p112 = scmp.lt.s32.totalorder %s111, 0
      %s113 = scalar_select %p112, %s111, 0
      %s114 = ssub.s32 %s18, %s37
      %s115 = ssub.s32 %s108, %s113
      %s116 = sor.u32 %s114, %s115
      %p117 = scmp.eq.s32.totalorder %s116, 0
      %s119 = sadd.s32 %s118, 1
      %s120 = scalar_select %p117, %s118, %s119
      %p123 = pneg %p117
      %p124 = scmp.eq.s32.totalorder %s11, 1
      %p125 = por %p123, %p124
      %p126 = scmp.ne.s32.totalorder %s118, %s121
      %p127 = scmp.eq.s32.totalorder %s11, 0
      %p128 = por %p126, %p127
      %p129 = scmp.ne.s32.totalorder %s118, %s121
      %p130 = scmp.eq.s32.totalorder %s16, 1
      %p131 = por %p129, %p130
      %p132 = scmp.ne.s32.totalorder %s121, %s122
      %p133 = scmp.eq.s32.totalorder %s16, 0
      %p134 = por %p132, %p133
      %p135 = scmp.ne.s32.totalorder %s121, %s122
      %p136 = scmp.eq.s32.totalorder %s17, 1
      %p137 = por %p135, %p136
      %p139 = scmp.ne.s32.totalorder %s122, %s138
      %p140 = scmp.eq.s32.totalorder %s17, 0
      %p141 = por %p139, %p140
      %s143 = sadd.s32 %s142, 1
      %p146 = scmp.eq.s32.totalorder %s11, 1
      %p147 = scmp.ne.s32.totalorder %s142, %s144
      %p148 = scmp.eq.s32.totalorder %s11, 0
      %p149 = por %p147, %p148
      %p150 = scmp.ne.s32.totalorder %s142, %s144
      %p151 = scmp.eq.s32.totalorder %s16, 1
      %p152 = por %p150, %p151
      %p153 = scmp.ne.s32.totalorder %s144, %s145
      %p154 = scmp.eq.s32.totalorder %s16, 0
      %p155 = por %p153, %p154
      %p156 = scmp.ne.s32.totalorder %s144, %s145
      %p157 = scmp.eq.s32.totalorder %s17, 1
      %p158 = por %p156, %p157
      %p160 = scmp.ne.s32.totalorder %s145, %s159
      %p161 = scmp.eq.s32.totalorder %s17, 0
      %p162 = por %p160, %p161
      %s163 = ssub.s32 %s18, %s37
      %s164 = ssub.s32 %s19, %s33
      %s165 = sor.u32 %s163, %s164
      %p166 = scmp.eq.s32.totalorder %s165, 0
      %s168 = sadd.s32 %s167, 1
      %s169 = scalar_select %p166, %s167, %s168
      %p172 = pneg %p166
      %p173 = scmp.eq.s32.totalorder %s11, 1
      %p174 = por %p172, %p173
      %p175 = scmp.ne.s32.totalorder %s167, %s170
      %p176 = scmp.eq.s32.totalorder %s11, 0
      %p177 = por %p175, %p176
      %p178 = scmp.ne.s32.totalorder %s167, %s170
      %p179 = scmp.eq.s32.totalorder %s16, 1
      %p180 = por %p178, %p179
      %p181 = scmp.ne.s32.totalorder %s170, %s171
      %p182 = scmp.eq.s32.totalorder %s16, 0
      %p183 = por %p181, %p182
      %p184 = scmp.ne.s32.totalorder %s170, %s171
      %p185 = scmp.eq.s32.totalorder %s17, 1
      %p186 = por %p184, %p185
      %p188 = scmp.ne.s32.totalorder %s171, %s187
      %p189 = scmp.eq.s32.totalorder %s17, 0
      %p190 = por %p188, %p189
      %p191 = scmp.le.s32.totalorder 1, %s11
      %p192 = scmp.lt.s32.totalorder %s11, 3
      %p193 = pnand %p191, %p192
      %p194 = pneg %p193
      // Predicated region
      $region9: #{neighborhood_attention_1d.4} parent=5 // pred_check
        _
      $region10: #{neighborhood_attention_1d.4} parent=5 // pred_check_branch
        %196 = sbr.rel (%p193) target = $region12
      $region11: #{neighborhood_attention_1d.4} parent=5 // pred_region
        %s197 = ssub.s32 %s11, 1
        // Predicated region
        $region13: #{neighborhood_attention_1d.4} parent=11 // pred_check
          %p198 = pneg %p155
        $region14: #{neighborhood_attention_1d.4} parent=11 // pred_check_branch
          %200 = sbr.rel (%p198) target = $region16
        $region15: #{neighborhood_attention_1d.4} parent=11 // pred_region
          %s202 = ssub.s32 64, 64
          %203 = vsyncadd [#allocation6], %s202
          %s205 = sshll.u32 %s3, 4
          %s206 = int_to_ptr.vmem [resolvable:$true] %s205
          %208 = dma.vmem_to_smem %s206, 64, [#allocation5], [#allocation6]
        $region16: #{neighborhood_attention_1d.4} parent=11 // pred_fallthru
          _
      $region12: #{neighborhood_attention_1d.4} parent=5 // pred_fallthru
        _
      %p209 = scmp.lt.s32.totalorder %s11, 2
      // Predicated region
      $region17: #{neighborhood_attention_1d.4} parent=5 // pred_check
        %p210 = pneg %p209
      $region18: #{neighborhood_attention_1d.4} parent=5 // pred_check_branch
        %212 = sbr.rel (%p210) target = $region20
      $region19: #{neighborhood_attention_1d.4} parent=5 // pred_region
        // Predicated region
        $region21: #{neighborhood_attention_1d.4} parent=19 // pred_check
          %p213 = pneg %p52
        $region22: #{neighborhood_attention_1d.4} parent=19 // pred_check_branch
          %215 = sbr.rel (%p213) target = $region24
        $region23: #{neighborhood_attention_1d.4} parent=19 // pred_region
          %s216 = smul.u32 2, %s19
          %p217 = scmp.lt.s32.totalorder %s18, 1
          %s218 = scalar_select %p217, %s18, 1
          %p219 = scmp.lt.s32.totalorder %s216, 1
          %s220 = scalar_select %p219, %s216, 1
          %s221 = smul.addr %s218, 2
          %s222 = sadd.s32 %s220, %s221
          %s223 = smul.addr %s222, 8
          %s224 = scalar_lea.vmem %s0, %s223
          %s225 = smul.u32 2, %s19
        $region24: #{neighborhood_attention_1d.4} parent=19 // pred_fallthru
          _
        // Predicated region
        $region25: #{neighborhood_attention_1d.4} parent=19 // pred_check
          %p226 = pneg %p90
        $region26: #{neighborhood_attention_1d.4} parent=19 // pred_check_branch
          %228 = sbr.rel (%p226) target = $region28
        $region27: #{neighborhood_attention_1d.4} parent=19 // pred_region
          %s229 = sadd.s32 %s19, %s20
          %p230 = scmp.gt.s32.totalorder %s229, 0
          %s231 = scalar_select %p230, %s229, 0
          %p232 = scmp.lt.s32.totalorder %s231, 0
          %s233 = scalar_select %p232, %s231, 0
          %s234 = smul.u32 2, %s233
          %p235 = scmp.lt.s32.totalorder %s18, 1
          %s236 = scalar_select %p235, %s18, 1
          %p237 = scmp.lt.s32.totalorder %s234, 1
          %s238 = scalar_select %p237, %s234, 1
          %s239 = smul.addr %s236, 2
          %s240 = sadd.s32 %s238, %s239
          %s241 = smul.addr %s240, 8
          %s242 = scalar_lea.vmem %s1, %s241
          %s243 = sadd.s32 %s19, %s20
          %p244 = scmp.gt.s32.totalorder %s243, 0
          %s245 = scalar_select %p244, %s243, 0
          %p246 = scmp.lt.s32.totalorder %s245, 0
          %s247 = scalar_select %p246, %s245, 0
          %s248 = smul.u32 2, %s247
        $region28: #{neighborhood_attention_1d.4} parent=19 // pred_fallthru
          _
        // Predicated region
        $region29: #{neighborhood_attention_1d.4} parent=19 // pred_check
          %p249 = pneg %p128
        $region30: #{neighborhood_attention_1d.4} parent=19 // pred_check_branch
          %251 = sbr.rel (%p249) target = $region32
        $region31: #{neighborhood_attention_1d.4} parent=19 // pred_region
          %s252 = sadd.s32 %s19, %s20
          %p253 = scmp.gt.s32.totalorder %s252, 0
          %s254 = scalar_select %p253, %s252, 0
          %p255 = scmp.lt.s32.totalorder %s254, 0
          %s256 = scalar_select %p255, %s254, 0
          %s257 = smul.u32 2, %s256
          %p258 = scmp.lt.s32.totalorder %s18, 1
          %s259 = scalar_select %p258, %s18, 1
          %p260 = scmp.lt.s32.totalorder %s257, 1
          %s261 = scalar_select %p260, %s257, 1
          %s262 = smul.addr %s259, 2
          %s263 = sadd.s32 %s261, %s262
          %s264 = smul.addr %s263, 8
          %s265 = scalar_lea.vmem %s2, %s264
          %s266 = sadd.s32 %s19, %s20
          %p267 = scmp.gt.s32.totalorder %s266, 0
          %s268 = scalar_select %p267, %s266, 0
          %p269 = scmp.lt.s32.totalorder %s268, 0
          %s270 = scalar_select %p269, %s268, 0
          %s271 = smul.u32 2, %s270
        $region32: #{neighborhood_attention_1d.4} parent=19 // pred_fallthru
          _
      $region20: #{neighborhood_attention_1d.4} parent=5 // pred_fallthru
        _
      %p272 = scmp.le.s32.totalorder 1, %s11
      %p273 = scmp.lt.s32.totalorder %s11, 3
      %p274 = pnand %p272, %p273
      %p275 = pneg %p274
      // Predicated region
      $region33: #{neighborhood_attention_1d.4} parent=5 // pred_check
        _
      $region34: #{neighborhood_attention_1d.4} parent=5 // pred_check_branch
        %277 = sbr.rel (%p274) target = $region36
      $region35: #{neighborhood_attention_1d.4} parent=5 // pred_region
        %s278 = ssub.s32 %s11, 1
        // Predicated region
        $region37: #{neighborhood_attention_1d.4} parent=35 // pred_check
          %p279 = pneg %p155
        $region38: #{neighborhood_attention_1d.4} parent=35 // pred_check_branch
          %281 = sbr.rel (%p279) target = $region40
        $region39: #{neighborhood_attention_1d.4} parent=35 // pred_region
          %282 = dma.done [#allocation6], 64
        $region40: #{neighborhood_attention_1d.4} parent=35 // pred_fallthru
          _
        %283 = sfence
        %s284 = smul.u32 2, %s22
        %p285 = scmp.lt.s32.totalorder %s21, 1
        %s286 = scalar_select %p285, %s21, 1
        %p287 = scmp.lt.s32.totalorder %s284, 1
        %s288 = scalar_select %p287, %s284, 1
        %s289 = smul.addr %s286, 2
        %s290 = sadd.s32 %s288, %s289
        %s291 = smul.addr %s290, 8
        %s292 = scalar_lea.vmem %s0, %s291
        %p293 = pneg %p58
        %p294 = pneg %p55
        %s295 = sadd.s32 %s22, %s23
        %p296 = scmp.gt.s32.totalorder %s295, 0
        %s297 = scalar_select %p296, %s295, 0
        %p298 = scmp.lt.s32.totalorder %s297, 0
        %s299 = scalar_select %p298, %s297, 0
        %s300 = smul.u32 2, %s299
        %p301 = scmp.lt.s32.totalorder %s21, 1
        %s302 = scalar_select %p301, %s21, 1
        %p303 = scmp.lt.s32.totalorder %s300, 1
        %s304 = scalar_select %p303, %s300, 1
        %s305 = smul.addr %s302, 2
        %s306 = sadd.s32 %s304, %s305
        %s307 = smul.addr %s306, 8
        %s308 = scalar_lea.vmem %s1, %s307
        %p309 = pneg %p96
        %p310 = pneg %p93
        %s311 = sadd.s32 %s22, %s23
        %p312 = scmp.gt.s32.totalorder %s311, 0
        %s313 = scalar_select %p312, %s311, 0
        %p314 = scmp.lt.s32.totalorder %s313, 0
        %s315 = scalar_select %p314, %s313, 0
        %s316 = smul.u32 2, %s315
        %p317 = scmp.lt.s32.totalorder %s21, 1
        %s318 = scalar_select %p317, %s21, 1
        %p319 = scmp.lt.s32.totalorder %s316, 1
        %s320 = scalar_select %p319, %s316, 1
        %s321 = smul.addr %s318, 2
        %s322 = sadd.s32 %s320, %s321
        %s323 = smul.addr %s322, 8
        %s324 = scalar_lea.vmem %s2, %s323
        %p325 = pneg %p134
        %p326 = pneg %p131
        %p327 = pneg %p155
        %p328 = pneg %p152
        %p329 = pneg %p183
        %p330 = pneg %p180
        %s331 = smul.u32 2, %s22
        %p332 = scmp.lt.s32.totalorder %s21, 1
        %s333 = scalar_select %p332, %s21, 1
        %p334 = scmp.lt.s32.totalorder %s331, 1
        %s335 = scalar_select %p334, %s331, 1
        %s336 = smul.addr %s333, 2
        %s337 = sadd.s32 %s335, %s336
        %s338 = smul.addr %s337, 8
        %s339 = scalar_lea.vmem %s4, %s338
        %s340 = smul.u32 2, %s22
        %p341 = scmp.lt.s32.totalorder %s21, 1
        %s342 = scalar_select %p341, %s21, 1
        %p343 = scmp.lt.s32.totalorder %s340, 1
        %s344 = scalar_select %p343, %s340, 1
        %s345 = smul.addr %s342, 2
        %s346 = sadd.s32 %s344, %s345
        %s347 = smul.addr %s346, 8
        %s348 = scalar_lea.vmem %s0, %s347
        %s349 = smul.u32 2, %s22
        %s350 = sadd.s32 %s22, %s23
        %p351 = scmp.gt.s32.totalorder %s350, 0
        %s352 = scalar_select %p351, %s350, 0
        %p353 = scmp.lt.s32.totalorder %s352, 0
        %s354 = scalar_select %p353, %s352, 0
        %s355 = smul.u32 2, %s354
        %p356 = scmp.lt.s32.totalorder %s21, 1
        %s357 = scalar_select %p356, %s21, 1
        %p358 = scmp.lt.s32.totalorder %s355, 1
        %s359 = scalar_select %p358, %s355, 1
        %s360 = smul.addr %s357, 2
        %s361 = sadd.s32 %s359, %s360
        %s362 = smul.addr %s361, 8
        %s363 = scalar_lea.vmem %s1, %s362
        %s364 = sadd.s32 %s22, %s23
        %p365 = scmp.gt.s32.totalorder %s364, 0
        %s366 = scalar_select %p365, %s364, 0
        %p367 = scmp.lt.s32.totalorder %s366, 0
        %s368 = scalar_select %p367, %s366, 0
        %s369 = smul.u32 2, %s368
        %s370 = sadd.s32 %s22, %s23
        %p371 = scmp.gt.s32.totalorder %s370, 0
        %s372 = scalar_select %p371, %s370, 0
        %p373 = scmp.lt.s32.totalorder %s372, 0
        %s374 = scalar_select %p373, %s372, 0
        %s375 = smul.u32 2, %s374
        %p376 = scmp.lt.s32.totalorder %s21, 1
        %s377 = scalar_select %p376, %s21, 1
        %p378 = scmp.lt.s32.totalorder %s375, 1
        %s379 = scalar_select %p378, %s375, 1
        %s380 = smul.addr %s377, 2
        %s381 = sadd.s32 %s379, %s380
        %s382 = smul.addr %s381, 8
        %s383 = scalar_lea.vmem %s2, %s382
        %s384 = sadd.s32 %s22, %s23
        %p385 = scmp.gt.s32.totalorder %s384, 0
        %s386 = scalar_select %p385, %s384, 0
        %p387 = scmp.lt.s32.totalorder %s386, 0
        %s388 = scalar_select %p387, %s386, 0
        %s389 = smul.u32 2, %s388
        %s390 = smul.u32 2, %s22
        %p391 = scmp.lt.s32.totalorder %s21, 1
        %s392 = scalar_select %p391, %s21, 1
        %p393 = scmp.lt.s32.totalorder %s390, 1
        %s394 = scalar_select %p393, %s390, 1
        %s395 = smul.addr %s392, 2
        %s396 = sadd.s32 %s394, %s395
        %s397 = smul.addr %s396, 8
        %s398 = scalar_lea.vmem %s4, %s397
        %s399 = smul.u32 2, %s22
        %p400 = scmp.eq.s32.totalorder %s23, 0
        // Predicated region
        $region41: #{neighborhood_attention_1d.4} parent=35 // pred_check
          %p401 = pneg %p400
        $region42: #{neighborhood_attention_1d.4} parent=35 // pred_check_branch
          %403 = sbr.rel (%p401) target = $region44
        $region43: #{neighborhood_attention_1d.4} parent=35 // pred_region
          %vm404 = vcmask 31744
          %405 = vst.msk [vmem:[#allocation2] sm:$0xff] %vm404, -1e+30
          %406 = vst.msk [vmem:[#allocation2 + $0x8] sm:$0xff] %vm404, -1e+30
          %407 = vst.msk [vmem:[#allocation3] sm:$0xff] %vm404, 0.0
          %408 = vst.msk [vmem:[#allocation3 + $0x8] sm:$0xff] %vm404, 0.0
          %vm409 = vcmask 261120
          %410 = vst.msk [vmem:[#allocation4] sm:$0xff] %vm409, 0.0
          %411 = vst.msk [vmem:[#allocation4 + $0x8] sm:$0xff] %vm409, 0.0
        $region44: #{neighborhood_attention_1d.4} parent=35 // pred_fallthru
          _
        %s412 = sadd.s32 %s22, %s23
        %p413 = scmp.ge.s32.totalorder %s412, 0
        %p414 = scmp.lt.s32.totalorder %s412, 1
        %p415 = pnand %p413, %p414
        %p416 = pneg %p415
        // Predicated region
        $region45: #{neighborhood_attention_1d.4} parent=35 // pred_check
          _
        $region46: #{neighborhood_attention_1d.4} parent=35 // pred_check_branch
          %418 = sbr.rel (%p415) target = $region48
        $region47: #{neighborhood_attention_1d.4} parent=35 // pred_region
          %s419 = smul.u32 %s22, 16
          %v420 = vlaneseq
          %v421 = vshrl.u32 %v420, 7
          %v422 = vadd.s32 %v421, 8
          %v423 = vstv %s419
          %v424 = vadd.s32 %v423, %v421
          %v425 = vadd.s32 %v423, %v422
          %s426 = smul.u32 %s412, 16
          %v427 = vlaneseq
          %v428 = vand.u32 %v427, 127
          %v429 = vstv %s426
          %v430 = vadd.s32 %v429, %v428
          %v431 = vsub.s32 %v424, 2
          %v432 = vsub.s32 %v425, 2
          %vm433 = vcmp.gt.s32.totalorder %v431, 0
          %v434 = vsel %vm433, %v431, 0
          %vm435 = vcmp.gt.s32.totalorder %v432, 0
          %v436 = vsel %vm435, %v432, 0
          %v437 = vadd.s32 %v424, 2
          %v438 = vadd.s32 %v425, 2
          %vm439 = vcmp.ge.s32.totalorder %v437, 16
          %vm440 = vcmp.ge.s32.totalorder %v438, 16
          %v441 = vsub.s32 16, %v424
          %v442 = vsub.s32 16, %v425
          %v443 = vsub.s32 %v441, 2
          %v444 = vsub.s32 %v442, 2
          %v445 = vsub.s32 %v443, 1
          %v446 = vsub.s32 %v444, 1
          %v447 = vsel %vm439, %v445, 0
          %v448 = vsel %vm440, %v446, 0
          %v449 = vadd.s32 %v434, %v447
          %v450 = vadd.s32 %v436, %v448
          %vm451 = vcmp.lt.s32.totalorder %v424, 2
          %vm452 = vcmp.lt.s32.totalorder %v425, 2
          %v453 = vsub.s32 2, %v424
          %v454 = vsub.s32 2, %v425
          %v455 = vsel %vm451, %v453, 0
          %v456 = vsel %vm452, %v454, 0
          %v457 = vadd.s32 %v455, 2
          %v458 = vadd.s32 %v456, 2
          %v459 = vsub.s32 %v441, 1
          %v460 = vsub.s32 %v442, 1
          %v461 = vsub.s32 %v459, 2
          %v462 = vsub.s32 %v460, 2
          %v463 = vsel %vm439, %v461, 0
          %v464 = vsel %vm440, %v462, 0
          %v465 = vadd.s32 %v457, %v463
          %v466 = vadd.s32 %v458, %v464
          %v467 = vsub.s32 %v430, %v449
          %v468 = vsub.s32 %v430, %v450
          %vm469 = vcmp.ge.s32.totalorder %v467, 0
          %vm470 = vcmp.ge.s32.totalorder %v468, 0
          %vm471 = vcmp.le.s32.totalorder %v467, 4
          %vm472 = vcmp.le.s32.totalorder %v468, 4
          %vm473 = vmand %vm469, %vm471
          %vm474 = vmand %vm470, %vm472
          %v475 = vadd.s32 %v465, %v467
          %v476 = vadd.s32 %v466, %v468
          %v477 = vsel %vm473, %v475, 4294967295
          %v478 = vsel %vm474, %v476, 4294967295
          %v479 = vld [vmem:[#allocation2] sm:$0xff]
          %v480 = vld [vmem:[#allocation2 + $0x8] sm:$0xff]
          %v481 = vld [vmem:[#allocation3] sm:$0xff]
          %v482 = vld [vmem:[#allocation3 + $0x8] sm:$0xff]
          %v483 = vld [vmem:[#allocation4] sm:$0xff]
          %v484 = vld [vmem:[#allocation4 + $0x8] sm:$0xff]
          %v485 = vld [vmem:[%s348] sm:$0xff]
          %v486 = vld [vmem:[%s348 + $0x8] sm:$0xff]
          %v487 = vld [vmem:[%s363] sm:$0xff]
          %v488 = vld [vmem:[%s363 + $0x8] sm:$0xff]
          %v489 = vld [vmem:[%s383] sm:$0xff]
          %v490 = vld [vmem:[%s383 + $0x8] sm:$0xff]
          %vm491 = vcmp.eq.s32.totalorder %v477, 0
          %vm492 = vcmp.eq.s32.totalorder %v478, 0
          %s493 = sld [smem:[#allocation5]]
          %v494 = vstv %s493
          %v495 = vsel %vm491, %v494, -1e+30
          %v496 = vsel %vm492, %v494, -1e+30
          %vm497 = vcmp.eq.s32.totalorder %v477, 1
          %vm498 = vcmp.eq.s32.totalorder %v478, 1
          %s499 = sld [smem:[#allocation5 + $0x1]]
          %v500 = vstv %s499
          %v501 = vsel %vm497, %v500, %v495
          %v502 = vsel %vm498, %v500, %v496
          %vm503 = vcmp.eq.s32.totalorder %v477, 2
          %vm504 = vcmp.eq.s32.totalorder %v478, 2
          %s505 = sld [smem:[#allocation5 + $0x2]]
          %v506 = vstv %s505
          %v507 = vsel %vm503, %v506, %v501
          %v508 = vsel %vm504, %v506, %v502
          %vm509 = vcmp.eq.s32.totalorder %v477, 3
          %vm510 = vcmp.eq.s32.totalorder %v478, 3
          %s511 = sld [smem:[#allocation5 + $0x3]]
          %v512 = vstv %s511
          %v513 = vsel %vm509, %v512, %v507
          %v514 = vsel %vm510, %v512, %v508
          %vm515 = vcmp.eq.s32.totalorder %v477, 4
          %vm516 = vcmp.eq.s32.totalorder %v478, 4
          %s517 = sld [smem:[#allocation5 + $0x4]]
          %v518 = vstv %s517
          %v519 = vsel %vm515, %v518, %v513
          %v520 = vsel %vm516, %v518, %v514
          %vm521 = vcmp.eq.s32.totalorder %v477, 5
          %vm522 = vcmp.eq.s32.totalorder %v478, 5
          %s523 = sld [smem:[#allocation5 + $0x5]]
          %v524 = vstv %s523
          %v525 = vsel %vm521, %v524, %v519
          %v526 = vsel %vm522, %v524, %v520
          %vm527 = vcmp.eq.s32.totalorder %v477, 6
          %vm528 = vcmp.eq.s32.totalorder %v478, 6
          %s529 = sld [smem:[#allocation5 + $0x6]]
          %v530 = vstv %s529
          %v531 = vsel %vm527, %v530, %v525
          %v532 = vsel %vm528, %v530, %v526
          %vm533 = vcmp.eq.s32.totalorder %v477, 7
          %vm534 = vcmp.eq.s32.totalorder %v478, 7
          %s535 = sld [smem:[#allocation5 + $0x7]]
          %v536 = vstv %s535
          %v537 = vsel %vm533, %v536, %v531
          %v538 = vsel %vm534, %v536, %v532
          %vm539 = vcmp.eq.s32.totalorder %v477, 8
          %vm540 = vcmp.eq.s32.totalorder %v478, 8
          %s541 = sld [smem:[#allocation5 + $0x8]]
          %v542 = vstv %s541
          %v543 = vsel %vm539, %v542, %v537
          %v544 = vsel %vm540, %v542, %v538
          %vm545 = vcmask 64512
          %v547 = vsel %vm545, %v485, 0
          %v550 = vsel %vm545, %v486, 0
          %v553 = vsel %vm545, %v487, 0
          %v556 = vsel %vm545, %v488, 0
          %558 = vmatprep.subr.mxu0 0.0
          %559 = vmatpush1.xpose.msra.mxu0 %v553
          %560 = vmatprep.subr.mxu0 0.0
          %561 = vmatpush1.xpose.msra.mxu0 %v556
          %562 = vmatprep.subr.mxu0 0.0
          %563 = vmatpush1.xpose.msra.mxu0 0.0
          %564 = vmatprep.subr.mxu0 0.0
          %565 = vmatpush1.xpose.msra.mxu0 0.0
          %566 = vmatprep.subr.mxu0 0.0
          %567 = vmatpush1.xpose.msra.mxu0 0.0
          %568 = vmatprep.subr.mxu0 0.0
          %569 = vmatpush1.xpose.msra.mxu0 0.0
          %570 = vmatprep.subr.mxu0 0.0
          %571 = vmatpush1.xpose.msra.mxu0 0.0
          %572 = vmatprep.subr.mxu0 0.0
          %573 = vmatpush1.xpose.msra.mxu0 0.0
          %574 = vmatprep.subr.mxu0 0.0
          %575 = vmatpush1.xpose.msra.mxu0 0.0
          %576 = vmatprep.subr.mxu0 0.0
          %577 = vmatpush1.xpose.msra.mxu0 0.0
          %578 = vmatprep.subr.mxu0 0.0
          %579 = vmatpush1.xpose.msra.mxu0 0.0
          %580 = vmatprep.subr.mxu0 0.0
          %581 = vmatpush1.xpose.msra.mxu0 0.0
          %582 = vmatprep.subr.mxu0 0.0
          %583 = vmatpush1.xpose.msra.mxu0 0.0
          %584 = vmatprep.subr.mxu0 0.0
          %585 = vmatpush1.xpose.msra.mxu0 0.0
          %586 = vmatprep.subr.mxu0 0.0
          %587 = vmatpush1.xpose.msra.mxu0 0.0
          %588 = vmatprep.subr.mxu0 0.0
          %589 = vmatpush1.xpose.msra.mxu0 0.0
          %590 = vmatprep.subr.mxu0 0.0
          %591 = vmatpush1.xpose.msra.mxu0 0.0
          %592 = vmatprep.subr.mxu0 0.0
          %593 = vmatpush1.xpose.msra.mxu0 0.0
          %594 = vmatprep.subr.mxu0 0.0
          %595 = vmatpush1.xpose.msra.mxu0 0.0
          %596 = vmatprep.subr.mxu0 0.0
          %597 = vmatpush1.xpose.msra.mxu0 0.0
          %598 = vmatprep.subr.mxu0 0.0
          %599 = vmatpush1.xpose.msra.mxu0 0.0
          %600 = vmatprep.subr.mxu0 0.0
          %601 = vmatpush1.xpose.msra.mxu0 0.0
          %602 = vmatprep.subr.mxu0 0.0
          %603 = vmatpush1.xpose.msra.mxu0 0.0
          %604 = vmatprep.subr.mxu0 0.0
          %605 = vmatpush1.xpose.msra.mxu0 0.0
          %606 = vmatprep.subr.mxu0 0.0
          %607 = vmatpush1.xpose.msra.mxu0 0.0
          %608 = vmatprep.subr.mxu0 0.0
          %609 = vmatpush1.xpose.msra.mxu0 0.0
          %610 = vmatprep.subr.mxu0 0.0
          %611 = vmatpush1.xpose.msra.mxu0 0.0
          %612 = vmatprep.subr.mxu0 0.0
          %613 = vmatpush1.xpose.msra.mxu0 0.0
          %614 = vmatprep.subr.mxu0 0.0
          %615 = vmatpush1.xpose.msra.mxu0 0.0
          %616 = vmatprep.subr.mxu0 0.0
          %617 = vmatpush1.xpose.msra.mxu0 0.0
          %618 = vmatprep.subr.mxu0 0.0
          %619 = vmatpush1.xpose.msra.mxu0 0.0
          %620 = vmatprep.subr.mxu0 0.0
          %621 = vmatpush1.xpose.msra.mxu0 0.0
          %622 = vmatprep.mubr.f32.mxu0 0.0
          %623 = vmatmul.mubr.f32.gmra.mrb[0].mxu0 %v547
          %v624 = vpop.f32.mrb[0].mxu0
          %v625 = vadd.f32 %v543, %v624
          %v626 = vpop.f32.mrb[0].mxu0
          %627 = vmatprep.mubr.f32.mxu0 0.0
          %628 = vmatmul.mubr.f32.gmra.mrb[0].mxu0 %v550
          %v629 = vpop.f32.mrb[0].mxu0
          %v630 = vadd.f32 %v544, %v629
          %v631 = vpop.f32.mrb[0].mxu0
          %632 = vdwg.mxu0
          %vm633 = vcmask 130048
          %v634 = vsel %vm633, %v625, -inf
          %635 = vmax.xlane.f32.xlu0 %v634
          %v636 = vpop.xlane.xlu0 %635
          %v637 = vsel %vm633, %v630, -inf
          %638 = vmax.xlane.f32.xlu0 %v637
          %v639 = vpop.xlane.xlu0 %638
          %v640 = vmax.f32 %v479, %v636
          %v641 = vmax.f32 %v480, %v639
          %v642 = vsub.f32 %v479, %v640
          %v643 = vsub.f32 %v480, %v641
          %v644 = vmul.f32 %v642, 1.442695
          %v645 = vpow.pop %v644
          %v646 = vmul.f32 %v643, 1.442695
          %v647 = vpow.pop %v646
          %649 = vset.pattern.permute.xlu0 0
          %650 = vperm.xlu0 %649, %v640
          %v651 = vpop.permute.xlu0 %650
          %654 = vset.pattern.permute.xlu0 0
          %655 = vperm.xlu0 %654, %v641
          %v656 = vpop.permute.xlu0 %655
          %v658 = vsub.f32 %v625, %v651
          %v659 = vsub.f32 %v630, %v656
          %v660 = vmul.f32 %v658, 1.442695
          %v661 = vpow.pop %v660
          %v662 = vmul.f32 %v659, 1.442695
          %v663 = vpow.pop %v662
          %v664 = vmul.f32 %v645, %v481
          %v665 = vmul.f32 %v647, %v482
          %v666 = vsel %vm633, %v661, 0.0
          %667 = vadd.xlane.f32.xlu0 %v666
          %v668 = vpop.xlane.xlu0 %667
          %v669 = vsel %vm633, %v663, 0.0
          %670 = vadd.xlane.f32.xlu0 %v669
          %v671 = vpop.xlane.xlu0 %670
          %v672 = vadd.f32 %v664, %v668
          %v673 = vadd.f32 %v665, %v671
          %675 = vset.pattern.permute.xlu0 0
          %676 = vperm.xlu0 %675, %v645
          %v677 = vpop.permute.xlu0 %676
          %680 = vset.pattern.permute.xlu0 0
          %681 = vperm.xlu0 %680, %v647
          %v682 = vpop.permute.xlu0 %681
          %v684 = vmul.f32 %v677, %v483
          %v685 = vmul.f32 %v682, %v484
          %v687 = vsel %vm633, %v661, 0
          %v690 = vsel %vm633, %v663, 0
          %692 = vmatprep.subr.mxu0 0.0
          %693 = vmatpush1.msra.mxu0 %v489
          %694 = vmatprep.subr.mxu0 0.0
          %695 = vmatpush1.msra.mxu0 %v490
          %696 = vmatprep.subr.mxu0 0.0
          %697 = vmatpush1.msra.mxu0 0.0
          %698 = vmatprep.subr.mxu0 0.0
          %699 = vmatpush1.msra.mxu0 0.0
          %700 = vmatprep.subr.mxu0 0.0
          %701 = vmatpush1.msra.mxu0 0.0
          %702 = vmatprep.subr.mxu0 0.0
          %703 = vmatpush1.msra.mxu0 0.0
          %704 = vmatprep.subr.mxu0 0.0
          %705 = vmatpush1.msra.mxu0 0.0
          %706 = vmatprep.subr.mxu0 0.0
          %707 = vmatpush1.msra.mxu0 0.0
          %708 = vmatprep.subr.mxu0 0.0
          %709 = vmatpush1.msra.mxu0 0.0
          %710 = vmatprep.subr.mxu0 0.0
          %711 = vmatpush1.msra.mxu0 0.0
          %712 = vmatprep.subr.mxu0 0.0
          %713 = vmatpush1.msra.mxu0 0.0
          %714 = vmatprep.subr.mxu0 0.0
          %715 = vmatpush1.msra.mxu0 0.0
          %716 = vmatprep.subr.mxu0 0.0
          %717 = vmatpush1.msra.mxu0 0.0
          %718 = vmatprep.subr.mxu0 0.0
          %719 = vmatpush1.msra.mxu0 0.0
          %720 = vmatprep.subr.mxu0 0.0
          %721 = vmatpush1.msra.mxu0 0.0
          %722 = vmatprep.subr.mxu0 0.0
          %723 = vmatpush1.msra.mxu0 0.0
          %724 = vmatprep.subr.mxu0 0.0
          %725 = vmatpush1.msra.mxu0 0.0
          %726 = vmatprep.subr.mxu0 0.0
          %727 = vmatpush1.msra.mxu0 0.0
          %728 = vmatprep.subr.mxu0 0.0
          %729 = vmatpush1.msra.mxu0 0.0
          %730 = vmatprep.subr.mxu0 0.0
          %731 = vmatpush1.msra.mxu0 0.0
          %732 = vmatprep.subr.mxu0 0.0
          %733 = vmatpush1.msra.mxu0 0.0
          %734 = vmatprep.subr.mxu0 0.0
          %735 = vmatpush1.msra.mxu0 0.0
          %736 = vmatprep.subr.mxu0 0.0
          %737 = vmatpush1.msra.mxu0 0.0
          %738 = vmatprep.subr.mxu0 0.0
          %739 = vmatpush1.msra.mxu0 0.0
          %740 = vmatprep.subr.mxu0 0.0
          %741 = vmatpush1.msra.mxu0 0.0
          %742 = vmatprep.subr.mxu0 0.0
          %743 = vmatpush1.msra.mxu0 0.0
          %744 = vmatprep.subr.mxu0 0.0
          %745 = vmatpush1.msra.mxu0 0.0
          %746 = vmatprep.subr.mxu0 0.0
          %747 = vmatpush1.msra.mxu0 0.0
          %748 = vmatprep.subr.mxu0 0.0
          %749 = vmatpush1.msra.mxu0 0.0
          %750 = vmatprep.subr.mxu0 0.0
          %751 = vmatpush1.msra.mxu0 0.0
          %752 = vmatprep.subr.mxu0 0.0
          %753 = vmatpush1.msra.mxu0 0.0
          %754 = vmatprep.subr.mxu0 0.0
          %755 = vmatpush1.msra.mxu0 0.0
          %756 = vmatprep.mubr.f32.mxu0 0.0
          %757 = vmatmul.mubr.f32.gmra.mrb[0].mxu0 %v687
          %v758 = vpop.f32.mrb[0].mxu0
          %v759 = vadd.f32 0.0, %v758
          %v760 = vpop.f32.mrb[0].mxu0
          %761 = vmatprep.mubr.f32.mxu0 0.0
          %762 = vmatmul.mubr.f32.gmra.mrb[0].mxu0 %v690
          %v763 = vpop.f32.mrb[0].mxu0
          %v764 = vadd.f32 0.0, %v763
          %v765 = vpop.f32.mrb[0].mxu0
          %766 = vdwg.mxu0
          %v767 = vadd.f32 %v684, %v759
          %v768 = vadd.f32 %v685, %v764
          %s769 = sld [smem:[#allocation5 + $0x80]]
          %v770 = vstv %s769
          %v771 = vsel %vm491, %v770, -1e+30
          %v772 = vsel %vm492, %v770, -1e+30
          %s773 = sld [smem:[#allocation5 + $0x81]]
          %v774 = vstv %s773
          %v775 = vsel %vm497, %v774, %v771
          %v776 = vsel %vm498, %v774, %v772
          %s777 = sld [smem:[#allocation5 + $0x82]]
          %v778 = vstv %s777
          %v779 = vsel %vm503, %v778, %v775
          %v780 = vsel %vm504, %v778, %v776
          %s781 = sld [smem:[#allocation5 + $0x83]]
          %v782 = vstv %s781
          %v783 = vsel %vm509, %v782, %v779
          %v784 = vsel %vm510, %v782, %v780
          %s785 = sld [smem:[#allocation5 + $0x84]]
          %v786 = vstv %s785
          %v787 = vsel %vm515, %v786, %v783
          %v788 = vsel %vm516, %v786, %v784
          %s789 = sld [smem:[#allocation5 + $0x85]]
          %v790 = vstv %s789
          %v791 = vsel %vm521, %v790, %v787
          %v792 = vsel %vm522, %v790, %v788
          %s793 = sld [smem:[#allocation5 + $0x86]]
          %v794 = vstv %s793
          %v795 = vsel %vm527, %v794, %v791
          %v796 = vsel %vm528, %v794, %v792
          %s797 = sld [smem:[#allocation5 + $0x87]]
          %v798 = vstv %s797
          %v799 = vsel %vm533, %v798, %v795
          %v800 = vsel %vm534, %v798, %v796
          %s801 = sld [smem:[#allocation5 + $0x88]]
          %v802 = vstv %s801
          %v803 = vsel %vm539, %v802, %v799
          %v804 = vsel %vm540, %v802, %v800
          %805 = vrot.lane.b32.xlu0 %v485, 120
          %v806 = vpop.permute.xlu0 %805
          %807 = vrot.lane.b32.xlu0 %v486, 120
          %v808 = vpop.permute.xlu0 %807
          %809 = vrot.lane.b32.xlu0 %v487, 120
          %v810 = vpop.permute.xlu0 %809
          %811 = vrot.lane.b32.xlu0 %v488, 120
          %v812 = vpop.permute.xlu0 %811
          %v813 = vsel %vm545, %v806, 0
          %v815 = vsel %vm545, %v808, 0
          %v817 = vsel %vm545, %v810, 0
          %v819 = vsel %vm545, %v812, 0
          %821 = vmatprep.subr.mxu0 0.0
          %822 = vmatpush1.xpose.msra.mxu0 %v817
          %823 = vmatprep.subr.mxu0 0.0
          %824 = vmatpush1.xpose.msra.mxu0 %v819
          %825 = vmatprep.subr.mxu0 0.0
          %826 = vmatpush1.xpose.msra.mxu0 0.0
          %827 = vmatprep.subr.mxu0 0.0
          %828 = vmatpush1.xpose.msra.mxu0 0.0
          %829 = vmatprep.subr.mxu0 0.0
          %830 = vmatpush1.xpose.msra.mxu0 0.0
          %831 = vmatprep.subr.mxu0 0.0
          %832 = vmatpush1.xpose.msra.mxu0 0.0
          %833 = vmatprep.subr.mxu0 0.0
          %834 = vmatpush1.xpose.msra.mxu0 0.0
          %835 = vmatprep.subr.mxu0 0.0
          %836 = vmatpush1.xpose.msra.mxu0 0.0
          %837 = vmatprep.subr.mxu0 0.0
          %838 = vmatpush1.xpose.msra.mxu0 0.0
          %839 = vmatprep.subr.mxu0 0.0
          %840 = vmatpush1.xpose.msra.mxu0 0.0
          %841 = vmatprep.subr.mxu0 0.0
          %842 = vmatpush1.xpose.msra.mxu0 0.0
          %843 = vmatprep.subr.mxu0 0.0
          %844 = vmatpush1.xpose.msra.mxu0 0.0
          %845 = vmatprep.subr.mxu0 0.0
          %846 = vmatpush1.xpose.msra.mxu0 0.0
          %847 = vmatprep.subr.mxu0 0.0
          %848 = vmatpush1.xpose.msra.mxu0 0.0
          %849 = vmatprep.subr.mxu0 0.0
          %850 = vmatpush1.xpose.msra.mxu0 0.0
          %851 = vmatprep.subr.mxu0 0.0
          %852 = vmatpush1.xpose.msra.mxu0 0.0
          %853 = vmatprep.subr.mxu0 0.0
          %854 = vmatpush1.xpose.msra.mxu0 0.0
          %855 = vmatprep.subr.mxu0 0.0
          %856 = vmatpush1.xpose.msra.mxu0 0.0
          %857 = vmatprep.subr.mxu0 0.0
          %858 = vmatpush1.xpose.msra.mxu0 0.0
          %859 = vmatprep.subr.mxu0 0.0
          %860 = vmatpush1.xpose.msra.mxu0 0.0
          %861 = vmatprep.subr.mxu0 0.0
          %862 = vmatpush1.xpose.msra.mxu0 0.0
          %863 = vmatprep.subr.mxu0 0.0
          %864 = vmatpush1.xpose.msra.mxu0 0.0
          %865 = vmatprep.subr.mxu0 0.0
          %866 = vmatpush1.xpose.msra.mxu0 0.0
          %867 = vmatprep.subr.mxu0 0.0
          %868 = vmatpush1.xpose.msra.mxu0 0.0
          %869 = vmatprep.subr.mxu0 0.0
          %870 = vmatpush1.xpose.msra.mxu0 0.0
          %871 = vmatprep.subr.mxu0 0.0
          %872 = vmatpush1.xpose.msra.mxu0 0.0
          %873 = vmatprep.subr.mxu0 0.0
          %874 = vmatpush1.xpose.msra.mxu0 0.0
          %875 = vmatprep.subr.mxu0 0.0
          %876 = vmatpush1.xpose.msra.mxu0 0.0
          %877 = vmatprep.subr.mxu0 0.0
          %878 = vmatpush1.xpose.msra.mxu0 0.0
          %879 = vmatprep.subr.mxu0 0.0
          %880 = vmatpush1.xpose.msra.mxu0 0.0
          %881 = vmatprep.subr.mxu0 0.0
          %882 = vmatpush1.xpose.msra.mxu0 0.0
          %883 = vmatprep.subr.mxu0 0.0
          %884 = vmatpush1.xpose.msra.mxu0 0.0
          %885 = vmatprep.mubr.f32.mxu0 0.0
          %886 = vmatmul.mubr.f32.gmra.mrb[0].mxu0 %v813
          %v887 = vpop.f32.mrb[0].mxu0
          %v888 = vadd.f32 %v803, %v887
          %v889 = vpop.f32.mrb[0].mxu0
          %890 = vmatprep.mubr.f32.mxu0 0.0
          %891 = vmatmul.mubr.f32.gmra.mrb[0].mxu0 %v815
          %v892 = vpop.f32.mrb[0].mxu0
          %v893 = vadd.f32 %v804, %v892
          %v894 = vpop.f32.mrb[0].mxu0
          %895 = vdwg.mxu0
          %v896 = vsel %vm633, %v888, -inf
          %897 = vmax.xlane.f32.xlu0 %v896
          %v898 = vpop.xlane.xlu0 %897
          %v899 = vsel %vm633, %v893, -inf
          %900 = vmax.xlane.f32.xlu0 %v899
          %v901 = vpop.xlane.xlu0 %900
          %v902 = vmax.f32 %v479, %v898
          %v903 = vmax.f32 %v480, %v901
          %v904 = vsub.f32 %v479, %v902
          %v905 = vsub.f32 %v480, %v903
          %v906 = vmul.f32 %v904, 1.442695
          %v907 = vpow.pop %v906
          %v908 = vmul.f32 %v905, 1.442695
          %v909 = vpow.pop %v908
          %911 = vset.pattern.permute.xlu0 1
          %912 = vperm.xlu0 %911, %v902
          %v913 = vpop.permute.xlu0 %912
          %916 = vset.pattern.permute.xlu0 1
          %917 = vperm.xlu0 %916, %v903
          %v918 = vpop.permute.xlu0 %917
          %v920 = vsub.f32 %v888, %v913
          %v921 = vsub.f32 %v893, %v918
          %v922 = vmul.f32 %v920, 1.442695
          %v923 = vpow.pop %v922
          %v924 = vmul.f32 %v921, 1.442695
          %v925 = vpow.pop %v924
          %v926 = vmul.f32 %v907, %v481
          %v927 = vmul.f32 %v909, %v482
          %v928 = vsel %vm633, %v923, 0.0
          %929 = vadd.xlane.f32.xlu0 %v928
          %v930 = vpop.xlane.xlu0 %929
          %v931 = vsel %vm633, %v925, 0.0
          %932 = vadd.xlane.f32.xlu0 %v931
          %v933 = vpop.xlane.xlu0 %932
          %v934 = vadd.f32 %v926, %v930
          %v935 = vadd.f32 %v927, %v933
          %937 = vset.pattern.permute.xlu0 1
          %938 = vperm.xlu0 %937, %v907
          %v939 = vpop.permute.xlu0 %938
          %942 = vset.pattern.permute.xlu0 1
          %943 = vperm.xlu0 %942, %v909
          %v944 = vpop.permute.xlu0 %943
          %v946 = vmul.f32 %v939, %v483
          %v947 = vmul.f32 %v944, %v484
          %950 = vrot.lane.b32.xlu0 %v489, 120
          %v951 = vpop.permute.xlu0 %950
          %952 = vrot.lane.b32.xlu0 %v490, 120
          %v953 = vpop.permute.xlu0 %952
          %v957 = vsel %vm633, %v923, 0
          %v960 = vsel %vm633, %v925, 0
          %962 = vmatprep.subr.mxu0 0.0
          %963 = vmatpush1.msra.mxu0 %v951
          %964 = vmatprep.subr.mxu0 0.0
          %965 = vmatpush1.msra.mxu0 %v953
          %966 = vmatprep.subr.mxu0 0.0
          %967 = vmatpush1.msra.mxu0 0.0
          %968 = vmatprep.subr.mxu0 0.0
          %969 = vmatpush1.msra.mxu0 0.0
          %970 = vmatprep.subr.mxu0 0.0
          %971 = vmatpush1.msra.mxu0 0.0
          %972 = vmatprep.subr.mxu0 0.0
          %973 = vmatpush1.msra.mxu0 0.0
          %974 = vmatprep.subr.mxu0 0.0
          %975 = vmatpush1.msra.mxu0 0.0
          %976 = vmatprep.subr.mxu0 0.0
          %977 = vmatpush1.msra.mxu0 0.0
          %978 = vmatprep.subr.mxu0 0.0
          %979 = vmatpush1.msra.mxu0 0.0
          %980 = vmatprep.subr.mxu0 0.0
          %981 = vmatpush1.msra.mxu0 0.0
          %982 = vmatprep.subr.mxu0 0.0
          %983 = vmatpush1.msra.mxu0 0.0
          %984 = vmatprep.subr.mxu0 0.0
          %985 = vmatpush1.msra.mxu0 0.0
          %986 = vmatprep.subr.mxu0 0.0
          %987 = vmatpush1.msra.mxu0 0.0
          %988 = vmatprep.subr.mxu0 0.0
          %989 = vmatpush1.msra.mxu0 0.0
          %990 = vmatprep.subr.mxu0 0.0
          %991 = vmatpush1.msra.mxu0 0.0
          %992 = vmatprep.subr.mxu0 0.0
          %993 = vmatpush1.msra.mxu0 0.0
          %994 = vmatprep.subr.mxu0 0.0
          %995 = vmatpush1.msra.mxu0 0.0
          %996 = vmatprep.subr.mxu0 0.0
          %997 = vmatpush1.msra.mxu0 0.0
          %998 = vmatprep.subr.mxu0 0.0
          %999 = vmatpush1.msra.mxu0 0.0
          %1000 = vmatprep.subr.mxu0 0.0
          %1001 = vmatpush1.msra.mxu0 0.0
          %1002 = vmatprep.subr.mxu0 0.0
          %1003 = vmatpush1.msra.mxu0 0.0
          %1004 = vmatprep.subr.mxu0 0.0
          %1005 = vmatpush1.msra.mxu0 0.0
          %1006 = vmatprep.subr.mxu0 0.0
          %1007 = vmatpush1.msra.mxu0 0.0
          %1008 = vmatprep.subr.mxu0 0.0
          %1009 = vmatpush1.msra.mxu0 0.0
          %1010 = vmatprep.subr.mxu0 0.0
          %1011 = vmatpush1.msra.mxu0 0.0
          %1012 = vmatprep.subr.mxu0 0.0
          %1013 = vmatpush1.msra.mxu0 0.0
          %1014 = vmatprep.subr.mxu0 0.0
          %1015 = vmatpush1.msra.mxu0 0.0
          %1016 = vmatprep.subr.mxu0 0.0
          %1017 = vmatpush1.msra.mxu0 0.0
          %1018 = vmatprep.subr.mxu0 0.0
          %1019 = vmatpush1.msra.mxu0 0.0
          %1020 = vmatprep.subr.mxu0 0.0
          %1021 = vmatpush1.msra.mxu0 0.0
          %1022 = vmatprep.subr.mxu0 0.0
          %1023 = vmatpush1.msra.mxu0 0.0
          %1024 = vmatprep.subr.mxu0 0.0
          %1025 = vmatpush1.msra.mxu0 0.0
          %1026 = vmatprep.mubr.f32.mxu0 0.0
          %1027 = vmatmul.mubr.f32.gmra.mrb[0].mxu0 %v957
          %v1028 = vpop.f32.mrb[0].mxu0
          %v1029 = vadd.f32 0.0, %v1028
          %v1030 = vpop.f32.mrb[0].mxu0
          %1031 = vmatprep.mubr.f32.mxu0 0.0
          %1032 = vmatmul.mubr.f32.gmra.mrb[0].mxu0 %v960
          %v1033 = vpop.f32.mrb[0].mxu0
          %v1034 = vadd.f32 0.0, %v1033
          %v1035 = vpop.f32.mrb[0].mxu0
          %1036 = vdwg.mxu0
          %1039 = vrot.lane.b32.xlu0 %v1029, 8
          %v1040 = vpop.permute.xlu0 %1039
          %1041 = vrot.lane.b32.xlu0 %v1034, 8
          %v1042 = vpop.permute.xlu0 %1041
          %v1045 = vadd.f32 %v946, %v1040
          %v1046 = vadd.f32 %v947, %v1042
          %s1047 = sld [smem:[#allocation5 + $0x100]]
          %v1048 = vstv %s1047
          %v1049 = vsel %vm491, %v1048, -1e+30
          %v1050 = vsel %vm492, %v1048, -1e+30
          %s1051 = sld [smem:[#allocation5 + $0x101]]
          %v1052 = vstv %s1051
          %v1053 = vsel %vm497, %v1052, %v1049
          %v1054 = vsel %vm498, %v1052, %v1050
          %s1055 = sld [smem:[#allocation5 + $0x102]]
          %v1056 = vstv %s1055
          %v1057 = vsel %vm503, %v1056, %v1053
          %v1058 = vsel %vm504, %v1056, %v1054
          %s1059 = sld [smem:[#allocation5 + $0x103]]
          %v1060 = vstv %s1059
          %v1061 = vsel %vm509, %v1060, %v1057
          %v1062 = vsel %vm510, %v1060, %v1058
          %s1063 = sld [smem:[#allocation5 + $0x104]]
          %v1064 = vstv %s1063
          %v1065 = vsel %vm515, %v1064, %v1061
          %v1066 = vsel %vm516, %v1064, %v1062
          %s1067 = sld [smem:[#allocation5 + $0x105]]
          %v1068 = vstv %s1067
          %v1069 = vsel %vm521, %v1068, %v1065
          %v1070 = vsel %vm522, %v1068, %v1066
          %s1071 = sld [smem:[#allocation5 + $0x106]]
          %v1072 = vstv %s1071
          %v1073 = vsel %vm527, %v1072, %v1069
          %v1074 = vsel %vm528, %v1072, %v1070
          %s1075 = sld [smem:[#allocation5 + $0x107]]
          %v1076 = vstv %s1075
          %v1077 = vsel %vm533, %v1076, %v1073
          %v1078 = vsel %vm534, %v1076, %v1074
          %s1079 = sld [smem:[#allocation5 + $0x108]]
          %v1080 = vstv %s1079
          %v1081 = vsel %vm539, %v1080, %v1077
          %v1082 = vsel %vm540, %v1080, %v1078
          %1083 = vrot.lane.b32.xlu0 %v485, 112
          %v1084 = vpop.permute.xlu0 %1083
          %1085 = vrot.lane.b32.xlu0 %v486, 112
          %v1086 = vpop.permute.xlu0 %1085
          %1087 = vrot.lane.b32.xlu0 %v487, 112
          %v1088 = vpop.permute.xlu0 %1087
          %1089 = vrot.lane.b32.xlu0 %v488, 112
          %v1090 = vpop.permute.xlu0 %1089
          %v1091 = vsel %vm545, %v1084, 0
          %v1093 = vsel %vm545, %v1086, 0
          %v1095 = vsel %vm545, %v1088, 0
          %v1097 = vsel %vm545, %v1090, 0
          %1099 = vmatprep.subr.mxu0 0.0
          %1100 = vmatpush1.xpose.msra.mxu0 %v1095
          %1101 = vmatprep.subr.mxu0 0.0
          %1102 = vmatpush1.xpose.msra.mxu0 %v1097
          %1103 = vmatprep.subr.mxu0 0.0
          %1104 = vmatpush1.xpose.msra.mxu0 0.0
          %1105 = vmatprep.subr.mxu0 0.0
          %1106 = vmatpush1.xpose.msra.mxu0 0.0
          %1107 = vmatprep.subr.mxu0 0.0
          %1108 = vmatpush1.xpose.msra.mxu0 0.0
          %1109 = vmatprep.subr.mxu0 0.0
          %1110 = vmatpush1.xpose.msra.mxu0 0.0
          %1111 = vmatprep.subr.mxu0 0.0
          %1112 = vmatpush1.xpose.msra.mxu0 0.0
          %1113 = vmatprep.subr.mxu0 0.0
          %1114 = vmatpush1.xpose.msra.mxu0 0.0
          %1115 = vmatprep.subr.mxu0 0.0
          %1116 = vmatpush1.xpose.msra.mxu0 0.0
          %1117 = vmatprep.subr.mxu0 0.0
          %1118 = vmatpush1.xpose.msra.mxu0 0.0
          %1119 = vmatprep.subr.mxu0 0.0
          %1120 = vmatpush1.xpose.msra.mxu0 0.0
          %1121 = vmatprep.subr.mxu0 0.0
          %1122 = vmatpush1.xpose.msra.mxu0 0.0
          %1123 = vmatprep.subr.mxu0 0.0
          %1124 = vmatpush1.xpose.msra.mxu0 0.0
          %1125 = vmatprep.subr.mxu0 0.0
          %1126 = vmatpush1.xpose.msra.mxu0 0.0
          %1127 = vmatprep.subr.mxu0 0.0
          %1128 = vmatpush1.xpose.msra.mxu0 0.0
          %1129 = vmatprep.subr.mxu0 0.0
          %1130 = vmatpush1.xpose.msra.mxu0 0.0
          %1131 = vmatprep.subr.mxu0 0.0
          %1132 = vmatpush1.xpose.msra.mxu0 0.0
          %1133 = vmatprep.subr.mxu0 0.0
          %1134 = vmatpush1.xpose.msra.mxu0 0.0
          %1135 = vmatprep.subr.mxu0 0.0
          %1136 = vmatpush1.xpose.msra.mxu0 0.0
          %1137 = vmatprep.subr.mxu0 0.0
          %1138 = vmatpush1.xpose.msra.mxu0 0.0
          %1139 = vmatprep.subr.mxu0 0.0
          %1140 = vmatpush1.xpose.msra.mxu0 0.0
          %1141 = vmatprep.subr.mxu0 0.0
          %1142 = vmatpush1.xpose.msra.mxu0 0.0
          %1143 = vmatprep.subr.mxu0 0.0
          %1144 = vmatpush1.xpose.msra.mxu0 0.0
          %1145 = vmatprep.subr.mxu0 0.0
          %1146 = vmatpush1.xpose.msra.mxu0 0.0
          %1147 = vmatprep.subr.mxu0 0.0
          %1148 = vmatpush1.xpose.msra.mxu0 0.0
          %1149 = vmatprep.subr.mxu0 0.0
          %1150 = vmatpush1.xpose.msra.mxu0 0.0
          %1151 = vmatprep.subr.mxu0 0.0
          %1152 = vmatpush1.xpose.msra.mxu0 0.0
          %1153 = vmatprep.subr.mxu0 0.0
          %1154 = vmatpush1.xpose.msra.mxu0 0.0
          %1155 = vmatprep.subr.mxu0 0.0
          %1156 = vmatpush1.xpose.msra.mxu0 0.0
          %1157 = vmatprep.subr.mxu0 0.0
          %1158 = vmatpush1.xpose.msra.mxu0 0.0
          %1159 = vmatprep.subr.mxu0 0.0
          %1160 = vmatpush1.xpose.msra.mxu0 0.0
          %1161 = vmatprep.subr.mxu0 0.0
          %1162 = vmatpush1.xpose.msra.mxu0 0.0
          %1163 = vmatprep.mubr.f32.mxu0 0.0
          %1164 = vmatmul.mubr.f32.gmra.mrb[0].mxu0 %v1091
          %v1165 = vpop.f32.mrb[0].mxu0
          %v1166 = vadd.f32 %v1081, %v1165
          %v1167 = vpop.f32.mrb[0].mxu0
          %1168 = vmatprep.mubr.f32.mxu0 0.0
          %1169 = vmatmul.mubr.f32.gmra.mrb[0].mxu0 %v1093
          %v1170 = vpop.f32.mrb[0].mxu0
          %v1171 = vadd.f32 %v1082, %v1170
          %v1172 = vpop.f32.mrb[0].mxu0
          %1173 = vdwg.mxu0
          %v1174 = vsel %vm633, %v1166, -inf
          %1175 = vmax.xlane.f32.xlu0 %v1174
          %v1176 = vpop.xlane.xlu0 %1175
          %v1177 = vsel %vm633, %v1171, -inf
          %1178 = vmax.xlane.f32.xlu0 %v1177
          %v1179 = vpop.xlane.xlu0 %1178
          %v1180 = vmax.f32 %v479, %v1176
          %v1181 = vmax.f32 %v480, %v1179
          %v1182 = vsub.f32 %v479, %v1180
          %v1183 = vsub.f32 %v480, %v1181
          %v1184 = vmul.f32 %v1182, 1.442695
          %v1185 = vpow.pop %v1184
          %v1186 = vmul.f32 %v1183, 1.442695
          %v1187 = vpow.pop %v1186
          %1189 = vset.pattern.permute.xlu0 2
          %1190 = vperm.xlu0 %1189, %v1180
          %v1191 = vpop.permute.xlu0 %1190
          %1194 = vset.pattern.permute.xlu0 2
          %1195 = vperm.xlu0 %1194, %v1181
          %v1196 = vpop.permute.xlu0 %1195
          %v1198 = vsub.f32 %v1166, %v1191
          %v1199 = vsub.f32 %v1171, %v1196
          %v1200 = vmul.f32 %v1198, 1.442695
          %v1201 = vpow.pop %v1200
          %v1202 = vmul.f32 %v1199, 1.442695
          %v1203 = vpow.pop %v1202
          %v1204 = vmul.f32 %v1185, %v481
          %v1205 = vmul.f32 %v1187, %v482
          %v1206 = vsel %vm633, %v1201, 0.0
          %1207 = vadd.xlane.f32.xlu0 %v1206
          %v1208 = vpop.xlane.xlu0 %1207
          %v1209 = vsel %vm633, %v1203, 0.0
          %1210 = vadd.xlane.f32.xlu0 %v1209
          %v1211 = vpop.xlane.xlu0 %1210
          %v1212 = vadd.f32 %v1204, %v1208
          %v1213 = vadd.f32 %v1205, %v1211
          %1215 = vset.pattern.permute.xlu0 2
          %1216 = vperm.xlu0 %1215, %v1185
          %v1217 = vpop.permute.xlu0 %1216
          %1220 = vset.pattern.permute.xlu0 2
          %1221 = vperm.xlu0 %1220, %v1187
          %v1222 = vpop.permute.xlu0 %1221
          %v1224 = vmul.f32 %v1217, %v483
          %v1225 = vmul.f32 %v1222, %v484
          %1226 = vrot.lane.b32.xlu0 %v489, 112
          %v1227 = vpop.permute.xlu0 %1226
          %1228 = vrot.lane.b32.xlu0 %v490, 112
          %v1229 = vpop.permute.xlu0 %1228
          %v1233 = vsel %vm633, %v1201, 0
          %v1236 = vsel %vm633, %v1203, 0
          %1238 = vmatprep.subr.mxu0 0.0
          %1239 = vmatpush1.msra.mxu0 %v1227
          %1240 = vmatprep.subr.mxu0 0.0
          %1241 = vmatpush1.msra.mxu0 %v1229
          %1242 = vmatprep.subr.mxu0 0.0
          %1243 = vmatpush1.msra.mxu0 0.0
          %1244 = vmatprep.subr.mxu0 0.0
          %1245 = vmatpush1.msra.mxu0 0.0
          %1246 = vmatprep.subr.mxu0 0.0
          %1247 = vmatpush1.msra.mxu0 0.0
          %1248 = vmatprep.subr.mxu0 0.0
          %1249 = vmatpush1.msra.mxu0 0.0
          %1250 = vmatprep.subr.mxu0 0.0
          %1251 = vmatpush1.msra.mxu0 0.0
          %1252 = vmatprep.subr.mxu0 0.0
          %1253 = vmatpush1.msra.mxu0 0.0
          %1254 = vmatprep.subr.mxu0 0.0
          %1255 = vmatpush1.msra.mxu0 0.0
          %1256 = vmatprep.subr.mxu0 0.0
          %1257 = vmatpush1.msra.mxu0 0.0
          %1258 = vmatprep.subr.mxu0 0.0
          %1259 = vmatpush1.msra.mxu0 0.0
          %1260 = vmatprep.subr.mxu0 0.0
          %1261 = vmatpush1.msra.mxu0 0.0
          %1262 = vmatprep.subr.mxu0 0.0
          %1263 = vmatpush1.msra.mxu0 0.0
          %1264 = vmatprep.subr.mxu0 0.0
          %1265 = vmatpush1.msra.mxu0 0.0
          %1266 = vmatprep.subr.mxu0 0.0
          %1267 = vmatpush1.msra.mxu0 0.0
          %1268 = vmatprep.subr.mxu0 0.0
          %1269 = vmatpush1.msra.mxu0 0.0
          %1270 = vmatprep.subr.mxu0 0.0
          %1271 = vmatpush1.msra.mxu0 0.0
          %1272 = vmatprep.subr.mxu0 0.0
          %1273 = vmatpush1.msra.mxu0 0.0
          %1274 = vmatprep.subr.mxu0 0.0
          %1275 = vmatpush1.msra.mxu0 0.0
          %1276 = vmatprep.subr.mxu0 0.0
          %1277 = vmatpush1.msra.mxu0 0.0
          %1278 = vmatprep.subr.mxu0 0.0
          %1279 = vmatpush1.msra.mxu0 0.0
          %1280 = vmatprep.subr.mxu0 0.0
          %1281 = vmatpush1.msra.mxu0 0.0
          %1282 = vmatprep.subr.mxu0 0.0
          %1283 = vmatpush1.msra.mxu0 0.0
          %1284 = vmatprep.subr.mxu0 0.0
          %1285 = vmatpush1.msra.mxu0 0.0
          %1286 = vmatprep.subr.mxu0 0.0
          %1287 = vmatpush1.msra.mxu0 0.0
          %1288 = vmatprep.subr.mxu0 0.0
          %1289 = vmatpush1.msra.mxu0 0.0
          %1290 = vmatprep.subr.mxu0 0.0
          %1291 = vmatpush1.msra.mxu0 0.0
          %1292 = vmatprep.subr.mxu0 0.0
          %1293 = vmatpush1.msra.mxu0 0.0
          %1294 = vmatprep.subr.mxu0 0.0
          %1295 = vmatpush1.msra.mxu0 0.0
          %1296 = vmatprep.subr.mxu0 0.0
          %1297 = vmatpush1.msra.mxu0 0.0
          %1298 = vmatprep.subr.mxu0 0.0
          %1299 = vmatpush1.msra.mxu0 0.0
          %1300 = vmatprep.subr.mxu0 0.0
          %1301 = vmatpush1.msra.mxu0 0.0
          %1302 = vmatprep.mubr.f32.mxu0 0.0
          %1303 = vmatmul.mubr.f32.gmra.mrb[0].mxu0 %v1233
          %v1304 = vpop.f32.mrb[0].mxu0
          %v1305 = vadd.f32 0.0, %v1304
          %v1306 = vpop.f32.mrb[0].mxu0
          %1307 = vmatprep.mubr.f32.mxu0 0.0
          %1308 = vmatmul.mubr.f32.gmra.mrb[0].mxu0 %v1236
          %v1309 = vpop.f32.mrb[0].mxu0
          %v1310 = vadd.f32 0.0, %v1309
          %v1311 = vpop.f32.mrb[0].mxu0
          %1312 = vdwg.mxu0
          %1315 = vrot.lane.b32.xlu0 %v1305, 16
          %v1316 = vpop.permute.xlu0 %1315
          %1317 = vrot.lane.b32.xlu0 %v1310, 16
          %v1318 = vpop.permute.xlu0 %1317
          %v1321 = vadd.f32 %v1224, %v1316
          %v1322 = vadd.f32 %v1225, %v1318
          %s1323 = sld [smem:[#allocation5 + $0x180]]
          %v1324 = vstv %s1323
          %v1325 = vsel %vm491, %v1324, -1e+30
          %v1326 = vsel %vm492, %v1324, -1e+30
          %s1327 = sld [smem:[#allocation5 + $0x181]]
          %v1328 = vstv %s1327
          %v1329 = vsel %vm497, %v1328, %v1325
          %v1330 = vsel %vm498, %v1328, %v1326
          %s1331 = sld [smem:[#allocation5 + $0x182]]
          %v1332 = vstv %s1331
          %v1333 = vsel %vm503, %v1332, %v1329
          %v1334 = vsel %vm504, %v1332, %v1330
          %s1335 = sld [smem:[#allocation5 + $0x183]]
          %v1336 = vstv %s1335
          %v1337 = vsel %vm509, %v1336, %v1333
          %v1338 = vsel %vm510, %v1336, %v1334
          %s1339 = sld [smem:[#allocation5 + $0x184]]
          %v1340 = vstv %s1339
          %v1341 = vsel %vm515, %v1340, %v1337
          %v1342 = vsel %vm516, %v1340, %v1338
          %s1343 = sld [smem:[#allocation5 + $0x185]]
          %v1344 = vstv %s1343
          %v1345 = vsel %vm521, %v1344, %v1341
          %v1346 = vsel %vm522, %v1344, %v1342
          %s1347 = sld [smem:[#allocation5 + $0x186]]
          %v1348 = vstv %s1347
          %v1349 = vsel %vm527, %v1348, %v1345
          %v1350 = vsel %vm528, %v1348, %v1346
          %s1351 = sld [smem:[#allocation5 + $0x187]]
          %v1352 = vstv %s1351
          %v1353 = vsel %vm533, %v1352, %v1349
          %v1354 = vsel %vm534, %v1352, %v1350
          %s1355 = sld [smem:[#allocation5 + $0x188]]
          %v1356 = vstv %s1355
          %v1357 = vsel %vm539, %v1356, %v1353
          %v1358 = vsel %vm540, %v1356, %v1354
          %1359 = vrot.lane.b32.xlu0 %v485, 104
          %v1360 = vpop.permute.xlu0 %1359
          %1361 = vrot.lane.b32.xlu0 %v486, 104
          %v1362 = vpop.permute.xlu0 %1361
          %1363 = vrot.lane.b32.xlu0 %v487, 104
          %v1364 = vpop.permute.xlu0 %1363
          %1365 = vrot.lane.b32.xlu0 %v488, 104
          %v1366 = vpop.permute.xlu0 %1365
          %v1367 = vsel %vm545, %v1360, 0
          %v1369 = vsel %vm545, %v1362, 0
          %v1371 = vsel %vm545, %v1364, 0
          %v1373 = vsel %vm545, %v1366, 0
          %1375 = vmatprep.subr.mxu0 0.0
          %1376 = vmatpush1.xpose.msra.mxu0 %v1371
          %1377 = vmatprep.subr.mxu0 0.0
          %1378 = vmatpush1.xpose.msra.mxu0 %v1373
          %1379 = vmatprep.subr.mxu0 0.0
          %1380 = vmatpush1.xpose.msra.mxu0 0.0
          %1381 = vmatprep.subr.mxu0 0.0
          %1382 = vmatpush1.xpose.msra.mxu0 0.0
          %1383 = vmatprep.subr.mxu0 0.0
          %1384 = vmatpush1.xpose.msra.mxu0 0.0
          %1385 = vmatprep.subr.mxu0 0.0
          %1386 = vmatpush1.xpose.msra.mxu0 0.0
          %1387 = vmatprep.subr.mxu0 0.0
          %1388 = vmatpush1.xpose.msra.mxu0 0.0
          %1389 = vmatprep.subr.mxu0 0.0
          %1390 = vmatpush1.xpose.msra.mxu0 0.0
          %1391 = vmatprep.subr.mxu0 0.0
          %1392 = vmatpush1.xpose.msra.mxu0 0.0
          %1393 = vmatprep.subr.mxu0 0.0
          %1394 = vmatpush1.xpose.msra.mxu0 0.0
          %1395 = vmatprep.subr.mxu0 0.0
          %1396 = vmatpush1.xpose.msra.mxu0 0.0
          %1397 = vmatprep.subr.mxu0 0.0
          %1398 = vmatpush1.xpose.msra.mxu0 0.0
          %1399 = vmatprep.subr.mxu0 0.0
          %1400 = vmatpush1.xpose.msra.mxu0 0.0
          %1401 = vmatprep.subr.mxu0 0.0
          %1402 = vmatpush1.xpose.msra.mxu0 0.0
          %1403 = vmatprep.subr.mxu0 0.0
          %1404 = vmatpush1.xpose.msra.mxu0 0.0
          %1405 = vmatprep.subr.mxu0 0.0
          %1406 = vmatpush1.xpose.msra.mxu0 0.0
          %1407 = vmatprep.subr.mxu0 0.0
          %1408 = vmatpush1.xpose.msra.mxu0 0.0
          %1409 = vmatprep.subr.mxu0 0.0
          %1410 = vmatpush1.xpose.msra.mxu0 0.0
          %1411 = vmatprep.subr.mxu0 0.0
          %1412 = vmatpush1.xpose.msra.mxu0 0.0
          %1413 = vmatprep.subr.mxu0 0.0
          %1414 = vmatpush1.xpose.msra.mxu0 0.0
          %1415 = vmatprep.subr.mxu0 0.0
          %1416 = vmatpush1.xpose.msra.mxu0 0.0
          %1417 = vmatprep.subr.mxu0 0.0
          %1418 = vmatpush1.xpose.msra.mxu0 0.0
          %1419 = vmatprep.subr.mxu0 0.0
          %1420 = vmatpush1.xpose.msra.mxu0 0.0
          %1421 = vmatprep.subr.mxu0 0.0
          %1422 = vmatpush1.xpose.msra.mxu0 0.0
          %1423 = vmatprep.subr.mxu0 0.0
          %1424 = vmatpush1.xpose.msra.mxu0 0.0
          %1425 = vmatprep.subr.mxu0 0.0
          %1426 = vmatpush1.xpose.msra.mxu0 0.0
          %1427 = vmatprep.subr.mxu0 0.0
          %1428 = vmatpush1.xpose.msra.mxu0 0.0
          %1429 = vmatprep.subr.mxu0 0.0
          %1430 = vmatpush1.xpose.msra.mxu0 0.0
          %1431 = vmatprep.subr.mxu0 0.0
          %1432 = vmatpush1.xpose.msra.mxu0 0.0
          %1433 = vmatprep.subr.mxu0 0.0
          %1434 = vmatpush1.xpose.msra.mxu0 0.0
          %1435 = vmatprep.subr.mxu0 0.0
          %1436 = vmatpush1.xpose.msra.mxu0 0.0
          %1437 = vmatprep.subr.mxu0 0.0
          %1438 = vmatpush1.xpose.msra.mxu0 0.0
          %1439 = vmatprep.mubr.f32.mxu0 0.0
          %1440 = vmatmul.mubr.f32.gmra.mrb[0].mxu0 %v1367
          %v1441 = vpop.f32.mrb[0].mxu0
          %v1442 = vadd.f32 %v1357, %v1441
          %v1443 = vpop.f32.mrb[0].mxu0
          %1444 = vmatprep.mubr.f32.mxu0 0.0
          %1445 = vmatmul.mubr.f32.gmra.mrb[0].mxu0 %v1369
          %v1446 = vpop.f32.mrb[0].mxu0
          %v1447 = vadd.f32 %v1358, %v1446
          %v1448 = vpop.f32.mrb[0].mxu0
          %1449 = vdwg.mxu0
          %v1450 = vsel %vm633, %v1442, -inf
          %1451 = vmax.xlane.f32.xlu0 %v1450
          %v1452 = vpop.xlane.xlu0 %1451
          %v1453 = vsel %vm633, %v1447, -inf
          %1454 = vmax.xlane.f32.xlu0 %v1453
          %v1455 = vpop.xlane.xlu0 %1454
          %v1456 = vmax.f32 %v479, %v1452
          %v1457 = vmax.f32 %v480, %v1455
          %v1458 = vsub.f32 %v479, %v1456
          %v1459 = vsub.f32 %v480, %v1457
          %v1460 = vmul.f32 %v1458, 1.442695
          %v1461 = vpow.pop %v1460
          %v1462 = vmul.f32 %v1459, 1.442695
          %v1463 = vpow.pop %v1462
          %1465 = vset.pattern.permute.xlu0 3
          %1466 = vperm.xlu0 %1465, %v1456
          %v1467 = vpop.permute.xlu0 %1466
          %1470 = vset.pattern.permute.xlu0 3
          %1471 = vperm.xlu0 %1470, %v1457
          %v1472 = vpop.permute.xlu0 %1471
          %v1474 = vsub.f32 %v1442, %v1467
          %v1475 = vsub.f32 %v1447, %v1472
          %v1476 = vmul.f32 %v1474, 1.442695
          %v1477 = vpow.pop %v1476
          %v1478 = vmul.f32 %v1475, 1.442695
          %v1479 = vpow.pop %v1478
          %v1480 = vmul.f32 %v1461, %v481
          %v1481 = vmul.f32 %v1463, %v482
          %v1482 = vsel %vm633, %v1477, 0.0
          %1483 = vadd.xlane.f32.xlu0 %v1482
          %v1484 = vpop.xlane.xlu0 %1483
          %v1485 = vsel %vm633, %v1479, 0.0
          %1486 = vadd.xlane.f32.xlu0 %v1485
          %v1487 = vpop.xlane.xlu0 %1486
          %v1488 = vadd.f32 %v1480, %v1484
          %v1489 = vadd.f32 %v1481, %v1487
          %1491 = vset.pattern.permute.xlu0 3
          %1492 = vperm.xlu0 %1491, %v1461
          %v1493 = vpop.permute.xlu0 %1492
          %1496 = vset.pattern.permute.xlu0 3
          %1497 = vperm.xlu0 %1496, %v1463
          %v1498 = vpop.permute.xlu0 %1497
          %v1500 = vmul.f32 %v1493, %v483
          %v1501 = vmul.f32 %v1498, %v484
          %1502 = vrot.lane.b32.xlu0 %v489, 104
          %v1503 = vpop.permute.xlu0 %1502
          %1504 = vrot.lane.b32.xlu0 %v490, 104
          %v1505 = vpop.permute.xlu0 %1504
          %v1509 = vsel %vm633, %v1477, 0
          %v1512 = vsel %vm633, %v1479, 0
          %1514 = vmatprep.subr.mxu0 0.0
          %1515 = vmatpush1.msra.mxu0 %v1503
          %1516 = vmatprep.subr.mxu0 0.0
          %1517 = vmatpush1.msra.mxu0 %v1505
          %1518 = vmatprep.subr.mxu0 0.0
          %1519 = vmatpush1.msra.mxu0 0.0
          %1520 = vmatprep.subr.mxu0 0.0
          %1521 = vmatpush1.msra.mxu0 0.0
          %1522 = vmatprep.subr.mxu0 0.0
          %1523 = vmatpush1.msra.mxu0 0.0
          %1524 = vmatprep.subr.mxu0 0.0
          %1525 = vmatpush1.msra.mxu0 0.0
          %1526 = vmatprep.subr.mxu0 0.0
          %1527 = vmatpush1.msra.mxu0 0.0
          %1528 = vmatprep.subr.mxu0 0.0
          %1529 = vmatpush1.msra.mxu0 0.0
          %1530 = vmatprep.subr.mxu0 0.0
          %1531 = vmatpush1.msra.mxu0 0.0
          %1532 = vmatprep.subr.mxu0 0.0
          %1533 = vmatpush1.msra.mxu0 0.0
          %1534 = vmatprep.subr.mxu0 0.0
          %1535 = vmatpush1.msra.mxu0 0.0
          %1536 = vmatprep.subr.mxu0 0.0
          %1537 = vmatpush1.msra.mxu0 0.0
          %1538 = vmatprep.subr.mxu0 0.0
          %1539 = vmatpush1.msra.mxu0 0.0
          %1540 = vmatprep.subr.mxu0 0.0
          %1541 = vmatpush1.msra.mxu0 0.0
          %1542 = vmatprep.subr.mxu0 0.0
          %1543 = vmatpush1.msra.mxu0 0.0
          %1544 = vmatprep.subr.mxu0 0.0
          %1545 = vmatpush1.msra.mxu0 0.0
          %1546 = vmatprep.subr.mxu0 0.0
          %1547 = vmatpush1.msra.mxu0 0.0
          %1548 = vmatprep.subr.mxu0 0.0
          %1549 = vmatpush1.msra.mxu0 0.0
          %1550 = vmatprep.subr.mxu0 0.0
          %1551 = vmatpush1.msra.mxu0 0.0
          %1552 = vmatprep.subr.mxu0 0.0
          %1553 = vmatpush1.msra.mxu0 0.0
          %1554 = vmatprep.subr.mxu0 0.0
          %1555 = vmatpush1.msra.mxu0 0.0
          %1556 = vmatprep.subr.mxu0 0.0
          %1557 = vmatpush1.msra.mxu0 0.0
          %1558 = vmatprep.subr.mxu0 0.0
          %1559 = vmatpush1.msra.mxu0 0.0
          %1560 = vmatprep.subr.mxu0 0.0
          %1561 = vmatpush1.msra.mxu0 0.0
          %1562 = vmatprep.subr.mxu0 0.0
          %1563 = vmatpush1.msra.mxu0 0.0
          %1564 = vmatprep.subr.mxu0 0.0
          %1565 = vmatpush1.msra.mxu0 0.0
          %1566 = vmatprep.subr.mxu0 0.0
          %1567 = vmatpush1.msra.mxu0 0.0
          %1568 = vmatprep.subr.mxu0 0.0
          %1569 = vmatpush1.msra.mxu0 0.0
          %1570 = vmatprep.subr.mxu0 0.0
          %1571 = vmatpush1.msra.mxu0 0.0
          %1572 = vmatprep.subr.mxu0 0.0
          %1573 = vmatpush1.msra.mxu0 0.0
          %1574 = vmatprep.subr.mxu0 0.0
          %1575 = vmatpush1.msra.mxu0 0.0
          %1576 = vmatprep.subr.mxu0 0.0
          %1577 = vmatpush1.msra.mxu0 0.0
          %1578 = vmatprep.mubr.f32.mxu0 0.0
          %1579 = vmatmul.mubr.f32.gmra.mrb[0].mxu0 %v1509
          %v1580 = vpop.f32.mrb[0].mxu0
          %v1581 = vadd.f32 0.0, %v1580
          %v1582 = vpop.f32.mrb[0].mxu0
          %1583 = vmatprep.mubr.f32.mxu0 0.0
          %1584 = vmatmul.mubr.f32.gmra.mrb[0].mxu0 %v1512
          %v1585 = vpop.f32.mrb[0].mxu0
          %v1586 = vadd.f32 0.0, %v1585
          %v1587 = vpop.f32.mrb[0].mxu0
          %1588 = vdwg.mxu0
          %1591 = vrot.lane.b32.xlu0 %v1581, 24
          %v1592 = vpop.permute.xlu0 %1591
          %1593 = vrot.lane.b32.xlu0 %v1586, 24
          %v1594 = vpop.permute.xlu0 %1593
          %v1597 = vadd.f32 %v1500, %v1592
          %v1598 = vadd.f32 %v1501, %v1594
          %vm1599 = vcmask 7168
          %v1600 = vsel %vm1599, %v640, %v902
          %v1601 = vsel %vm1599, %v641, %v903
          %vm1602 = vcmask 15360
          %v1603 = vsel %vm1602, %v1600, %v1180
          %v1604 = vsel %vm1602, %v1601, %v1181
          %vm1605 = vcmask 23552
          %v1606 = vsel %vm1605, %v1603, %v1456
          %v1607 = vsel %vm1605, %v1604, %v1457
          %vm1608 = vcmask 31744
          %1609 = vst.msk [vmem:[#allocation2] sm:$0xff] %vm1608, %v1606
          %1610 = vst.msk [vmem:[#allocation2 + $0x8] sm:$0xff] %vm1608, %v1607
          %v1611 = vsel %vm1599, %v672, %v934
          %v1612 = vsel %vm1599, %v673, %v935
          %v1613 = vsel %vm1602, %v1611, %v1212
          %v1614 = vsel %vm1602, %v1612, %v1213
          %v1615 = vsel %vm1605, %v1613, %v1488
          %v1616 = vsel %vm1605, %v1614, %v1489
          %1617 = vst.msk [vmem:[#allocation3] sm:$0xff] %vm1608, %v1615
          %1618 = vst.msk [vmem:[#allocation3 + $0x8] sm:$0xff] %vm1608, %v1616
          %v1619 = vsel %vm545, %v767, %v1045
          %v1620 = vsel %vm545, %v768, %v1046
          %v1621 = vsel %vm633, %v1619, %v1321
          %v1622 = vsel %vm633, %v1620, %v1322
          %vm1623 = vcmask 195584
          %v1624 = vsel %vm1623, %v1621, %v1597
          %v1625 = vsel %vm1623, %v1622, %v1598
          %vm1626 = vcmask 261120
          %1627 = vst.msk [vmem:[#allocation4] sm:$0xff] %vm1626, %v1624
          %1628 = vst.msk [vmem:[#allocation4 + $0x8] sm:$0xff] %vm1626, %v1625
        $region48: #{neighborhood_attention_1d.4} parent=35 // pred_fallthru
          _
        // Predicated region
        $region49: #{neighborhood_attention_1d.4} parent=35 // pred_check
          %p1629 = pneg %p400
        $region50: #{neighborhood_attention_1d.4} parent=35 // pred_check_branch
          %1631 = sbr.rel (%p1629) target = $region52
        $region51: #{neighborhood_attention_1d.4} parent=35 // pred_region
          %v1632 = vld [vmem:[#allocation3] sm:$0xff]
          %v1633 = vld [vmem:[#allocation3 + $0x8] sm:$0xff]
          %v1634 = vrcp.pop %v1632
          %v1635 = vrcp.pop %v1633
          %1637 = vset.pattern.permute.xlu0 0
          %1638 = vperm.xlu0 %1637, %v1634
          %v1639 = vpop.permute.xlu0 %1638
          %1642 = vset.pattern.permute.xlu0 0
          %1643 = vperm.xlu0 %1642, %v1635
          %v1644 = vpop.permute.xlu0 %1643
          %1646 = vset.pattern.permute.xlu0 1
          %1647 = vperm.xlu0 %1646, %v1634
          %v1648 = vpop.permute.xlu0 %1647
          %1650 = vset.pattern.permute.xlu0 1
          %1651 = vperm.xlu0 %1650, %v1635
          %v1652 = vpop.permute.xlu0 %1651
          %1654 = vset.pattern.permute.xlu0 2
          %1655 = vperm.xlu0 %1654, %v1634
          %v1656 = vpop.permute.xlu0 %1655
          %1658 = vset.pattern.permute.xlu0 2
          %1659 = vperm.xlu0 %1658, %v1635
          %v1660 = vpop.permute.xlu0 %1659
          %1662 = vset.pattern.permute.xlu0 3
          %1663 = vperm.xlu0 %1662, %v1634
          %v1664 = vpop.permute.xlu0 %1663
          %1666 = vset.pattern.permute.xlu0 3
          %1667 = vperm.xlu0 %1666, %v1635
          %v1668 = vpop.permute.xlu0 %1667
          %vm1670 = vcmask 64512
          %v1671 = vsel %vm1670, %v1639, %v1648
          %v1672 = vsel %vm1670, %v1644, %v1652
          %vm1673 = vcmask 130048
          %v1674 = vsel %vm1673, %v1671, %v1656
          %v1675 = vsel %vm1673, %v1672, %v1660
          %vm1676 = vcmask 195584
          %v1677 = vsel %vm1676, %v1674, %v1664
          %v1678 = vsel %vm1676, %v1675, %v1668
          %v1679 = vld [vmem:[#allocation4] sm:$0xff]
          %v1680 = vld [vmem:[#allocation4 + $0x8] sm:$0xff]
          %v1681 = vmul.f32 %v1679, %v1677
          %v1682 = vmul.f32 %v1680, %v1678
          %vm1683 = vcmask 261120
          %1684 = vst.msk [vmem:[%s398] sm:$0xff] %vm1683, %v1681
          %1685 = vst.msk [vmem:[%s398 + $0x8] sm:$0xff] %vm1683, %v1682
        $region52: #{neighborhood_attention_1d.4} parent=35 // pred_fallthru
          _
        %s1686 = smul.u32 2, %s22
        %p1687 = scmp.lt.s32.totalorder %s21, 1
        %s1688 = scalar_select %p1687, %s21, 1
        %p1689 = scmp.lt.s32.totalorder %s1686, 1
        %s1690 = scalar_select %p1689, %s1686, 1
        %s1691 = smul.addr %s1688, 2
        %s1692 = sadd.s32 %s1690, %s1691
        %s1693 = smul.addr %s1692, 8
        %s1694 = scalar_lea.vmem %s4, %s1693
        // Predicated region
        $region53: #{neighborhood_attention_1d.4} parent=35 // pred_check
          %p1695 = pneg %p180
        $region54: #{neighborhood_attention_1d.4} parent=35 // pred_check_branch
          %1697 = sbr.rel (%p1695) target = $region56
        $region55: #{neighborhood_attention_1d.4} parent=35 // pred_region
          %s1698 = smul.u32 2, %s22
        $region56: #{neighborhood_attention_1d.4} parent=35 // pred_fallthru
          _
      $region36: #{neighborhood_attention_1d.4} parent=5 // pred_fallthru
        _
      %p1699 = scmp.le.s32.totalorder 2, %s11
      // Predicated region
      $region57: #{neighborhood_attention_1d.4} parent=5 // pred_check
        %p1700 = pneg %p1699
      $region58: #{neighborhood_attention_1d.4} parent=5 // pred_check_branch
        %1702 = sbr.rel (%p1700) target = $region60
      $region59: #{neighborhood_attention_1d.4} parent=5 // pred_region
        %s1703 = ssub.s32 %s11, 2
        // Predicated region
        $region61: #{neighborhood_attention_1d.4} parent=59 // pred_check
          %p1704 = pneg %p186
        $region62: #{neighborhood_attention_1d.4} parent=59 // pred_check_branch
          %1706 = sbr.rel (%p1704) target = $region64
        $region63: #{neighborhood_attention_1d.4} parent=59 // pred_region
          %s1707 = smul.u32 2, %s25
          %p1708 = scmp.lt.s32.totalorder %s24, 1
          %s1709 = scalar_select %p1708, %s24, 1
          %p1710 = scmp.lt.s32.totalorder %s1707, 1
          %s1711 = scalar_select %p1710, %s1707, 1
          %s1712 = smul.addr %s1709, 2
          %s1713 = sadd.s32 %s1711, %s1712
          %s1714 = smul.addr %s1713, 8
          %s1715 = scalar_lea.vmem %s4, %s1714
        $region64: #{neighborhood_attention_1d.4} parent=59 // pred_fallthru
          _
      $region60: #{neighborhood_attention_1d.4} parent=5 // pred_fallthru
        _
    $region6: #{neighborhood_attention_1d.4} parent=1 // loop_footer
      %s15 = sadd.s32 1, %s11
    $region7: #{neighborhood_attention_1d.4} parent=1 // loop_footer_branch
      %10 = sbr.rel target = $region3
    $region8: #{neighborhood_attention_1d.4} parent=1 // loop_exit
      _
    %1716 = vsyncpa [#allocation6], 1
    %s1717 = scalar_lea.sflag [#allocation6], 1
    %1718 = vsyncpa %s1717, 1

</llo_original>
